<compile_context>
chip_gen: v5e
topology: v5e:2x2
jax: 0.10.0
libtpu: 0.0.40
codegen_flags: <defaults>
</compile_context>

<pallas_src>
import math
from functools import partial

import jax
import jax.numpy as jnp
from jax.experimental import pallas as pl
from jax.experimental.pallas import tpu as pltpu


# ---------------------------------------------------------------------------
# Fully fused MLP forward kernel
# ---------------------------------------------------------------------------
def _fused_mlp_kernel(x_ref,
                      w1_ref, b1_ref, w2_ref, b2_ref, w3_ref, b3_ref, w4_ref, b4_ref,
                      w5_ref, b5_ref, w6_ref,
                      out_ref,
                      h4_ref):
    """grid = (split, hidden_chunk); split is 'parallel', hidden_chunk 'arbitrary'.

    Step (s, h) handles hidden chunk c = s*n_hid + h of the 4096-wide layer-5
    output and accumulates its layer-6 contribution into out_ref (partial for
    split s).  Bias6 + final ReLU + cross-split sum happen in the wrapper.
    """
    h = pl.program_id(1)

    @pl.when(h == 0)
    def _():
        # Small head (2(->8) -> 16 -> 64 -> 256 -> 1024); resident weights, ~4.5 MFLOP.
        a = x_ref[...]
        for w_r, b_r in ((w1_ref, b1_ref), (w2_ref, b2_ref),
                         (w3_ref, b3_ref), (w4_ref, b4_ref)):
            w = w_r[...]
            a = jnp.maximum(
                jnp.dot(a.astype(w.dtype), w, preferred_element_type=jnp.float32)
                + b_r[...], 0.0)
        h4_ref[...] = a                          # cache (N, 1024) f32
        out_ref[...] = jnp.zeros_like(out_ref)   # init partial accumulator

    # Layer 5 (chunk of 4096 cols) + layer 6 (chunk of 4096 rows), bf16 on MXU,
    # f32 accumulation directly in the revisited output block.
    h5 = jnp.maximum(
        jnp.dot(h4_ref[...].astype(jnp.bfloat16), w5_ref[...],
                preferred_element_type=jnp.float32) + b5_ref[...], 0.0)
    out_ref[...] += jnp.dot(h5.astype(jnp.bfloat16), w6_ref[...],
                            preferred_element_type=jnp.float32)


def _fused_mlp(x_pad, head, w5, b5, w6, *, n_split, th):
    """x_pad: (N, 8) f32.  Returns per-split partial pre-activations (n_split, N, f_out)."""
    n_rows = x_pad.shape[0]
    k5, hid = w5.shape              # (1024, 4096)
    f_out = w6.shape[1]
    n_hid = hid // (n_split * th)   # hidden chunks per split

    def resident(arr):              # constant index_map -> DMA'd once, stays in VMEM
        return pl.BlockSpec(arr.shape, lambda s, h: (0, 0))

    ins, in_specs = [x_pad], [resident(x_pad)]
    for w, b in head:
        ins += [w, b]
        in_specs += [resident(w), resident(b)]
    ins += [w5, b5, w6]
    in_specs += [
        pl.BlockSpec((k5, th), lambda s, h: (0, s * n_hid + h)),   # W5 column chunk
        pl.BlockSpec((1, th), lambda s, h: (0, s * n_hid + h)),    # b5 chunk
        pl.BlockSpec((th, f_out), lambda s, h: (s * n_hid + h, 0)),  # W6 row chunk
    ]

    return pl.pallas_call(
        _fused_mlp_kernel,
        out_shape=jax.ShapeDtypeStruct((n_split, n_rows, f_out), jnp.float32),
        grid_spec=pltpu.PrefetchScalarGridSpec(
            num_scalar_prefetch=0,
            grid=(n_split, n_hid),
            in_specs=in_specs,
            out_specs=pl.BlockSpec((None, n_rows, f_out), lambda s, h: (s, 0, 0)),
            scratch_shapes=[pltpu.VMEM((n_rows, k5), jnp.float32)],   # cached h4
        ),
        compiler_params=pltpu.CompilerParams(
            dimension_semantics=("parallel", "arbitrary"),
            vmem_limit_bytes=32 << 20,
        ),
    )(*ins)


# ---------------------------------------------------------------------------
# Module: parameters + forward
# ---------------------------------------------------------------------------
def init_params(key, img_width, img_height):
    """PyTorch-style Linear init, weights stored (in, out)."""
    dims = [2, 16, 64, 256, 1024, 4096, img_width * img_height]
    params = []
    for i in range(len(dims) - 1):
        key, kw, kb = jax.random.split(key, 3)
        bound = 1.0 / math.sqrt(dims[i])
        w = jax.random.uniform(kw, (dims[i], dims[i + 1]), jnp.float32,
                               minval=-bound, maxval=bound)
        b = jax.random.uniform(kb, (dims[i + 1],), jnp.float32,
                               minval=-bound, maxval=bound)
        params.append((w, b))
    return params


def prepare_params(params):
    """One-time pack: pad W1 to 8 input lanes, big weights -> bf16, biases -> (1, n)."""
    (w1, b1), (w2, b2), (w3, b3), (w4, b4), (w5, b5), (w6, b6) = params
    w1p = jnp.pad(w1, ((0, 6), (0, 0)))   # (8, 16); zero rows contribute exactly 0
    head = [
        (w1p, b1.reshape(1, -1)),
        (w2, b2.reshape(1, -1)),
        (w3, b3.reshape(1, -1)),
        (w4.astype(jnp.bfloat16), b4.reshape(1, -1)),
    ]
    return dict(head=head,
                w5=w5.astype(jnp.bfloat16), b5=b5.reshape(1, -1),
                w6=w6.astype(jnp.bfloat16), b6=b6.reshape(1, -1))


def recon_detection_map_with_kp(keypoints, packed, *, img_width, img_height,
                                num_of_kp, n_split=2):
    """keypoints: (B, num_of_kp, 2) -> (B, num_of_kp, img_height, img_width)."""
    b, k, two = keypoints.shape
    assert k == num_of_kp and two == 2
    n = b * k
    n_pad = ((n + 7) // 8) * 8
    x = keypoints.astype(jnp.float32).reshape(n, 2)
    x = jnp.pad(x, ((0, n_pad - n), (0, 6)))          # rows -> mult of 8, lanes 2 -> 8

    f_out = img_width * img_height
    hid = packed["w5"].shape[1]                        # 4096
    # Hidden-chunk size: as large as possible while double-buffered bf16
    # W5/W6 blocks stay under ~24 MiB of VMEM.
    th = 1024
    while 2 * 2 * th * (1024 + f_out) > (24 << 20) and th > 128:
        th //= 2
    assert (hid // n_split) % th == 0

    partials = _fused_mlp(x, packed["head"], packed["w5"], packed["b5"],
                          packed["w6"], n_split=n_split, th=th)
    # Tiny epilogue (fused by XLA): combine per-split partials, bias, final ReLU.
    out2d = jnp.maximum(partials.sum(axis=0) + packed["b6"], 0.0)
    out2d = out2d[:n]
    return out2d.reshape(b, num_of_kp, img_height, img_width)


_recon_jit = jax.jit(recon_detection_map_with_kp,
                     static_argnames=("img_width", "img_height", "num_of_kp", "n_split"))


# ---------------------------------------------------------------------------
# Pure-JAX reference (f32 activations, same stored weights upcast to f32)
# ---------------------------------------------------------------------------
def _reference(keypoints, packed, img_width, img_height, num_of_kp):
    b, k, _ = keypoints.shape
    a = keypoints.astype(jnp.float32).reshape(b * k, 2)
    a = jnp.pad(a, ((0, 0), (0, 6)))
    for w, bb in packed["head"]:
        a = jnp.maximum(a @ w.astype(jnp.float32) + bb, 0.0)
    a = jnp.maximum(a @ packed["w5"].astype(jnp.float32) + packed["b5"], 0.0)
    a = jnp.maximum(a @ packed["w6"].astype(jnp.float32) + packed["b6"], 0.0)
    return a.reshape(b, num_of_kp, img_height, img_width)


if __name__ == "__main__":
    B, K = 2, 4                 # batch=2, num_of_kp=4
    IMG_H, IMG_W = 16, 16       # spatial=16 -> last linear is 4096 -> 256

    key = jax.random.PRNGKey(0)
    k_params, k_kp = jax.random.split(key)
    params = init_params(k_params, IMG_W, IMG_H)
    packed = prepare_params(params)
    keypoints = jax.random.uniform(k_kp, (B, K, 2), jnp.float32,
                                   minval=-1.0, maxval=1.0)

    out = _recon_jit(keypoints, packed, img_width=IMG_W, img_height=IMG_H,
                     num_of_kp=K)
    out = jax.block_until_ready(out)

    ref = _reference(keypoints, packed, IMG_W, IMG_H, K)
    assert out.shape == (B, K, IMG_H, IMG_W), out.shape
    assert bool(jnp.all(jnp.isfinite(out)))
    max_err = float(jnp.max(jnp.abs(out - ref)))
    assert jnp.allclose(out, ref, rtol=2e-2, atol=2e-2), max_err

    print("KERNEL_OK")
</pallas_src>

<mosaic_0001>
module attributes {stable_mosaic.version = 11 : i64} {
  func.func @_fused_mlp_kernel(%arg0: i32, %arg1: i32, %arg2: memref<8x8xf32, #tpu.memory_space<vmem>>, %arg3: memref<8x16xf32, #tpu.memory_space<vmem>>, %arg4: memref<1x16xf32, #tpu.memory_space<vmem>>, %arg5: memref<16x64xf32, #tpu.memory_space<vmem>>, %arg6: memref<1x64xf32, #tpu.memory_space<vmem>>, %arg7: memref<64x256xf32, #tpu.memory_space<vmem>>, %arg8: memref<1x256xf32, #tpu.memory_space<vmem>>, %arg9: memref<256x1024xbf16, #tpu.memory_space<vmem>>, %arg10: memref<1x1024xf32, #tpu.memory_space<vmem>>, %arg11: memref<1024x1024xbf16, #tpu.memory_space<vmem>>, %arg12: memref<1x1024xf32, #tpu.memory_space<vmem>>, %arg13: memref<1024x256xbf16, #tpu.memory_space<vmem>>, %arg14: memref<1x8x256xf32, #tpu.memory_space<vmem>>, %arg15: memref<8x1024xf32, #tpu.memory_space<vmem>>) attributes {dimension_semantics = [#tpu.dimension_semantics<parallel>, #tpu.dimension_semantics<arbitrary>], iteration_bounds = array<i64: 2, 2>, scalar_prefetch = 0 : i64, scratch_operands = 1 : i64, tpu.core_type = #tpu.core_type<tc>, window_params = [{pipeline_mode = #tpu.pipeline_mode<synchronous>, transform_indices = @transform_0, window_bounds = array<i64: 8, 8>}, {pipeline_mode = #tpu.pipeline_mode<synchronous>, transform_indices = @transform_1, window_bounds = array<i64: 8, 16>}, {pipeline_mode = #tpu.pipeline_mode<synchronous>, transform_indices = @transform_2, window_bounds = array<i64: 1, 16>}, {pipeline_mode = #tpu.pipeline_mode<synchronous>, transform_indices = @transform_3, window_bounds = array<i64: 16, 64>}, {pipeline_mode = #tpu.pipeline_mode<synchronous>, transform_indices = @transform_4, window_bounds = array<i64: 1, 64>}, {pipeline_mode = #tpu.pipeline_mode<synchronous>, transform_indices = @transform_5, window_bounds = array<i64: 64, 256>}, {pipeline_mode = #tpu.pipeline_mode<synchronous>, transform_indices = @transform_6, window_bounds = array<i64: 1, 256>}, {pipeline_mode = #tpu.pipeline_mode<synchronous>, transform_indices = @transform_7, window_bounds = array<i64: 256, 1024>}, {pipeline_mode = #tpu.pipeline_mode<synchronous>, transform_indices = @transform_8, window_bounds = array<i64: 1, 1024>}, {transform_indices = @transform_9, window_bounds = array<i64: 1024, 1024>}, {transform_indices = @transform_10, window_bounds = array<i64: 1, 1024>}, {transform_indices = @transform_11, window_bounds = array<i64: 1024, 256>}, {transform_indices = @transform_12, window_bounds = array<i64: 1, 8, 256>}]} {
    %c0_i32 = arith.constant 0 : i32
    %0 = arith.cmpi eq, %arg1, %c0_i32 : i32
    %1 = arith.extui %0 : i1 to i32
    %c0_i32_0 = arith.constant 0 : i32
    %2 = arith.cmpi ne, %1, %c0_i32_0 : i32
    scf.if %2 {
      %c0_16 = arith.constant 0 : index
      %c0_17 = arith.constant 0 : index
      %21 = vector.load %arg2[%c0_16, %c0_17] : memref<8x8xf32, #tpu.memory_space<vmem>>, vector<8x8xf32>
      %c0_18 = arith.constant 0 : index
      %c0_19 = arith.constant 0 : index
      %22 = vector.load %arg3[%c0_18, %c0_19] : memref<8x16xf32, #tpu.memory_space<vmem>>, vector<8x16xf32>
      %cst_20 = arith.constant dense<0.000000e+00> : vector<8x16xf32>
      %23 = tpu.matmul %21, %22, %cst_20 {dimension_numbers = #tpu.dot_dimension_numbers<[1], [0], [0], [1], [0, 0, 1, 1], [], []>} : vector<8x8xf32>, vector<8x16xf32>, vector<8x16xf32> -> vector<8x16xf32>
      %c0_21 = arith.constant 0 : index
      %c0_22 = arith.constant 0 : index
      %24 = vector.load %arg4[%c0_21, %c0_22] : memref<1x16xf32, #tpu.memory_space<vmem>>, vector<1x16xf32>
      %25 = vector.broadcast %24 : vector<1x16xf32> to vector<8x16xf32>
      %26 = arith.addf %23, %25 : vector<8x16xf32>
      %cst_23 = arith.constant 0.000000e+00 : f32
      %27 = vector.broadcast %cst_23 : f32 to vector<8x16xf32>
      %28 = arith.maximumf %26, %27 : vector<8x16xf32>
      %c0_24 = arith.constant 0 : index
      %c0_25 = arith.constant 0 : index
      %29 = vector.load %arg5[%c0_24, %c0_25] : memref<16x64xf32, #tpu.memory_space<vmem>>, vector<16x64xf32>
      %cst_26 = arith.constant dense<0.000000e+00> : vector<8x64xf32>
      %30 = tpu.matmul %28, %29, %cst_26 {dimension_numbers = #tpu.dot_dimension_numbers<[1], [0], [0], [1], [0, 0, 1, 1], [], []>} : vector<8x16xf32>, vector<16x64xf32>, vector<8x64xf32> -> vector<8x64xf32>
      %c0_27 = arith.constant 0 : index
      %c0_28 = arith.constant 0 : index
      %31 = vector.load %arg6[%c0_27, %c0_28] : memref<1x64xf32, #tpu.memory_space<vmem>>, vector<1x64xf32>
      %32 = vector.broadcast %31 : vector<1x64xf32> to vector<8x64xf32>
      %33 = arith.addf %30, %32 : vector<8x64xf32>
      %cst_29 = arith.constant 0.000000e+00 : f32
      %34 = vector.broadcast %cst_29 : f32 to vector<8x64xf32>
      %35 = arith.maximumf %33, %34 : vector<8x64xf32>
      %c0_30 = arith.constant 0 : index
      %c0_31 = arith.constant 0 : index
      %36 = vector.load %arg7[%c0_30, %c0_31] : memref<64x256xf32, #tpu.memory_space<vmem>>, vector<64x256xf32>
      %cst_32 = arith.constant dense<0.000000e+00> : vector<8x256xf32>
      %37 = tpu.matmul %35, %36, %cst_32 {dimension_numbers = #tpu.dot_dimension_numbers<[1], [0], [0], [1], [0, 0, 1, 1], [], []>} : vector<8x64xf32>, vector<64x256xf32>, vector<8x256xf32> -> vector<8x256xf32>
      %c0_33 = arith.constant 0 : index
      %c0_34 = arith.constant 0 : index
      %38 = vector.load %arg8[%c0_33, %c0_34] : memref<1x256xf32, #tpu.memory_space<vmem>>, vector<1x256xf32>
      %39 = vector.broadcast %38 : vector<1x256xf32> to vector<8x256xf32>
      %40 = arith.addf %37, %39 : vector<8x256xf32>
      %cst_35 = arith.constant 0.000000e+00 : f32
      %41 = vector.broadcast %cst_35 : f32 to vector<8x256xf32>
      %42 = arith.maximumf %40, %41 : vector<8x256xf32>
      %c0_36 = arith.constant 0 : index
      %c0_37 = arith.constant 0 : index
      %43 = vector.load %arg9[%c0_36, %c0_37] : memref<256x1024xbf16, #tpu.memory_space<vmem>>, vector<256x1024xbf16>
      %44 = arith.truncf %42 : vector<8x256xf32> to vector<8x256xbf16>
      %cst_38 = arith.constant dense<0.000000e+00> : vector<8x1024xf32>
      %45 = tpu.matmul %44, %43, %cst_38 {dimension_numbers = #tpu.dot_dimension_numbers<[1], [0], [0], [1], [0, 0, 1, 1], [], []>} : vector<8x256xbf16>, vector<256x1024xbf16>, vector<8x1024xf32> -> vector<8x1024xf32>
      %c0_39 = arith.constant 0 : index
      %c0_40 = arith.constant 0 : index
      %46 = vector.load %arg10[%c0_39, %c0_40] : memref<1x1024xf32, #tpu.memory_space<vmem>>, vector<1x1024xf32>
      %47 = vector.broadcast %46 : vector<1x1024xf32> to vector<8x1024xf32>
      %48 = arith.addf %45, %47 : vector<8x1024xf32>
      %cst_41 = arith.constant 0.000000e+00 : f32
      %49 = vector.broadcast %cst_41 : f32 to vector<8x1024xf32>
      %50 = arith.maximumf %48, %49 : vector<8x1024xf32>
      %c0_42 = arith.constant 0 : index
      %c0_43 = arith.constant 0 : index
      %51 = vector.load %arg15[%c0_42, %c0_43] : memref<8x1024xf32, #tpu.memory_space<vmem>>, vector<8x1024xf32>
      tpu.vector_store %arg15[%c0_42, %c0_43], %50 {strides = array<i32>} : memref<8x1024xf32, #tpu.memory_space<vmem>>, vector<8x1024xf32>,
      %cst_44 = arith.constant 0.000000e+00 : f32
      %52 = vector.broadcast %cst_44 : f32 to vector<8x256xf32>
      %c0_45 = arith.constant 0 : index
      %c0_46 = arith.constant 0 : index
      %c0_47 = arith.constant 0 : index
      %53 = vector.load %arg14[%c0_45, %c0_46, %c0_47] : memref<1x8x256xf32, #tpu.memory_space<vmem>>, vector<1x8x256xf32>
      %54 = vector.shape_cast %53 : vector<1x8x256xf32> to vector<8x256xf32>
      %55 = vector.shape_cast %52 : vector<8x256xf32> to vector<1x8x256xf32>
      tpu.vector_store %arg14[%c0_45, %c0_46, %c0_47], %55 {strides = array<i32>} : memref<1x8x256xf32, #tpu.memory_space<vmem>>, vector<1x8x256xf32>,
    } else {
    }
    %c0 = arith.constant 0 : index
    %c0_1 = arith.constant 0 : index
    %3 = vector.load %arg15[%c0, %c0_1] : memref<8x1024xf32, #tpu.memory_space<vmem>>, vector<8x1024xf32>
    %4 = arith.truncf %3 : vector<8x1024xf32> to vector<8x1024xbf16>
    %c0_2 = arith.constant 0 : index
    %c0_3 = arith.constant 0 : index
    %5 = vector.load %arg11[%c0_2, %c0_3] : memref<1024x1024xbf16, #tpu.memory_space<vmem>>, vector<1024x1024xbf16>
    %cst = arith.constant dense<0.000000e+00> : vector<8x1024xf32>
    %6 = tpu.matmul %4, %5, %cst {dimension_numbers = #tpu.dot_dimension_numbers<[1], [0], [0], [1], [0, 0, 1, 1], [], []>} : vector<8x1024xbf16>, vector<1024x1024xbf16>, vector<8x1024xf32> -> vector<8x1024xf32>
    %c0_4 = arith.constant 0 : index
    %c0_5 = arith.constant 0 : index
    %7 = vector.load %arg12[%c0_4, %c0_5] : memref<1x1024xf32, #tpu.memory_space<vmem>>, vector<1x1024xf32>
    %8 = vector.broadcast %7 : vector<1x1024xf32> to vector<8x1024xf32>
    %9 = arith.addf %6, %8 : vector<8x1024xf32>
    %cst_6 = arith.constant 0.000000e+00 : f32
    %10 = vector.broadcast %cst_6 : f32 to vector<8x1024xf32>
    %11 = arith.maximumf %9, %10 : vector<8x1024xf32>
    %c0_7 = arith.constant 0 : index
    %c0_8 = arith.constant 0 : index
    %c0_9 = arith.constant 0 : index
    %12 = vector.load %arg14[%c0_7, %c0_8, %c0_9] : memref<1x8x256xf32, #tpu.memory_space<vmem>>, vector<1x8x256xf32>
    %13 = vector.shape_cast %12 : vector<1x8x256xf32> to vector<8x256xf32>
    %14 = arith.truncf %11 : vector<8x1024xf32> to vector<8x1024xbf16>
    %c0_10 = arith.constant 0 : index
    %c0_11 = arith.constant 0 : index
    %15 = vector.load %arg13[%c0_10, %c0_11] : memref<1024x256xbf16, #tpu.memory_space<vmem>>, vector<1024x256xbf16>
    %cst_12 = arith.constant dense<0.000000e+00> : vector<8x256xf32>
    %16 = tpu.matmul %14, %15, %cst_12 {dimension_numbers = #tpu.dot_dimension_numbers<[1], [0], [0], [1], [0, 0, 1, 1], [], []>} : vector<8x1024xbf16>, vector<1024x256xbf16>, vector<8x256xf32> -> vector<8x256xf32>
    %17 = arith.addf %13, %16 : vector<8x256xf32>
    %c0_13 = arith.constant 0 : index
    %c0_14 = arith.constant 0 : index
    %c0_15 = arith.constant 0 : index
    %18 = vector.load %arg14[%c0_13, %c0_14, %c0_15] : memref<1x8x256xf32, #tpu.memory_space<vmem>>, vector<1x8x256xf32>
    %19 = vector.shape_cast %18 : vector<1x8x256xf32> to vector<8x256xf32>
    %20 = vector.shape_cast %17 : vector<8x256xf32> to vector<1x8x256xf32>
    tpu.vector_store %arg14[%c0_13, %c0_14, %c0_15], %20 {strides = array<i32>} : memref<1x8x256xf32, #tpu.memory_space<vmem>>, vector<1x8x256xf32>,
    return
  }
  func.func @transform_0(%arg0: i32, %arg1: i32) -> (i32, i32) {
    %c0_i32 = arith.constant 0 : i32
    %c0_i32_0 = arith.constant 0 : i32
    %c0_i32_1 = arith.constant 0 : i32
    return %c0_i32, %c0_i32_0 : i32, i32
  }
  func.func @transform_1(%arg0: i32, %arg1: i32) -> (i32, i32) {
    %c0_i32 = arith.constant 0 : i32
    %c0_i32_0 = arith.constant 0 : i32
    %c0_i32_1 = arith.constant 0 : i32
    return %c0_i32, %c0_i32_0 : i32, i32
  }
  func.func @transform_2(%arg0: i32, %arg1: i32) -> (i32, i32) {
    %c0_i32 = arith.constant 0 : i32
    %c0_i32_0 = arith.constant 0 : i32
    %c0_i32_1 = arith.constant 0 : i32
    return %c0_i32, %c0_i32_0 : i32, i32
  }
  func.func @transform_3(%arg0: i32, %arg1: i32) -> (i32, i32) {
    %c0_i32 = arith.constant 0 : i32
    %c0_i32_0 = arith.constant 0 : i32
    %c0_i32_1 = arith.constant 0 : i32
    return %c0_i32, %c0_i32_0 : i32, i32
  }
  func.func @transform_4(%arg0: i32, %arg1: i32) -> (i32, i32) {
    %c0_i32 = arith.constant 0 : i32
    %c0_i32_0 = arith.constant 0 : i32
    %c0_i32_1 = arith.constant 0 : i32
    return %c0_i32, %c0_i32_0 : i32, i32
  }
  func.func @transform_5(%arg0: i32, %arg1: i32) -> (i32, i32) {
    %c0_i32 = arith.constant 0 : i32
    %c0_i32_0 = arith.constant 0 : i32
    %c0_i32_1 = arith.constant 0 : i32
    return %c0_i32, %c0_i32_0 : i32, i32
  }
  func.func @transform_6(%arg0: i32, %arg1: i32) -> (i32, i32) {
    %c0_i32 = arith.constant 0 : i32
    %c0_i32_0 = arith.constant 0 : i32
    %c0_i32_1 = arith.constant 0 : i32
    return %c0_i32, %c0_i32_0 : i32, i32
  }
  func.func @transform_7(%arg0: i32, %arg1: i32) -> (i32, i32) {
    %c0_i32 = arith.constant 0 : i32
    %c0_i32_0 = arith.constant 0 : i32
    %c0_i32_1 = arith.constant 0 : i32
    return %c0_i32, %c0_i32_0 : i32, i32
  }
  func.func @transform_8(%arg0: i32, %arg1: i32) -> (i32, i32) {
    %c0_i32 = arith.constant 0 : i32
    %c0_i32_0 = arith.constant 0 : i32
    %c0_i32_1 = arith.constant 0 : i32
    return %c0_i32, %c0_i32_0 : i32, i32
  }
  func.func @transform_9(%arg0: i32, %arg1: i32) -> (i32, i32) {
    %c2_i32 = arith.constant 2 : i32
    %0 = arith.muli %arg0, %c2_i32 : i32
    %1 = arith.addi %0, %arg1 : i32
    %c0_i32 = arith.constant 0 : i32
    %c0_i32_0 = arith.constant 0 : i32
    return %c0_i32, %1 : i32, i32
  }
  func.func @transform_10(%arg0: i32, %arg1: i32) -> (i32, i32) {
    %c2_i32 = arith.constant 2 : i32
    %0 = arith.muli %arg0, %c2_i32 : i32
    %1 = arith.addi %0, %arg1 : i32
    %c0_i32 = arith.constant 0 : i32
    %c0_i32_0 = arith.constant 0 : i32
    return %c0_i32, %1 : i32, i32
  }
  func.func @transform_11(%arg0: i32, %arg1: i32) -> (i32, i32) {
    %c2_i32 = arith.constant 2 : i32
    %0 = arith.muli %arg0, %c2_i32 : i32
    %1 = arith.addi %0, %arg1 : i32
    %c0_i32 = arith.constant 0 : i32
    %c0_i32_0 = arith.constant 0 : i32
    return %1, %c0_i32 : i32, i32
  }
  func.func @transform_12(%arg0: i32, %arg1: i32) -> (i32, i32, i32) {
    %c0_i32 = arith.constant 0 : i32
    %c0_i32_0 = arith.constant 0 : i32
    %c0_i32_1 = arith.constant 0 : i32
    return %arg0, %c0_i32, %c0_i32_0 : i32, i32, i32
  }
}

</mosaic_0001>

<llo_original>
// kernel: recon_detection_map_with_kp.1
$region0: #{recon_detection_map_with_kp.1}
  #allocation0 [shape = 'u32[]', space=smem, size = 0x4, offset = 0x4, fixed_abs, tag = 'smem constant byte address 0x4 - core index']
  #allocation1 [shape = 'u32[72,128]{1,0:T(1,128)}', space=vmem, size = 0x9000, scoped, tag = 'internal scratch']
  #allocation2 [shape = 'f32[8,1024]{1,0:T(8,128)}', space=vmem, size = 0x8000, scoped, tag = 'scratch operand']
  %s0 = inlined_call_operand.vmem [shape: f32[8,8], index: 0, kind: input, shape index: {}]
  %s1 = inlined_call_operand.hbm [shape: f32[8,16], index: 1, kind: input, shape index: {}]
  %s2 = inlined_call_operand.hbm [shape: f32[1,16], index: 2, kind: input, shape index: {}]
  %s3 = inlined_call_operand.hbm [shape: f32[16,64], index: 3, kind: input, shape index: {}]
  %s4 = inlined_call_operand.hbm [shape: f32[1,64], index: 4, kind: input, shape index: {}]
  %s5 = inlined_call_operand.hbm [shape: f32[64,256], index: 5, kind: input, shape index: {}]
  %s6 = inlined_call_operand.hbm [shape: f32[1,256], index: 6, kind: input, shape index: {}]
  %s7 = inlined_call_operand.hbm [shape: bf16[256,1024], index: 7, kind: input, shape index: {}]
  %s8 = inlined_call_operand.hbm [shape: f32[1,1024], index: 8, kind: input, shape index: {}]
  %s9 = inlined_call_operand.hbm [shape: bf16[1024,4096], index: 9, kind: input, shape index: {}]
  %s10 = inlined_call_operand.hbm [shape: f32[1,4096], index: 10, kind: input, shape index: {}]
  %s11 = inlined_call_operand.hbm [shape: bf16[4096,256], index: 11, kind: input, shape index: {}]
  %s12 = inlined_call_operand.vmem [shape: f32[2,8,256], index: 12, kind: output, shape index: {}]
  %s13 = sld [smem:[#allocation0]]
  $region129: #{recon_detection_map_with_kp.1} parent=0
    _
  %s15 = ssub.s32 1, %s13
  %s16 = scalar_select 0, %s15, %s13
  $region1: #{recon_detection_map_with_kp.1} parent=0
    #allocation3 [shape = 'u8[4096]{0}', space=vmem, size = 0x1000, scoped, tag = 'input window, operand 1, single buffered']
    #allocation4 [shape = 's32[2]{0}', space=sflag, size = 0x8, scoped, tag = 'scoped memory for recon_detection_map_with_kp.1']
    #allocation5 [shape = 'u8[512]{0}', space=vmem, size = 0x400, scoped, tag = 'input window, operand 2, single buffered']
    #allocation6 [shape = 's32[1]{0}', space=sflag, size = 0x4, scoped, tag = 'scoped memory for recon_detection_map_with_kp.1']
    #allocation7 [shape = 'u8[8192]{0}', space=vmem, size = 0x2000, scoped, tag = 'input window, operand 3, single buffered']
    #allocation8 [shape = 'u8[512]{0}', space=vmem, size = 0x400, scoped, tag = 'input window, operand 4, single buffered']
    #allocation9 [shape = 's32[1]{0}', space=sflag, size = 0x4, scoped, tag = 'scoped memory for recon_detection_map_with_kp.1']
    #allocation10 [shape = 'u8[65536]{0}', space=vmem, size = 0x10000, scoped, tag = 'input window, operand 5, single buffered']
    #allocation11 [shape = 'u8[1024]{0}', space=vmem, size = 0x400, scoped, tag = 'input window, operand 6, single buffered']
    #allocation12 [shape = 's32[1]{0}', space=sflag, size = 0x4, scoped, tag = 'scoped memory for recon_detection_map_with_kp.1']
    #allocation13 [shape = 'u8[524288]{0}', space=vmem, size = 0x80000, scoped, tag = 'input window, operand 7, single buffered']
    #allocation14 [shape = 'u8[4096]{0}', space=vmem, size = 0x1000, scoped, tag = 'input window, operand 8, single buffered']
    #allocation15 [shape = 's32[1]{0}', space=sflag, size = 0x4, scoped, tag = 'scoped memory for recon_detection_map_with_kp.1']
    #allocation16 [shape = 'u8[4194304]{0}', space=vmem, size = 0x400000, scoped, tag = 'input window, operand 9']
    #allocation17 [shape = 'u8[8192]{0}', space=vmem, size = 0x2000, scoped, tag = 'input window, operand 10']
    #allocation18 [shape = 'u8[1048576]{0}', space=vmem, size = 0x100000, scoped, tag = 'input window, operand 11']
    %17 = vsyncpa [#allocation4], 0
    %18 = vsyncpa [#allocation6], 0
    %19 = vsyncpa [#allocation9], 0
    %20 = vsyncpa [#allocation12], 0
    %21 = vsyncpa [#allocation15], 0
    loop: start=0, step=1, limit=6
    $region2: #{recon_detection_map_with_kp.1} parent=1 // loop_pre_header
      _
    $region3: #{recon_detection_map_with_kp.1} parent=1 // loop_header
      %s23 = sphi 0, %s27
      %p24 = scmp.ge.s32.totalorder %s23, 6
      %s30 = sphi 0, %s42
      %s31 = sphi 0, %s38
      %s32 = sphi 0, %s30
      %s33 = sphi 0, %s31
      %s34 = sphi 0, %s32
      %s35 = sphi 0, %s33
      %s43 = sphi 0, %s43
      %s45 = sphi 0, %s43
      %s46 = sphi 0, %s45
      %s60 = sphi 0, %s46
      %s64 = sphi 0, %s64
      %s66 = sphi 0, %s64
      %s67 = sphi 0, %s66
      %s81 = sphi 0, %s67
      %s85 = sphi 0, %s85
      %s87 = sphi 0, %s85
      %s88 = sphi 0, %s87
      %s102 = sphi 0, %s88
      %s106 = sphi 0, %s106
      %s108 = sphi 0, %s106
      %s109 = sphi 0, %s108
      %s123 = sphi 0, %s109
      %s127 = sphi 0, %s127
      %s129 = sphi 0, %s127
      %s130 = sphi 0, %s129
      %s144 = sphi 0, %s130
      %s148 = sphi 0, %s148
      %s150 = sphi 0, %s148
      %s151 = sphi 0, %s150
      %s165 = sphi 0, %s151
      %s169 = sphi 0, %s169
      %s171 = sphi 0, %s169
      %s172 = sphi 0, %s171
      %s186 = sphi 0, %s172
      %s190 = sphi 0, %s190
      %s192 = sphi 0, %s190
      %s193 = sphi 0, %s192
      %s207 = sphi 0, %s193
      %s211 = sphi 0, %s211
      %s213 = sphi 0, %s211
      %s214 = sphi 0, %s213
      %s228 = sphi 0, %s214
      %s238 = sphi 0, %s240
      %s241 = sphi 0, %s238
      %s242 = sphi 0, %s241
      %s258 = sphi 0, %s242
      %s268 = sphi 0, %s270
      %s271 = sphi 0, %s268
      %s272 = sphi 0, %s271
      %s288 = sphi 0, %s272
      %s298 = sphi 0, %s300
      %s301 = sphi 0, %s298
      %s302 = sphi 0, %s301
      %s318 = sphi 0, %s302
      %s324 = sphi 0, %s326
      %s327 = sphi 0, %s324
      %s328 = sphi 0, %s327
      %s344 = sphi 0, %s328
    $region4: #{recon_detection_map_with_kp.1} parent=1 // loop_header_branch
      %26 = sbr.rel (%p24) target = $region8
    $region5: #{recon_detection_map_with_kp.1} parent=1 // loop_body
      %s28 = ssub.s32 %s23, 1
      %s29 = ssub.s32 %s23, 2
      %s36 = sadd.s32 1, %s31
      %p37 = scmp.ge.s32.totalorder %s36, 2
      %s38 = scalar_select %p37, 0, %s36
      %s39 = sadd.s32 1, %s30
      %s40 = scalar_select %p37, %s39, %s30
      %p41 = scmp.ge.s32.totalorder %s40, 2
      %s42 = scalar_select %p41, 0, %s40
      %s44 = sadd.s32 %s43, 1
      %p47 = scmp.eq.s32.totalorder %s23, 3
      %p48 = scmp.ne.s32.totalorder %s43, %s45
      %p49 = scmp.eq.s32.totalorder %s23, 0
      %p50 = por %p48, %p49
      %p51 = scmp.ne.s32.totalorder %s43, %s45
      %p52 = scmp.eq.s32.totalorder %s28, 3
      %p53 = por %p51, %p52
      %p54 = scmp.ne.s32.totalorder %s45, %s46
      %p55 = scmp.eq.s32.totalorder %s28, 0
      %p56 = por %p54, %p55
      %p57 = scmp.ne.s32.totalorder %s45, %s46
      %p58 = scmp.eq.s32.totalorder %s29, 3
      %p59 = por %p57, %p58
      %p61 = scmp.ne.s32.totalorder %s46, %s60
      %p62 = scmp.eq.s32.totalorder %s29, 0
      %p63 = por %p61, %p62
      %s65 = sadd.s32 %s64, 1
      %p68 = scmp.eq.s32.totalorder %s23, 3
      %p69 = scmp.ne.s32.totalorder %s64, %s66
      %p70 = scmp.eq.s32.totalorder %s23, 0
      %p71 = por %p69, %p70
      %p72 = scmp.ne.s32.totalorder %s64, %s66
      %p73 = scmp.eq.s32.totalorder %s28, 3
      %p74 = por %p72, %p73
      %p75 = scmp.ne.s32.totalorder %s66, %s67
      %p76 = scmp.eq.s32.totalorder %s28, 0
      %p77 = por %p75, %p76
      %p78 = scmp.ne.s32.totalorder %s66, %s67
      %p79 = scmp.eq.s32.totalorder %s29, 3
      %p80 = por %p78, %p79
      %p82 = scmp.ne.s32.totalorder %s67, %s81
      %p83 = scmp.eq.s32.totalorder %s29, 0
      %p84 = por %p82, %p83
      %s86 = sadd.s32 %s85, 1
      %p89 = scmp.eq.s32.totalorder %s23, 3
      %p90 = scmp.ne.s32.totalorder %s85, %s87
      %p91 = scmp.eq.s32.totalorder %s23, 0
      %p92 = por %p90, %p91
      %p93 = scmp.ne.s32.totalorder %s85, %s87
      %p94 = scmp.eq.s32.totalorder %s28, 3
      %p95 = por %p93, %p94
      %p96 = scmp.ne.s32.totalorder %s87, %s88
      %p97 = scmp.eq.s32.totalorder %s28, 0
      %p98 = por %p96, %p97
      %p99 = scmp.ne.s32.totalorder %s87, %s88
      %p100 = scmp.eq.s32.totalorder %s29, 3
      %p101 = por %p99, %p100
      %p103 = scmp.ne.s32.totalorder %s88, %s102
      %p104 = scmp.eq.s32.totalorder %s29, 0
      %p105 = por %p103, %p104
      %s107 = sadd.s32 %s106, 1
      %p110 = scmp.eq.s32.totalorder %s23, 3
      %p111 = scmp.ne.s32.totalorder %s106, %s108
      %p112 = scmp.eq.s32.totalorder %s23, 0
      %p113 = por %p111, %p112
      %p114 = scmp.ne.s32.totalorder %s106, %s108
      %p115 = scmp.eq.s32.totalorder %s28, 3
      %p116 = por %p114, %p115
      %p117 = scmp.ne.s32.totalorder %s108, %s109
      %p118 = scmp.eq.s32.totalorder %s28, 0
      %p119 = por %p117, %p118
      %p120 = scmp.ne.s32.totalorder %s108, %s109
      %p121 = scmp.eq.s32.totalorder %s29, 3
      %p122 = por %p120, %p121
      %p124 = scmp.ne.s32.totalorder %s109, %s123
      %p125 = scmp.eq.s32.totalorder %s29, 0
      %p126 = por %p124, %p125
      %s128 = sadd.s32 %s127, 1
      %p131 = scmp.eq.s32.totalorder %s23, 3
      %p132 = scmp.ne.s32.totalorder %s127, %s129
      %p133 = scmp.eq.s32.totalorder %s23, 0
      %p134 = por %p132, %p133
      %p135 = scmp.ne.s32.totalorder %s127, %s129
      %p136 = scmp.eq.s32.totalorder %s28, 3
      %p137 = por %p135, %p136
      %p138 = scmp.ne.s32.totalorder %s129, %s130
      %p139 = scmp.eq.s32.totalorder %s28, 0
      %p140 = por %p138, %p139
      %p141 = scmp.ne.s32.totalorder %s129, %s130
      %p142 = scmp.eq.s32.totalorder %s29, 3
      %p143 = por %p141, %p142
      %p145 = scmp.ne.s32.totalorder %s130, %s144
      %p146 = scmp.eq.s32.totalorder %s29, 0
      %p147 = por %p145, %p146
      %s149 = sadd.s32 %s148, 1
      %p152 = scmp.eq.s32.totalorder %s23, 3
      %p153 = scmp.ne.s32.totalorder %s148, %s150
      %p154 = scmp.eq.s32.totalorder %s23, 0
      %p155 = por %p153, %p154
      %p156 = scmp.ne.s32.totalorder %s148, %s150
      %p157 = scmp.eq.s32.totalorder %s28, 3
      %p158 = por %p156, %p157
      %p159 = scmp.ne.s32.totalorder %s150, %s151
      %p160 = scmp.eq.s32.totalorder %s28, 0
      %p161 = por %p159, %p160
      %p162 = scmp.ne.s32.totalorder %s150, %s151
      %p163 = scmp.eq.s32.totalorder %s29, 3
      %p164 = por %p162, %p163
      %p166 = scmp.ne.s32.totalorder %s151, %s165
      %p167 = scmp.eq.s32.totalorder %s29, 0
      %p168 = por %p166, %p167
      %s170 = sadd.s32 %s169, 1
      %p173 = scmp.eq.s32.totalorder %s23, 3
      %p174 = scmp.ne.s32.totalorder %s169, %s171
      %p175 = scmp.eq.s32.totalorder %s23, 0
      %p176 = por %p174, %p175
      %p177 = scmp.ne.s32.totalorder %s169, %s171
      %p178 = scmp.eq.s32.totalorder %s28, 3
      %p179 = por %p177, %p178
      %p180 = scmp.ne.s32.totalorder %s171, %s172
      %p181 = scmp.eq.s32.totalorder %s28, 0
      %p182 = por %p180, %p181
      %p183 = scmp.ne.s32.totalorder %s171, %s172
      %p184 = scmp.eq.s32.totalorder %s29, 3
      %p185 = por %p183, %p184
      %p187 = scmp.ne.s32.totalorder %s172, %s186
      %p188 = scmp.eq.s32.totalorder %s29, 0
      %p189 = por %p187, %p188
      %s191 = sadd.s32 %s190, 1
      %p194 = scmp.eq.s32.totalorder %s23, 3
      %p195 = scmp.ne.s32.totalorder %s190, %s192
      %p196 = scmp.eq.s32.totalorder %s23, 0
      %p197 = por %p195, %p196
      %p198 = scmp.ne.s32.totalorder %s190, %s192
      %p199 = scmp.eq.s32.totalorder %s28, 3
      %p200 = por %p198, %p199
      %p201 = scmp.ne.s32.totalorder %s192, %s193
      %p202 = scmp.eq.s32.totalorder %s28, 0
      %p203 = por %p201, %p202
      %p204 = scmp.ne.s32.totalorder %s192, %s193
      %p205 = scmp.eq.s32.totalorder %s29, 3
      %p206 = por %p204, %p205
      %p208 = scmp.ne.s32.totalorder %s193, %s207
      %p209 = scmp.eq.s32.totalorder %s29, 0
      %p210 = por %p208, %p209
      %s212 = sadd.s32 %s211, 1
      %p215 = scmp.eq.s32.totalorder %s23, 3
      %p216 = scmp.ne.s32.totalorder %s211, %s213
      %p217 = scmp.eq.s32.totalorder %s23, 0
      %p218 = por %p216, %p217
      %p219 = scmp.ne.s32.totalorder %s211, %s213
      %p220 = scmp.eq.s32.totalorder %s28, 3
      %p221 = por %p219, %p220
      %p222 = scmp.ne.s32.totalorder %s213, %s214
      %p223 = scmp.eq.s32.totalorder %s28, 0
      %p224 = por %p222, %p223
      %p225 = scmp.ne.s32.totalorder %s213, %s214
      %p226 = scmp.eq.s32.totalorder %s29, 3
      %p227 = por %p225, %p226
      %p229 = scmp.ne.s32.totalorder %s214, %s228
      %p230 = scmp.eq.s32.totalorder %s29, 0
      %p231 = por %p229, %p230
      %s232 = smul.u32 %s30, 2
      %s233 = sadd.s32 %s232, %s31
      %s234 = smul.u32 %s42, 2
      %s235 = sadd.s32 %s234, %s38
      %s236 = ssub.s32 %s233, %s235
      %p237 = scmp.eq.s32.totalorder %s236, 0
      %s239 = sadd.s32 %s238, 1
      %s240 = scalar_select %p237, %s238, %s239
      %p243 = pneg %p237
      %p244 = scmp.eq.s32.totalorder %s23, 3
      %p245 = por %p243, %p244
      %p246 = scmp.ne.s32.totalorder %s238, %s241
      %p247 = scmp.eq.s32.totalorder %s23, 0
      %p248 = por %p246, %p247
      %p249 = scmp.ne.s32.totalorder %s238, %s241
      %p250 = scmp.eq.s32.totalorder %s28, 3
      %p251 = por %p249, %p250
      %p252 = scmp.ne.s32.totalorder %s241, %s242
      %p253 = scmp.eq.s32.totalorder %s28, 0
      %p254 = por %p252, %p253
      %p255 = scmp.ne.s32.totalorder %s241, %s242
      %p256 = scmp.eq.s32.totalorder %s29, 3
      %p257 = por %p255, %p256
      %p259 = scmp.ne.s32.totalorder %s242, %s258
      %p260 = scmp.eq.s32.totalorder %s29, 0
      %p261 = por %p259, %p260
      %s262 = smul.u32 %s30, 2
      %s263 = sadd.s32 %s262, %s31
      %s264 = smul.u32 %s42, 2
      %s265 = sadd.s32 %s264, %s38
      %s266 = ssub.s32 %s263, %s265
      %p267 = scmp.eq.s32.totalorder %s266, 0
      %s269 = sadd.s32 %s268, 1
      %s270 = scalar_select %p267, %s268, %s269
      %p273 = pneg %p267
      %p274 = scmp.eq.s32.totalorder %s23, 3
      %p275 = por %p273, %p274
      %p276 = scmp.ne.s32.totalorder %s268, %s271
      %p277 = scmp.eq.s32.totalorder %s23, 0
      %p278 = por %p276, %p277
      %p279 = scmp.ne.s32.totalorder %s268, %s271
      %p280 = scmp.eq.s32.totalorder %s28, 3
      %p281 = por %p279, %p280
      %p282 = scmp.ne.s32.totalorder %s271, %s272
      %p283 = scmp.eq.s32.totalorder %s28, 0
      %p284 = por %p282, %p283
      %p285 = scmp.ne.s32.totalorder %s271, %s272
      %p286 = scmp.eq.s32.totalorder %s29, 3
      %p287 = por %p285, %p286
      %p289 = scmp.ne.s32.totalorder %s272, %s288
      %p290 = scmp.eq.s32.totalorder %s29, 0
      %p291 = por %p289, %p290
      %s292 = smul.u32 %s30, 2
      %s293 = sadd.s32 %s292, %s31
      %s294 = smul.u32 %s42, 2
      %s295 = sadd.s32 %s294, %s38
      %s296 = ssub.s32 %s293, %s295
      %p297 = scmp.eq.s32.totalorder %s296, 0
      %s299 = sadd.s32 %s298, 1
      %s300 = scalar_select %p297, %s298, %s299
      %p303 = pneg %p297
      %p304 = scmp.eq.s32.totalorder %s23, 3
      %p305 = por %p303, %p304
      %p306 = scmp.ne.s32.totalorder %s298, %s301
      %p307 = scmp.eq.s32.totalorder %s23, 0
      %p308 = por %p306, %p307
      %p309 = scmp.ne.s32.totalorder %s298, %s301
      %p310 = scmp.eq.s32.totalorder %s28, 3
      %p311 = por %p309, %p310
      %p312 = scmp.ne.s32.totalorder %s301, %s302
      %p313 = scmp.eq.s32.totalorder %s28, 0
      %p314 = por %p312, %p313
      %p315 = scmp.ne.s32.totalorder %s301, %s302
      %p316 = scmp.eq.s32.totalorder %s29, 3
      %p317 = por %p315, %p316
      %p319 = scmp.ne.s32.totalorder %s302, %s318
      %p320 = scmp.eq.s32.totalorder %s29, 0
      %p321 = por %p319, %p320
      %s322 = ssub.s32 %s30, %s42
      %p323 = scmp.eq.s32.totalorder %s322, 0
      %s325 = sadd.s32 %s324, 1
      %s326 = scalar_select %p323, %s324, %s325
      %p329 = pneg %p323
      %p330 = scmp.eq.s32.totalorder %s23, 3
      %p331 = por %p329, %p330
      %p332 = scmp.ne.s32.totalorder %s324, %s327
      %p333 = scmp.eq.s32.totalorder %s23, 0
      %p334 = por %p332, %p333
      %p335 = scmp.ne.s32.totalorder %s324, %s327
      %p336 = scmp.eq.s32.totalorder %s28, 3
      %p337 = por %p335, %p336
      %p338 = scmp.ne.s32.totalorder %s327, %s328
      %p339 = scmp.eq.s32.totalorder %s28, 0
      %p340 = por %p338, %p339
      %p341 = scmp.ne.s32.totalorder %s327, %s328
      %p342 = scmp.eq.s32.totalorder %s29, 3
      %p343 = por %p341, %p342
      %p345 = scmp.ne.s32.totalorder %s328, %s344
      %p346 = scmp.eq.s32.totalorder %s29, 0
      %p347 = por %p345, %p346
      %p348 = scmp.le.s32.totalorder 1, %s23
      %p349 = scmp.lt.s32.totalorder %s23, 5
      %p350 = pnand %p348, %p349
      %p351 = pneg %p350
      // Predicated region
      $region9: #{recon_detection_map_with_kp.1} parent=5 // pred_check
        _
      $region10: #{recon_detection_map_with_kp.1} parent=5 // pred_check_branch
        %353 = sbr.rel (%p350) target = $region12
      $region11: #{recon_detection_map_with_kp.1} parent=5 // pred_region
        %s354 = ssub.s32 %s23, 1
        // Predicated region
        $region13: #{recon_detection_map_with_kp.1} parent=11 // pred_check
          %p355 = pneg %p56
        $region14: #{recon_detection_map_with_kp.1} parent=11 // pred_check_branch
          %357 = sbr.rel (%p355) target = $region16
        $region15: #{recon_detection_map_with_kp.1} parent=11 // pred_region
          _
        $region16: #{recon_detection_map_with_kp.1} parent=11 // pred_fallthru
          _
        // Predicated region
        $region17: #{recon_detection_map_with_kp.1} parent=11 // pred_check
          %p358 = pneg %p77
        $region18: #{recon_detection_map_with_kp.1} parent=11 // pred_check_branch
          %360 = sbr.rel (%p358) target = $region20
        $region19: #{recon_detection_map_with_kp.1} parent=11 // pred_region
          %362 = vsyncadd [#allocation4], 0
          %s364 = sshll.u32 %s1, 4
          %s365 = int_to_ptr.hbm [resolvable:$true] %s364
          %s366 = sshll.u32 [#allocation3], 4
          %s367 = int_to_ptr.vmem [resolvable:$true] %s366
          %369 = dma.hbm_to_vmem [thread:$0]  %s365, 128, %s367, [#allocation4]
        $region20: #{recon_detection_map_with_kp.1} parent=11 // pred_fallthru
          _
        // Predicated region
        $region21: #{recon_detection_map_with_kp.1} parent=11 // pred_check
          %p370 = pneg %p98
        $region22: #{recon_detection_map_with_kp.1} parent=11 // pred_check_branch
          %372 = sbr.rel (%p370) target = $region24
        $region23: #{recon_detection_map_with_kp.1} parent=11 // pred_region
          %374 = vsyncadd [#allocation6], 0
          %s376 = sshll.u32 %s2, 4
          %s377 = int_to_ptr.hbm [resolvable:$true] %s376
          %s378 = sshll.u32 [#allocation5], 4
          %s379 = int_to_ptr.vmem [resolvable:$true] %s378
          %381 = dma.hbm_to_vmem [thread:$0]  %s377, 16, %s379, [#allocation6]
        $region24: #{recon_detection_map_with_kp.1} parent=11 // pred_fallthru
          _
        // Predicated region
        $region25: #{recon_detection_map_with_kp.1} parent=11 // pred_check
          %p382 = pneg %p119
        $region26: #{recon_detection_map_with_kp.1} parent=11 // pred_check_branch
          %384 = sbr.rel (%p382) target = $region28
        $region27: #{recon_detection_map_with_kp.1} parent=11 // pred_region
          %386 = vsyncadd [#allocation6], 0
          %s387 = sshll.u32 %s3, 4
          %s388 = int_to_ptr.hbm [resolvable:$true] %s387
          %s389 = sshll.u32 [#allocation7], 4
          %s390 = int_to_ptr.vmem [resolvable:$true] %s389
          %395 = dma.hbm_to_vmem [thread:$0]  %s388, 256, %s390, [#allocation6], 128, 128, 8
        $region28: #{recon_detection_map_with_kp.1} parent=11 // pred_fallthru
          _
        // Predicated region
        $region29: #{recon_detection_map_with_kp.1} parent=11 // pred_check
          %p396 = pneg %p140
        $region30: #{recon_detection_map_with_kp.1} parent=11 // pred_check_branch
          %398 = sbr.rel (%p396) target = $region32
        $region31: #{recon_detection_map_with_kp.1} parent=11 // pred_region
          %400 = vsyncadd [#allocation9], 0
          %s402 = sshll.u32 %s4, 4
          %s403 = int_to_ptr.hbm [resolvable:$true] %s402
          %s404 = sshll.u32 [#allocation8], 4
          %s405 = int_to_ptr.vmem [resolvable:$true] %s404
          %407 = dma.hbm_to_vmem [thread:$0]  %s403, 16, %s405, [#allocation9]
        $region32: #{recon_detection_map_with_kp.1} parent=11 // pred_fallthru
          _
        // Predicated region
        $region33: #{recon_detection_map_with_kp.1} parent=11 // pred_check
          %p408 = pneg %p161
        $region34: #{recon_detection_map_with_kp.1} parent=11 // pred_check_branch
          %410 = sbr.rel (%p408) target = $region36
        $region35: #{recon_detection_map_with_kp.1} parent=11 // pred_region
          %412 = vsyncadd [#allocation9], 0
          %s413 = sshll.u32 %s5, 4
          %s414 = int_to_ptr.hbm [resolvable:$true] %s413
          %s415 = sshll.u32 [#allocation10], 4
          %s416 = int_to_ptr.vmem [resolvable:$true] %s415
          %421 = dma.hbm_to_vmem [thread:$0]  %s414, 2048, %s416, [#allocation9], 256, 256, 16
        $region36: #{recon_detection_map_with_kp.1} parent=11 // pred_fallthru
          _
        // Predicated region
        $region37: #{recon_detection_map_with_kp.1} parent=11 // pred_check
          %p422 = pneg %p182
        $region38: #{recon_detection_map_with_kp.1} parent=11 // pred_check_branch
          %424 = sbr.rel (%p422) target = $region40
        $region39: #{recon_detection_map_with_kp.1} parent=11 // pred_region
          %426 = vsyncadd [#allocation12], 0
          %s428 = sshll.u32 %s6, 4
          %s429 = int_to_ptr.hbm [resolvable:$true] %s428
          %s430 = sshll.u32 [#allocation11], 4
          %s431 = int_to_ptr.vmem [resolvable:$true] %s430
          %433 = dma.hbm_to_vmem [thread:$0]  %s429, 32, %s431, [#allocation12]
        $region40: #{recon_detection_map_with_kp.1} parent=11 // pred_fallthru
          _
        // Predicated region
        $region41: #{recon_detection_map_with_kp.1} parent=11 // pred_check
          %p434 = pneg %p203
        $region42: #{recon_detection_map_with_kp.1} parent=11 // pred_check_branch
          %436 = sbr.rel (%p434) target = $region44
        $region43: #{recon_detection_map_with_kp.1} parent=11 // pred_region
          %438 = vsyncadd [#allocation12], 0
          %s439 = sshll.u32 %s7, 4
          %s440 = int_to_ptr.hbm [resolvable:$true] %s439
          %s441 = sshll.u32 [#allocation13], 4
          %s442 = int_to_ptr.vmem [resolvable:$true] %s441
          %447 = dma.hbm_to_vmem [thread:$0]  %s440, 16384, %s442, [#allocation12], 512, 512, 32
        $region44: #{recon_detection_map_with_kp.1} parent=11 // pred_fallthru
          _
        // Predicated region
        $region45: #{recon_detection_map_with_kp.1} parent=11 // pred_check
          %p448 = pneg %p224
        $region46: #{recon_detection_map_with_kp.1} parent=11 // pred_check_branch
          %450 = sbr.rel (%p448) target = $region48
        $region47: #{recon_detection_map_with_kp.1} parent=11 // pred_region
          %452 = vsyncadd [#allocation15], 0
          %s454 = sshll.u32 %s8, 4
          %s455 = int_to_ptr.hbm [resolvable:$true] %s454
          %s456 = sshll.u32 [#allocation14], 4
          %s457 = int_to_ptr.vmem [resolvable:$true] %s456
          %459 = dma.hbm_to_vmem [thread:$0]  %s455, 128, %s457, [#allocation15]
        $region48: #{recon_detection_map_with_kp.1} parent=11 // pred_fallthru
          _
      $region12: #{recon_detection_map_with_kp.1} parent=5 // pred_fallthru
        _
      %p460 = scmp.lt.s32.totalorder %s23, 4
      // Predicated region
      $region49: #{recon_detection_map_with_kp.1} parent=5 // pred_check
        %p461 = pneg %p460
      $region50: #{recon_detection_map_with_kp.1} parent=5 // pred_check_branch
        %463 = sbr.rel (%p461) target = $region52
      $region51: #{recon_detection_map_with_kp.1} parent=5 // pred_region
        // Predicated region
        $region53: #{recon_detection_map_with_kp.1} parent=51 // pred_check
          %p464 = pneg %p248
        $region54: #{recon_detection_map_with_kp.1} parent=51 // pred_check_branch
          %466 = sbr.rel (%p464) target = $region56
        $region55: #{recon_detection_map_with_kp.1} parent=51 // pred_region
          %s467 = sand.u32 %s23, 1
          %s468 = scalar_lea.sflag [#allocation4], %s467
          %s469 = sand.u32 %s238, 1
          %s470 = smul.addr %s469, 4096
          %s471 = scalar_lea.vmem [#allocation16], %s470
          %s472 = smul.u32 %s30, 2
          %s473 = sadd.s32 %s472, %s31
          %s474 = smul.u32 8, %s473
          %476 = vsyncadd %s468, 0
          %s477 = smul.addr %s474, 4
          %s478 = scalar_lea.hbm %s9, %s477
          %s479 = sshll.u32 %s478, 4
          %s480 = int_to_ptr.hbm [resolvable:$true] %s479
          %s481 = sshll.u32 %s471, 4
          %s482 = int_to_ptr.vmem [resolvable:$true] %s481
          %487 = dma.hbm_to_vmem [thread:$0]  %s480, 65536, %s482, %s468, 2048, 512, 32
        $region56: #{recon_detection_map_with_kp.1} parent=51 // pred_fallthru
          _
        // Predicated region
        $region57: #{recon_detection_map_with_kp.1} parent=51 // pred_check
          %p488 = pneg %p278
        $region58: #{recon_detection_map_with_kp.1} parent=51 // pred_check_branch
          %490 = sbr.rel (%p488) target = $region60
        $region59: #{recon_detection_map_with_kp.1} parent=51 // pred_region
          %s491 = sand.u32 %s23, 1
          %s492 = scalar_lea.sflag [#allocation4], %s491
          %s493 = sand.u32 %s268, 1
          %s494 = smul.addr %s493, 8
          %s495 = scalar_lea.vmem [#allocation17], %s494
          %s496 = smul.u32 %s30, 2
          %s497 = sadd.s32 %s496, %s31
          %s498 = smul.u32 8, %s497
          %500 = vsyncadd %s492, 0
          %s501 = scalar_lea.hbm %s10, %s498
          %s503 = sshll.u32 %s501, 4
          %s504 = int_to_ptr.hbm [resolvable:$true] %s503
          %s505 = sshll.u32 %s495, 4
          %s506 = int_to_ptr.vmem [resolvable:$true] %s505
          %508 = dma.hbm_to_vmem [thread:$0]  %s504, 128, %s506, %s492
        $region60: #{recon_detection_map_with_kp.1} parent=51 // pred_fallthru
          _
        // Predicated region
        $region61: #{recon_detection_map_with_kp.1} parent=51 // pred_check
          %p509 = pneg %p308
        $region62: #{recon_detection_map_with_kp.1} parent=51 // pred_check_branch
          %511 = sbr.rel (%p509) target = $region64
        $region63: #{recon_detection_map_with_kp.1} parent=51 // pred_region
          %s512 = sand.u32 %s23, 1
          %s513 = scalar_lea.sflag [#allocation4], %s512
          %s514 = sand.u32 %s298, 1
          %s515 = smul.addr %s514, 1024
          %s516 = scalar_lea.vmem [#allocation18], %s515
          %s517 = smul.u32 %s30, 2
          %s518 = sadd.s32 %s517, %s31
          %s519 = smul.u32 128, %s518
          %521 = vsyncadd %s513, 0
          %s522 = smul.addr %s519, 2
          %s523 = smul.addr %s522, 4
          %s524 = scalar_lea.hbm %s11, %s523
          %s525 = sshll.u32 %s524, 4
          %s526 = int_to_ptr.hbm [resolvable:$true] %s525
          %s527 = sshll.u32 %s516, 4
          %s528 = int_to_ptr.vmem [resolvable:$true] %s527
          %533 = dma.hbm_to_vmem [thread:$0]  %s526, 16384, %s528, %s513, 128, 128, 8
        $region64: #{recon_detection_map_with_kp.1} parent=51 // pred_fallthru
          _
      $region52: #{recon_detection_map_with_kp.1} parent=5 // pred_fallthru
        _
      %p534 = scmp.le.s32.totalorder 1, %s23
      %p535 = scmp.lt.s32.totalorder %s23, 5
      %p536 = pnand %p534, %p535
      %p537 = pneg %p536
      // Predicated region
      $region65: #{recon_detection_map_with_kp.1} parent=5 // pred_check
        _
      $region66: #{recon_detection_map_with_kp.1} parent=5 // pred_check_branch
        %539 = sbr.rel (%p536) target = $region68
      $region67: #{recon_detection_map_with_kp.1} parent=5 // pred_region
        %s540 = ssub.s32 %s23, 1
        // Predicated region
        $region69: #{recon_detection_map_with_kp.1} parent=67 // pred_check
          %p541 = pneg %p77
        $region70: #{recon_detection_map_with_kp.1} parent=67 // pred_check_branch
          %543 = sbr.rel (%p541) target = $region72
        $region71: #{recon_detection_map_with_kp.1} parent=67 // pred_region
          %545 = dma.done [#allocation4], 128
        $region72: #{recon_detection_map_with_kp.1} parent=67 // pred_fallthru
          _
        // Predicated region
        $region73: #{recon_detection_map_with_kp.1} parent=67 // pred_check
          %p546 = pneg %p98
        $region74: #{recon_detection_map_with_kp.1} parent=67 // pred_check_branch
          %548 = sbr.rel (%p546) target = $region76
        $region75: #{recon_detection_map_with_kp.1} parent=67 // pred_region
          %550 = dma.done [#allocation6], 16
        $region76: #{recon_detection_map_with_kp.1} parent=67 // pred_fallthru
          _
        // Predicated region
        $region77: #{recon_detection_map_with_kp.1} parent=67 // pred_check
          %p551 = pneg %p119
        $region78: #{recon_detection_map_with_kp.1} parent=67 // pred_check_branch
          %553 = sbr.rel (%p551) target = $region80
        $region79: #{recon_detection_map_with_kp.1} parent=67 // pred_region
          %555 = dma.done [#allocation6], 256
        $region80: #{recon_detection_map_with_kp.1} parent=67 // pred_fallthru
          _
        // Predicated region
        $region81: #{recon_detection_map_with_kp.1} parent=67 // pred_check
          %p556 = pneg %p140
        $region82: #{recon_detection_map_with_kp.1} parent=67 // pred_check_branch
          %558 = sbr.rel (%p556) target = $region84
        $region83: #{recon_detection_map_with_kp.1} parent=67 // pred_region
          %560 = dma.done [#allocation9], 16
        $region84: #{recon_detection_map_with_kp.1} parent=67 // pred_fallthru
          _
        // Predicated region
        $region85: #{recon_detection_map_with_kp.1} parent=67 // pred_check
          %p561 = pneg %p161
        $region86: #{recon_detection_map_with_kp.1} parent=67 // pred_check_branch
          %563 = sbr.rel (%p561) target = $region88
        $region87: #{recon_detection_map_with_kp.1} parent=67 // pred_region
          %565 = dma.done [#allocation9], 2048
        $region88: #{recon_detection_map_with_kp.1} parent=67 // pred_fallthru
          _
        // Predicated region
        $region89: #{recon_detection_map_with_kp.1} parent=67 // pred_check
          %p566 = pneg %p182
        $region90: #{recon_detection_map_with_kp.1} parent=67 // pred_check_branch
          %568 = sbr.rel (%p566) target = $region92
        $region91: #{recon_detection_map_with_kp.1} parent=67 // pred_region
          %570 = dma.done [#allocation12], 32
        $region92: #{recon_detection_map_with_kp.1} parent=67 // pred_fallthru
          _
        // Predicated region
        $region93: #{recon_detection_map_with_kp.1} parent=67 // pred_check
          %p571 = pneg %p203
        $region94: #{recon_detection_map_with_kp.1} parent=67 // pred_check_branch
          %573 = sbr.rel (%p571) target = $region96
        $region95: #{recon_detection_map_with_kp.1} parent=67 // pred_region
          %575 = dma.done [#allocation12], 16384
        $region96: #{recon_detection_map_with_kp.1} parent=67 // pred_fallthru
          _
        // Predicated region
        $region97: #{recon_detection_map_with_kp.1} parent=67 // pred_check
          %p576 = pneg %p224
        $region98: #{recon_detection_map_with_kp.1} parent=67 // pred_check_branch
          %578 = sbr.rel (%p576) target = $region100
        $region99: #{recon_detection_map_with_kp.1} parent=67 // pred_region
          %580 = dma.done [#allocation15], 128
        $region100: #{recon_detection_map_with_kp.1} parent=67 // pred_fallthru
          _
        %s581 = sand.u32 %s28, 1
        %s582 = scalar_lea.sflag [#allocation4], %s581
        %s583 = sand.u32 %s241, 1
        %s584 = smul.addr %s583, 4096
        %s585 = scalar_lea.vmem [#allocation16], %s584
        // Predicated region
        $region101: #{recon_detection_map_with_kp.1} parent=67 // pred_check
          %p586 = pneg %p254
        $region102: #{recon_detection_map_with_kp.1} parent=67 // pred_check_branch
          %588 = sbr.rel (%p586) target = $region104
        $region103: #{recon_detection_map_with_kp.1} parent=67 // pred_region
          %590 = dma.done %s582, 65536
        $region104: #{recon_detection_map_with_kp.1} parent=67 // pred_fallthru
          _
        %s591 = sand.u32 %s28, 1
        %s592 = scalar_lea.sflag [#allocation4], %s591
        %s593 = sand.u32 %s271, 1
        %s594 = smul.addr %s593, 8
        %s595 = scalar_lea.vmem [#allocation17], %s594
        // Predicated region
        $region105: #{recon_detection_map_with_kp.1} parent=67 // pred_check
          %p596 = pneg %p284
        $region106: #{recon_detection_map_with_kp.1} parent=67 // pred_check_branch
          %598 = sbr.rel (%p596) target = $region108
        $region107: #{recon_detection_map_with_kp.1} parent=67 // pred_region
          %600 = dma.done %s592, 128
        $region108: #{recon_detection_map_with_kp.1} parent=67 // pred_fallthru
          _
        %s601 = sand.u32 %s28, 1
        %s602 = scalar_lea.sflag [#allocation4], %s601
        %s603 = sand.u32 %s301, 1
        %s604 = smul.addr %s603, 1024
        %s605 = scalar_lea.vmem [#allocation18], %s604
        // Predicated region
        $region109: #{recon_detection_map_with_kp.1} parent=67 // pred_check
          %p606 = pneg %p314
        $region110: #{recon_detection_map_with_kp.1} parent=67 // pred_check_branch
          %608 = sbr.rel (%p606) target = $region112
        $region111: #{recon_detection_map_with_kp.1} parent=67 // pred_region
          %610 = dma.done %s602, 16384
        $region112: #{recon_detection_map_with_kp.1} parent=67 // pred_fallthru
          _
        %p611 = pneg %p56
        %p612 = pneg %p53
        %p613 = pneg %p77
        %p614 = pneg %p74
        %p615 = pneg %p98
        %p616 = pneg %p95
        %p617 = pneg %p119
        %p618 = pneg %p116
        %p619 = pneg %p140
        %p620 = pneg %p137
        %p621 = pneg %p161
        %p622 = pneg %p158
        %p623 = pneg %p182
        %p624 = pneg %p179
        %p625 = pneg %p203
        %p626 = pneg %p200
        %p627 = pneg %p224
        %p628 = pneg %p221
        %s629 = sand.u32 %s28, 1
        %s630 = scalar_lea.sflag [#allocation4], %s629
        %s631 = sand.u32 %s241, 1
        %s632 = smul.addr %s631, 4096
        %s633 = scalar_lea.vmem [#allocation16], %s632
        %p634 = pneg %p254
        %p635 = pneg %p251
        %s636 = sand.u32 %s28, 1
        %s637 = scalar_lea.sflag [#allocation4], %s636
        %s638 = sand.u32 %s271, 1
        %s639 = smul.addr %s638, 8
        %s640 = scalar_lea.vmem [#allocation17], %s639
        %p641 = pneg %p284
        %p642 = pneg %p281
        %s643 = sand.u32 %s28, 1
        %s644 = scalar_lea.sflag [#allocation4], %s643
        %s645 = sand.u32 %s301, 1
        %s646 = smul.addr %s645, 1024
        %s647 = scalar_lea.vmem [#allocation18], %s646
        %p648 = pneg %p314
        %p649 = pneg %p311
        %p650 = pneg %p340
        %p651 = pneg %p337
        %p652 = scmp.lt.s32.totalorder %s32, 1
        %s653 = scalar_select %p652, %s32, 1
        %s654 = smul.addr %s653, 2
        %s655 = smul.addr %s654, 8
        %s656 = scalar_lea.vmem %s12, %s655
        %s657 = smul.u32 %s32, 2
        %s658 = sadd.s32 %s657, %s33
        %s659 = smul.u32 8, %s658
        %s660 = smul.u32 %s32, 2
        %s661 = sadd.s32 %s660, %s33
        %s662 = smul.u32 8, %s661
        %s663 = smul.u32 %s32, 2
        %s664 = sadd.s32 %s663, %s33
        %s665 = smul.u32 128, %s664
        %p666 = scmp.lt.s32.totalorder %s32, 1
        %s667 = scalar_select %p666, %s32, 1
        %s668 = smul.addr %s667, 2
        %s669 = smul.addr %s668, 8
        %s670 = scalar_lea.vmem %s12, %s669
        %p671 = scmp.eq.s32.totalorder %s33, 0
        // Predicated region
        $region113: #{recon_detection_map_with_kp.1} parent=67 // pred_check
          %p672 = pneg %p671
        $region114: #{recon_detection_map_with_kp.1} parent=67 // pred_check_branch
          %674 = sbr.rel (%p672) target = $region116
        $region115: #{recon_detection_map_with_kp.1} parent=67 // pred_region
          %v675 = vld [vmem:[%s0] sm:$0xff]
          %v676 = vld [vmem:[#allocation3] sm:$0xff]
          %v677 = vld [vmem:[#allocation5] sm:$0x1]
          %v679 = vperm.slane %v677, 0
          %vm681 = vcmask 64512
          %v683 = vsel %vm681, %v675, 0
          %685 = vmatpush.msra.mxu0 0.0
          %686 = vmatpush.msra.mxu0 0.0
          %687 = vmatpush.msra.mxu0 0.0
          %688 = vmatpush.msra.mxu0 0.0
          %689 = vmatpush.msra.mxu0 0.0
          %690 = vmatpush.msra.mxu0 0.0
          %691 = vmatpush.msra.mxu0 0.0
          %692 = vmatpush.msra.mxu0 0.0
          %693 = vmatpush.msra.mxu0 0.0
          %694 = vmatpush.msra.mxu0 0.0
          %695 = vmatpush.msra.mxu0 0.0
          %696 = vmatpush.msra.mxu0 0.0
          %697 = vmatpush.msra.mxu0 0.0
          %698 = vmatpush.msra.mxu0 0.0
          %699 = vmatpush.msra.mxu0 0.0
          %700 = vmatpush.msra.mxu0 %v676
          %701 = vmatmul.f32.gmra.mxu0 %v683
          %v702 = vpop.f32.mrf.mxu0
          %v703 = vadd.f32 %v679, %v702
          %704 = vdwg.mxu0
          %v705 = vmax.f32 %v703, 0.0
          %v706 = vld [vmem:[#allocation7] sm:$0xff]
          %v707 = vld [vmem:[#allocation7 + $0x8] sm:$0xff]
          %v708 = vld [vmem:[#allocation8] sm:$0x1]
          %v710 = vperm.slane %v708, 0
          %vm712 = vcmask 130048
          %v714 = vsel %vm712, %v705, 0
          %716 = vmatpush.msra.mxu0 0.0
          %717 = vmatpush.msra.mxu0 0.0
          %718 = vmatpush.msra.mxu0 0.0
          %719 = vmatpush.msra.mxu0 0.0
          %720 = vmatpush.msra.mxu0 0.0
          %721 = vmatpush.msra.mxu0 0.0
          %722 = vmatpush.msra.mxu0 0.0
          %723 = vmatpush.msra.mxu0 0.0
          %724 = vmatpush.msra.mxu0 0.0
          %725 = vmatpush.msra.mxu0 0.0
          %726 = vmatpush.msra.mxu0 0.0
          %727 = vmatpush.msra.mxu0 0.0
          %728 = vmatpush.msra.mxu0 0.0
          %729 = vmatpush.msra.mxu0 0.0
          %730 = vmatpush.msra.mxu0 %v707
          %731 = vmatpush.msra.mxu0 %v706
          %732 = vmatmul.f32.gmra.mxu0 %v714
          %v733 = vpop.f32.mrf.mxu0
          %v734 = vadd.f32 %v710, %v733
          %735 = vdwg.mxu0
          %v736 = vmax.f32 %v734, 0.0
          %v737 = vld [vmem:[#allocation10] sm:$0xff]
          %v738 = vld [vmem:[#allocation10 + $0x8] sm:$0xff]
          %v739 = vld [vmem:[#allocation10 + $0x10] sm:$0xff]
          %v740 = vld [vmem:[#allocation10 + $0x18] sm:$0xff]
          %v741 = vld [vmem:[#allocation10 + $0x20] sm:$0xff]
          %v742 = vld [vmem:[#allocation10 + $0x28] sm:$0xff]
          %v743 = vld [vmem:[#allocation10 + $0x30] sm:$0xff]
          %v744 = vld [vmem:[#allocation10 + $0x38] sm:$0xff]
          %v745 = vld [vmem:[#allocation10 + $0x40] sm:$0xff]
          %v746 = vld [vmem:[#allocation10 + $0x48] sm:$0xff]
          %v747 = vld [vmem:[#allocation10 + $0x50] sm:$0xff]
          %v748 = vld [vmem:[#allocation10 + $0x58] sm:$0xff]
          %v749 = vld [vmem:[#allocation10 + $0x60] sm:$0xff]
          %v750 = vld [vmem:[#allocation10 + $0x68] sm:$0xff]
          %v751 = vld [vmem:[#allocation10 + $0x70] sm:$0xff]
          %v752 = vld [vmem:[#allocation10 + $0x78] sm:$0xff]
          %v753 = vld [vmem:[#allocation11] sm:$0x3]
          %v755 = vperm.slane %v753, 0
          %v756 = vperm.slane %v753, 1
          %vm759 = vcmask 523264
          %v761 = vsel %vm759, %v736, 0
          %763 = vmatpush.msra.mxu0 0.0
          %764 = vmatpush.msra.mxu0 0.0
          %765 = vmatpush.msra.mxu0 0.0
          %766 = vmatpush.msra.mxu0 0.0
          %767 = vmatpush.msra.mxu0 0.0
          %768 = vmatpush.msra.mxu0 0.0
          %769 = vmatpush.msra.mxu0 0.0
          %770 = vmatpush.msra.mxu0 0.0
          %771 = vmatpush.msra.mxu0 %v751
          %772 = vmatpush.msra.mxu0 %v749
          %773 = vmatpush.msra.mxu0 %v747
          %774 = vmatpush.msra.mxu0 %v745
          %775 = vmatpush.msra.mxu0 %v743
          %776 = vmatpush.msra.mxu0 %v741
          %777 = vmatpush.msra.mxu0 %v739
          %778 = vmatpush.msra.mxu0 %v737
          %779 = vmatmul.f32.gmra.mxu0 %v761
          %v780 = vpop.f32.mrf.mxu0
          %v781 = vadd.f32 %v755, %v780
          %782 = vdwg.mxu0
          %783 = vmatpush.msra.mxu0 0.0
          %784 = vmatpush.msra.mxu0 0.0
          %785 = vmatpush.msra.mxu0 0.0
          %786 = vmatpush.msra.mxu0 0.0
          %787 = vmatpush.msra.mxu0 0.0
          %788 = vmatpush.msra.mxu0 0.0
          %789 = vmatpush.msra.mxu0 0.0
          %790 = vmatpush.msra.mxu0 0.0
          %791 = vmatpush.msra.mxu0 %v752
          %792 = vmatpush.msra.mxu0 %v750
          %793 = vmatpush.msra.mxu0 %v748
          %794 = vmatpush.msra.mxu0 %v746
          %795 = vmatpush.msra.mxu0 %v744
          %796 = vmatpush.msra.mxu0 %v742
          %797 = vmatpush.msra.mxu0 %v740
          %798 = vmatpush.msra.mxu0 %v738
          %799 = vmatmul.f32.gmra.mxu0 %v761
          %v800 = vpop.f32.mrf.mxu0
          %v801 = vadd.f32 %v756, %v800
          %802 = vdwg.mxu0
          %v803 = vmax.f32 %v781, 0.0
          %v804 = vmax.f32 %v801, 0.0
          %v805 = vld [vmem:[#allocation13] sm:$0xff]
          %v806 = vld [vmem:[#allocation13 + $0x8] sm:$0xff]
          %v807 = vld [vmem:[#allocation13 + $0x10] sm:$0xff]
          %v808 = vld [vmem:[#allocation13 + $0x18] sm:$0xff]
          %v809 = vld [vmem:[#allocation13 + $0x20] sm:$0xff]
          %v810 = vld [vmem:[#allocation13 + $0x28] sm:$0xff]
          %v811 = vld [vmem:[#allocation13 + $0x30] sm:$0xff]
          %v812 = vld [vmem:[#allocation13 + $0x38] sm:$0xff]
          %v813 = vld [vmem:[#allocation13 + $0x40] sm:$0xff]
          %v814 = vld [vmem:[#allocation13 + $0x48] sm:$0xff]
          %v815 = vld [vmem:[#allocation13 + $0x50] sm:$0xff]
          %v816 = vld [vmem:[#allocation13 + $0x58] sm:$0xff]
          %v817 = vld [vmem:[#allocation13 + $0x60] sm:$0xff]
          %v818 = vld [vmem:[#allocation13 + $0x68] sm:$0xff]
          %v819 = vld [vmem:[#allocation13 + $0x70] sm:$0xff]
          %v820 = vld [vmem:[#allocation13 + $0x78] sm:$0xff]
          %v821 = vld [vmem:[#allocation13 + $0x80] sm:$0xff]
          %v822 = vld [vmem:[#allocation13 + $0x88] sm:$0xff]
          %v823 = vld [vmem:[#allocation13 + $0x90] sm:$0xff]
          %v824 = vld [vmem:[#allocation13 + $0x98] sm:$0xff]
          %v825 = vld [vmem:[#allocation13 + $0xa0] sm:$0xff]
          %v826 = vld [vmem:[#allocation13 + $0xa8] sm:$0xff]
          %v827 = vld [vmem:[#allocation13 + $0xb0] sm:$0xff]
          %v828 = vld [vmem:[#allocation13 + $0xb8] sm:$0xff]
          %v829 = vld [vmem:[#allocation13 + $0xc0] sm:$0xff]
          %v830 = vld [vmem:[#allocation13 + $0xc8] sm:$0xff]
          %v831 = vld [vmem:[#allocation13 + $0xd0] sm:$0xff]
          %v832 = vld [vmem:[#allocation13 + $0xd8] sm:$0xff]
          %v833 = vld [vmem:[#allocation13 + $0xe0] sm:$0xff]
          %v834 = vld [vmem:[#allocation13 + $0xe8] sm:$0xff]
          %v835 = vld [vmem:[#allocation13 + $0xf0] sm:$0xff]
          %v836 = vld [vmem:[#allocation13 + $0xf8] sm:$0xff]
          %v837 = vld [vmem:[#allocation13 + $0x100] sm:$0xff]
          %v838 = vld [vmem:[#allocation13 + $0x108] sm:$0xff]
          %v839 = vld [vmem:[#allocation13 + $0x110] sm:$0xff]
          %v840 = vld [vmem:[#allocation13 + $0x118] sm:$0xff]
          %v841 = vld [vmem:[#allocation13 + $0x120] sm:$0xff]
          %v842 = vld [vmem:[#allocation13 + $0x128] sm:$0xff]
          %v843 = vld [vmem:[#allocation13 + $0x130] sm:$0xff]
          %v844 = vld [vmem:[#allocation13 + $0x138] sm:$0xff]
          %v845 = vld [vmem:[#allocation13 + $0x140] sm:$0xff]
          %v846 = vld [vmem:[#allocation13 + $0x148] sm:$0xff]
          %v847 = vld [vmem:[#allocation13 + $0x150] sm:$0xff]
          %v848 = vld [vmem:[#allocation13 + $0x158] sm:$0xff]
          %v849 = vld [vmem:[#allocation13 + $0x160] sm:$0xff]
          %v850 = vld [vmem:[#allocation13 + $0x168] sm:$0xff]
          %v851 = vld [vmem:[#allocation13 + $0x170] sm:$0xff]
          %v852 = vld [vmem:[#allocation13 + $0x178] sm:$0xff]
          %v853 = vld [vmem:[#allocation13 + $0x180] sm:$0xff]
          %v854 = vld [vmem:[#allocation13 + $0x188] sm:$0xff]
          %v855 = vld [vmem:[#allocation13 + $0x190] sm:$0xff]
          %v856 = vld [vmem:[#allocation13 + $0x198] sm:$0xff]
          %v857 = vld [vmem:[#allocation13 + $0x1a0] sm:$0xff]
          %v858 = vld [vmem:[#allocation13 + $0x1a8] sm:$0xff]
          %v859 = vld [vmem:[#allocation13 + $0x1b0] sm:$0xff]
          %v860 = vld [vmem:[#allocation13 + $0x1b8] sm:$0xff]
          %v861 = vld [vmem:[#allocation13 + $0x1c0] sm:$0xff]
          %v862 = vld [vmem:[#allocation13 + $0x1c8] sm:$0xff]
          %v863 = vld [vmem:[#allocation13 + $0x1d0] sm:$0xff]
          %v864 = vld [vmem:[#allocation13 + $0x1d8] sm:$0xff]
          %v865 = vld [vmem:[#allocation13 + $0x1e0] sm:$0xff]
          %v866 = vld [vmem:[#allocation13 + $0x1e8] sm:$0xff]
          %v867 = vld [vmem:[#allocation13 + $0x1f0] sm:$0xff]
          %v868 = vld [vmem:[#allocation13 + $0x1f8] sm:$0xff]
          %v869 = vld [vmem:[#allocation13 + $0x200] sm:$0xff]
          %v870 = vld [vmem:[#allocation13 + $0x208] sm:$0xff]
          %v871 = vld [vmem:[#allocation13 + $0x210] sm:$0xff]
          %v872 = vld [vmem:[#allocation13 + $0x218] sm:$0xff]
          %v873 = vld [vmem:[#allocation13 + $0x220] sm:$0xff]
          %v874 = vld [vmem:[#allocation13 + $0x228] sm:$0xff]
          %v875 = vld [vmem:[#allocation13 + $0x230] sm:$0xff]
          %v876 = vld [vmem:[#allocation13 + $0x238] sm:$0xff]
          %v877 = vld [vmem:[#allocation13 + $0x240] sm:$0xff]
          %v878 = vld [vmem:[#allocation13 + $0x248] sm:$0xff]
          %v879 = vld [vmem:[#allocation13 + $0x250] sm:$0xff]
          %v880 = vld [vmem:[#allocation13 + $0x258] sm:$0xff]
          %v881 = vld [vmem:[#allocation13 + $0x260] sm:$0xff]
          %v882 = vld [vmem:[#allocation13 + $0x268] sm:$0xff]
          %v883 = vld [vmem:[#allocation13 + $0x270] sm:$0xff]
          %v884 = vld [vmem:[#allocation13 + $0x278] sm:$0xff]
          %v885 = vld [vmem:[#allocation13 + $0x280] sm:$0xff]
          %v886 = vld [vmem:[#allocation13 + $0x288] sm:$0xff]
          %v887 = vld [vmem:[#allocation13 + $0x290] sm:$0xff]
          %v888 = vld [vmem:[#allocation13 + $0x298] sm:$0xff]
          %v889 = vld [vmem:[#allocation13 + $0x2a0] sm:$0xff]
          %v890 = vld [vmem:[#allocation13 + $0x2a8] sm:$0xff]
          %v891 = vld [vmem:[#allocation13 + $0x2b0] sm:$0xff]
          %v892 = vld [vmem:[#allocation13 + $0x2b8] sm:$0xff]
          %v893 = vld [vmem:[#allocation13 + $0x2c0] sm:$0xff]
          %v894 = vld [vmem:[#allocation13 + $0x2c8] sm:$0xff]
          %v895 = vld [vmem:[#allocation13 + $0x2d0] sm:$0xff]
          %v896 = vld [vmem:[#allocation13 + $0x2d8] sm:$0xff]
          %v897 = vld [vmem:[#allocation13 + $0x2e0] sm:$0xff]
          %v898 = vld [vmem:[#allocation13 + $0x2e8] sm:$0xff]
          %v899 = vld [vmem:[#allocation13 + $0x2f0] sm:$0xff]
          %v900 = vld [vmem:[#allocation13 + $0x2f8] sm:$0xff]
          %v901 = vld [vmem:[#allocation13 + $0x300] sm:$0xff]
          %v902 = vld [vmem:[#allocation13 + $0x308] sm:$0xff]
          %v903 = vld [vmem:[#allocation13 + $0x310] sm:$0xff]
          %v904 = vld [vmem:[#allocation13 + $0x318] sm:$0xff]
          %v905 = vld [vmem:[#allocation13 + $0x320] sm:$0xff]
          %v906 = vld [vmem:[#allocation13 + $0x328] sm:$0xff]
          %v907 = vld [vmem:[#allocation13 + $0x330] sm:$0xff]
          %v908 = vld [vmem:[#allocation13 + $0x338] sm:$0xff]
          %v909 = vld [vmem:[#allocation13 + $0x340] sm:$0xff]
          %v910 = vld [vmem:[#allocation13 + $0x348] sm:$0xff]
          %v911 = vld [vmem:[#allocation13 + $0x350] sm:$0xff]
          %v912 = vld [vmem:[#allocation13 + $0x358] sm:$0xff]
          %v913 = vld [vmem:[#allocation13 + $0x360] sm:$0xff]
          %v914 = vld [vmem:[#allocation13 + $0x368] sm:$0xff]
          %v915 = vld [vmem:[#allocation13 + $0x370] sm:$0xff]
          %v916 = vld [vmem:[#allocation13 + $0x378] sm:$0xff]
          %v917 = vld [vmem:[#allocation13 + $0x380] sm:$0xff]
          %v918 = vld [vmem:[#allocation13 + $0x388] sm:$0xff]
          %v919 = vld [vmem:[#allocation13 + $0x390] sm:$0xff]
          %v920 = vld [vmem:[#allocation13 + $0x398] sm:$0xff]
          %v921 = vld [vmem:[#allocation13 + $0x3a0] sm:$0xff]
          %v922 = vld [vmem:[#allocation13 + $0x3a8] sm:$0xff]
          %v923 = vld [vmem:[#allocation13 + $0x3b0] sm:$0xff]
          %v924 = vld [vmem:[#allocation13 + $0x3b8] sm:$0xff]
          %v925 = vld [vmem:[#allocation13 + $0x3c0] sm:$0xff]
          %v926 = vld [vmem:[#allocation13 + $0x3c8] sm:$0xff]
          %v927 = vld [vmem:[#allocation13 + $0x3d0] sm:$0xff]
          %v928 = vld [vmem:[#allocation13 + $0x3d8] sm:$0xff]
          %v929 = vld [vmem:[#allocation13 + $0x3e0] sm:$0xff]
          %v930 = vld [vmem:[#allocation13 + $0x3e8] sm:$0xff]
          %v931 = vld [vmem:[#allocation13 + $0x3f0] sm:$0xff]
          %v932 = vld [vmem:[#allocation13 + $0x3f8] sm:$0xff]
          %v933 = vpack.c.bf16 %v803, %v803
          %v934 = vpack.c.bf16 %v804, %v804
          %v935 = vld [vmem:[#allocation14] sm:$0xff]
          %v937 = vperm.slane %v935, 0
          %v938 = vperm.slane %v935, 1
          %v939 = vperm.slane %v935, 2
          %v940 = vperm.slane %v935, 3
          %v941 = vperm.slane %v935, 4
          %v942 = vperm.slane %v935, 5
          %v943 = vperm.slane %v935, 6
          %v944 = vperm.slane %v935, 7
          %v1081 = vunpack.c.l.b16 %v805
          %v1082 = vunpack.c.h.b16 %v805
          %v1083 = vunpack.c.l.b16 %v806
          %v1084 = vunpack.c.h.b16 %v806
          %v1085 = vunpack.c.l.b16 %v807
          %v1086 = vunpack.c.h.b16 %v807
          %v1087 = vunpack.c.l.b16 %v808
          %v1088 = vunpack.c.h.b16 %v808
          %v1089 = vunpack.c.l.b16 %v809
          %v1090 = vunpack.c.h.b16 %v809
          %v1091 = vunpack.c.l.b16 %v810
          %v1092 = vunpack.c.h.b16 %v810
          %v1093 = vunpack.c.l.b16 %v811
          %v1094 = vunpack.c.h.b16 %v811
          %v1095 = vunpack.c.l.b16 %v812
          %v1096 = vunpack.c.h.b16 %v812
          %v1097 = vunpack.c.l.b16 %v813
          %v1098 = vunpack.c.h.b16 %v813
          %v1099 = vunpack.c.l.b16 %v814
          %v1100 = vunpack.c.h.b16 %v814
          %v1101 = vunpack.c.l.b16 %v815
          %v1102 = vunpack.c.h.b16 %v815
          %v1103 = vunpack.c.l.b16 %v816
          %v1104 = vunpack.c.h.b16 %v816
          %v1105 = vunpack.c.l.b16 %v817
          %v1106 = vunpack.c.h.b16 %v817
          %v1107 = vunpack.c.l.b16 %v818
          %v1108 = vunpack.c.h.b16 %v818
          %v1109 = vunpack.c.l.b16 %v819
          %v1110 = vunpack.c.h.b16 %v819
          %v1111 = vunpack.c.l.b16 %v820
          %v1112 = vunpack.c.h.b16 %v820
          %v1113 = vunpack.c.l.b16 %v821
          %v1114 = vunpack.c.h.b16 %v821
          %v1115 = vunpack.c.l.b16 %v822
          %v1116 = vunpack.c.h.b16 %v822
          %v1117 = vunpack.c.l.b16 %v823
          %v1118 = vunpack.c.h.b16 %v823
          %v1119 = vunpack.c.l.b16 %v824
          %v1120 = vunpack.c.h.b16 %v824
          %v1121 = vunpack.c.l.b16 %v825
          %v1122 = vunpack.c.h.b16 %v825
          %v1123 = vunpack.c.l.b16 %v826
          %v1124 = vunpack.c.h.b16 %v826
          %v1125 = vunpack.c.l.b16 %v827
          %v1126 = vunpack.c.h.b16 %v827
          %v1127 = vunpack.c.l.b16 %v828
          %v1128 = vunpack.c.h.b16 %v828
          %v1129 = vunpack.c.l.b16 %v829
          %v1130 = vunpack.c.h.b16 %v829
          %v1131 = vunpack.c.l.b16 %v830
          %v1132 = vunpack.c.h.b16 %v830
          %v1133 = vunpack.c.l.b16 %v831
          %v1134 = vunpack.c.h.b16 %v831
          %v1135 = vunpack.c.l.b16 %v832
          %v1136 = vunpack.c.h.b16 %v832
          %v1137 = vunpack.c.l.b16 %v833
          %v1138 = vunpack.c.h.b16 %v833
          %v1139 = vunpack.c.l.b16 %v834
          %v1140 = vunpack.c.h.b16 %v834
          %v1141 = vunpack.c.l.b16 %v835
          %v1142 = vunpack.c.h.b16 %v835
          %v1143 = vunpack.c.l.b16 %v836
          %v1144 = vunpack.c.h.b16 %v836
          %v1145 = vunpack.c.l.b16 %v837
          %v1146 = vunpack.c.h.b16 %v837
          %v1147 = vunpack.c.l.b16 %v838
          %v1148 = vunpack.c.h.b16 %v838
          %v1149 = vunpack.c.l.b16 %v839
          %v1150 = vunpack.c.h.b16 %v839
          %v1151 = vunpack.c.l.b16 %v840
          %v1152 = vunpack.c.h.b16 %v840
          %v1153 = vunpack.c.l.b16 %v841
          %v1154 = vunpack.c.h.b16 %v841
          %v1155 = vunpack.c.l.b16 %v842
          %v1156 = vunpack.c.h.b16 %v842
          %v1157 = vunpack.c.l.b16 %v843
          %v1158 = vunpack.c.h.b16 %v843
          %v1159 = vunpack.c.l.b16 %v844
          %v1160 = vunpack.c.h.b16 %v844
          %v1161 = vunpack.c.l.b16 %v845
          %v1162 = vunpack.c.h.b16 %v845
          %v1163 = vunpack.c.l.b16 %v846
          %v1164 = vunpack.c.h.b16 %v846
          %v1165 = vunpack.c.l.b16 %v847
          %v1166 = vunpack.c.h.b16 %v847
          %v1167 = vunpack.c.l.b16 %v848
          %v1168 = vunpack.c.h.b16 %v848
          %v1169 = vunpack.c.l.b16 %v849
          %v1170 = vunpack.c.h.b16 %v849
          %v1171 = vunpack.c.l.b16 %v850
          %v1172 = vunpack.c.h.b16 %v850
          %v1173 = vunpack.c.l.b16 %v851
          %v1174 = vunpack.c.h.b16 %v851
          %v1175 = vunpack.c.l.b16 %v852
          %v1176 = vunpack.c.h.b16 %v852
          %v1177 = vunpack.c.l.b16 %v853
          %v1178 = vunpack.c.h.b16 %v853
          %v1179 = vunpack.c.l.b16 %v854
          %v1180 = vunpack.c.h.b16 %v854
          %v1181 = vunpack.c.l.b16 %v855
          %v1182 = vunpack.c.h.b16 %v855
          %v1183 = vunpack.c.l.b16 %v856
          %v1184 = vunpack.c.h.b16 %v856
          %v1185 = vunpack.c.l.b16 %v857
          %v1186 = vunpack.c.h.b16 %v857
          %v1187 = vunpack.c.l.b16 %v858
          %v1188 = vunpack.c.h.b16 %v858
          %v1189 = vunpack.c.l.b16 %v859
          %v1190 = vunpack.c.h.b16 %v859
          %v1191 = vunpack.c.l.b16 %v860
          %v1192 = vunpack.c.h.b16 %v860
          %v1193 = vunpack.c.l.b16 %v861
          %v1194 = vunpack.c.h.b16 %v861
          %v1195 = vunpack.c.l.b16 %v862
          %v1196 = vunpack.c.h.b16 %v862
          %v1197 = vunpack.c.l.b16 %v863
          %v1198 = vunpack.c.h.b16 %v863
          %v1199 = vunpack.c.l.b16 %v864
          %v1200 = vunpack.c.h.b16 %v864
          %v1201 = vunpack.c.l.b16 %v865
          %v1202 = vunpack.c.h.b16 %v865
          %v1203 = vunpack.c.l.b16 %v866
          %v1204 = vunpack.c.h.b16 %v866
          %v1205 = vunpack.c.l.b16 %v867
          %v1206 = vunpack.c.h.b16 %v867
          %v1207 = vunpack.c.l.b16 %v868
          %v1208 = vunpack.c.h.b16 %v868
          %v1209 = vunpack.c.l.b16 %v869
          %v1210 = vunpack.c.h.b16 %v869
          %v1211 = vunpack.c.l.b16 %v870
          %v1212 = vunpack.c.h.b16 %v870
          %v1213 = vunpack.c.l.b16 %v871
          %v1214 = vunpack.c.h.b16 %v871
          %v1215 = vunpack.c.l.b16 %v872
          %v1216 = vunpack.c.h.b16 %v872
          %v1217 = vunpack.c.l.b16 %v873
          %v1218 = vunpack.c.h.b16 %v873
          %v1219 = vunpack.c.l.b16 %v874
          %v1220 = vunpack.c.h.b16 %v874
          %v1221 = vunpack.c.l.b16 %v875
          %v1222 = vunpack.c.h.b16 %v875
          %v1223 = vunpack.c.l.b16 %v876
          %v1224 = vunpack.c.h.b16 %v876
          %v1225 = vunpack.c.l.b16 %v877
          %v1226 = vunpack.c.h.b16 %v877
          %v1227 = vunpack.c.l.b16 %v878
          %v1228 = vunpack.c.h.b16 %v878
          %v1229 = vunpack.c.l.b16 %v879
          %v1230 = vunpack.c.h.b16 %v879
          %v1231 = vunpack.c.l.b16 %v880
          %v1232 = vunpack.c.h.b16 %v880
          %v1233 = vunpack.c.l.b16 %v881
          %v1234 = vunpack.c.h.b16 %v881
          %v1235 = vunpack.c.l.b16 %v882
          %v1236 = vunpack.c.h.b16 %v882
          %v1237 = vunpack.c.l.b16 %v883
          %v1238 = vunpack.c.h.b16 %v883
          %v1239 = vunpack.c.l.b16 %v884
          %v1240 = vunpack.c.h.b16 %v884
          %v1241 = vunpack.c.l.b16 %v885
          %v1242 = vunpack.c.h.b16 %v885
          %v1243 = vunpack.c.l.b16 %v886
          %v1244 = vunpack.c.h.b16 %v886
          %v1245 = vunpack.c.l.b16 %v887
          %v1246 = vunpack.c.h.b16 %v887
          %v1247 = vunpack.c.l.b16 %v888
          %v1248 = vunpack.c.h.b16 %v888
          %v1249 = vunpack.c.l.b16 %v889
          %v1250 = vunpack.c.h.b16 %v889
          %v1251 = vunpack.c.l.b16 %v890
          %v1252 = vunpack.c.h.b16 %v890
          %v1253 = vunpack.c.l.b16 %v891
          %v1254 = vunpack.c.h.b16 %v891
          %v1255 = vunpack.c.l.b16 %v892
          %v1256 = vunpack.c.h.b16 %v892
          %v1257 = vunpack.c.l.b16 %v893
          %v1258 = vunpack.c.h.b16 %v893
          %v1259 = vunpack.c.l.b16 %v894
          %v1260 = vunpack.c.h.b16 %v894
          %v1261 = vunpack.c.l.b16 %v895
          %v1262 = vunpack.c.h.b16 %v895
          %v1263 = vunpack.c.l.b16 %v896
          %v1264 = vunpack.c.h.b16 %v896
          %v1265 = vunpack.c.l.b16 %v897
          %v1266 = vunpack.c.h.b16 %v897
          %v1267 = vunpack.c.l.b16 %v898
          %v1268 = vunpack.c.h.b16 %v898
          %v1269 = vunpack.c.l.b16 %v899
          %v1270 = vunpack.c.h.b16 %v899
          %v1271 = vunpack.c.l.b16 %v900
          %v1272 = vunpack.c.h.b16 %v900
          %v1273 = vunpack.c.l.b16 %v901
          %v1274 = vunpack.c.h.b16 %v901
          %v1275 = vunpack.c.l.b16 %v902
          %v1276 = vunpack.c.h.b16 %v902
          %v1277 = vunpack.c.l.b16 %v903
          %v1278 = vunpack.c.h.b16 %v903
          %v1279 = vunpack.c.l.b16 %v904
          %v1280 = vunpack.c.h.b16 %v904
          %v1281 = vunpack.c.l.b16 %v905
          %v1282 = vunpack.c.h.b16 %v905
          %v1283 = vunpack.c.l.b16 %v906
          %v1284 = vunpack.c.h.b16 %v906
          %v1285 = vunpack.c.l.b16 %v907
          %v1286 = vunpack.c.h.b16 %v907
          %v1287 = vunpack.c.l.b16 %v908
          %v1288 = vunpack.c.h.b16 %v908
          %v1289 = vunpack.c.l.b16 %v909
          %v1290 = vunpack.c.h.b16 %v909
          %v1291 = vunpack.c.l.b16 %v910
          %v1292 = vunpack.c.h.b16 %v910
          %v1293 = vunpack.c.l.b16 %v911
          %v1294 = vunpack.c.h.b16 %v911
          %v1295 = vunpack.c.l.b16 %v912
          %v1296 = vunpack.c.h.b16 %v912
          %v1297 = vunpack.c.l.b16 %v913
          %v1298 = vunpack.c.h.b16 %v913
          %v1299 = vunpack.c.l.b16 %v914
          %v1300 = vunpack.c.h.b16 %v914
          %v1301 = vunpack.c.l.b16 %v915
          %v1302 = vunpack.c.h.b16 %v915
          %v1303 = vunpack.c.l.b16 %v916
          %v1304 = vunpack.c.h.b16 %v916
          %v1305 = vunpack.c.l.b16 %v917
          %v1306 = vunpack.c.h.b16 %v917
          %v1307 = vunpack.c.l.b16 %v918
          %v1308 = vunpack.c.h.b16 %v918
          %v1309 = vunpack.c.l.b16 %v919
          %v1310 = vunpack.c.h.b16 %v919
          %v1311 = vunpack.c.l.b16 %v920
          %v1312 = vunpack.c.h.b16 %v920
          %v1313 = vunpack.c.l.b16 %v921
          %v1314 = vunpack.c.h.b16 %v921
          %v1315 = vunpack.c.l.b16 %v922
          %v1316 = vunpack.c.h.b16 %v922
          %v1317 = vunpack.c.l.b16 %v923
          %v1318 = vunpack.c.h.b16 %v923
          %v1319 = vunpack.c.l.b16 %v924
          %v1320 = vunpack.c.h.b16 %v924
          %v1321 = vunpack.c.l.b16 %v925
          %v1322 = vunpack.c.h.b16 %v925
          %v1323 = vunpack.c.l.b16 %v926
          %v1324 = vunpack.c.h.b16 %v926
          %v1325 = vunpack.c.l.b16 %v927
          %v1326 = vunpack.c.h.b16 %v927
          %v1327 = vunpack.c.l.b16 %v928
          %v1328 = vunpack.c.h.b16 %v928
          %v1329 = vunpack.c.l.b16 %v929
          %v1330 = vunpack.c.h.b16 %v929
          %v1331 = vunpack.c.l.b16 %v930
          %v1332 = vunpack.c.h.b16 %v930
          %v1333 = vunpack.c.l.b16 %v931
          %v1334 = vunpack.c.h.b16 %v931
          %v1335 = vunpack.c.l.b16 %v932
          %v1336 = vunpack.c.h.b16 %v932
          %v1337 = vpack.c.b16 %v1089, %v1081
          %v1338 = vpack.c.b16 %v1090, %v1082
          %v1339 = vpack.c.b16 %v1091, %v1083
          %v1340 = vpack.c.b16 %v1092, %v1084
          %v1341 = vpack.c.b16 %v1093, %v1085
          %v1342 = vpack.c.b16 %v1094, %v1086
          %v1343 = vpack.c.b16 %v1095, %v1087
          %v1344 = vpack.c.b16 %v1096, %v1088
          %v1345 = vpack.c.b16 %v1105, %v1097
          %v1346 = vpack.c.b16 %v1106, %v1098
          %v1347 = vpack.c.b16 %v1107, %v1099
          %v1348 = vpack.c.b16 %v1108, %v1100
          %v1349 = vpack.c.b16 %v1109, %v1101
          %v1350 = vpack.c.b16 %v1110, %v1102
          %v1351 = vpack.c.b16 %v1111, %v1103
          %v1352 = vpack.c.b16 %v1112, %v1104
          %v1353 = vpack.c.b16 %v1121, %v1113
          %v1354 = vpack.c.b16 %v1122, %v1114
          %v1355 = vpack.c.b16 %v1123, %v1115
          %v1356 = vpack.c.b16 %v1124, %v1116
          %v1357 = vpack.c.b16 %v1125, %v1117
          %v1358 = vpack.c.b16 %v1126, %v1118
          %v1359 = vpack.c.b16 %v1127, %v1119
          %v1360 = vpack.c.b16 %v1128, %v1120
          %v1361 = vpack.c.b16 %v1137, %v1129
          %v1362 = vpack.c.b16 %v1138, %v1130
          %v1363 = vpack.c.b16 %v1139, %v1131
          %v1364 = vpack.c.b16 %v1140, %v1132
          %v1365 = vpack.c.b16 %v1141, %v1133
          %v1366 = vpack.c.b16 %v1142, %v1134
          %v1367 = vpack.c.b16 %v1143, %v1135
          %v1368 = vpack.c.b16 %v1144, %v1136
          %v1369 = vpack.c.b16 %v1153, %v1145
          %v1370 = vpack.c.b16 %v1154, %v1146
          %v1371 = vpack.c.b16 %v1155, %v1147
          %v1372 = vpack.c.b16 %v1156, %v1148
          %v1373 = vpack.c.b16 %v1157, %v1149
          %v1374 = vpack.c.b16 %v1158, %v1150
          %v1375 = vpack.c.b16 %v1159, %v1151
          %v1376 = vpack.c.b16 %v1160, %v1152
          %v1377 = vpack.c.b16 %v1169, %v1161
          %v1378 = vpack.c.b16 %v1170, %v1162
          %v1379 = vpack.c.b16 %v1171, %v1163
          %v1380 = vpack.c.b16 %v1172, %v1164
          %v1381 = vpack.c.b16 %v1173, %v1165
          %v1382 = vpack.c.b16 %v1174, %v1166
          %v1383 = vpack.c.b16 %v1175, %v1167
          %v1384 = vpack.c.b16 %v1176, %v1168
          %v1385 = vpack.c.b16 %v1185, %v1177
          %v1386 = vpack.c.b16 %v1186, %v1178
          %v1387 = vpack.c.b16 %v1187, %v1179
          %v1388 = vpack.c.b16 %v1188, %v1180
          %v1389 = vpack.c.b16 %v1189, %v1181
          %v1390 = vpack.c.b16 %v1190, %v1182
          %v1391 = vpack.c.b16 %v1191, %v1183
          %v1392 = vpack.c.b16 %v1192, %v1184
          %v1393 = vpack.c.b16 %v1201, %v1193
          %v1394 = vpack.c.b16 %v1202, %v1194
          %v1395 = vpack.c.b16 %v1203, %v1195
          %v1396 = vpack.c.b16 %v1204, %v1196
          %v1397 = vpack.c.b16 %v1205, %v1197
          %v1398 = vpack.c.b16 %v1206, %v1198
          %v1399 = vpack.c.b16 %v1207, %v1199
          %v1400 = vpack.c.b16 %v1208, %v1200
          %v1401 = vpack.c.b16 %v1217, %v1209
          %v1402 = vpack.c.b16 %v1218, %v1210
          %v1403 = vpack.c.b16 %v1219, %v1211
          %v1404 = vpack.c.b16 %v1220, %v1212
          %v1405 = vpack.c.b16 %v1221, %v1213
          %v1406 = vpack.c.b16 %v1222, %v1214
          %v1407 = vpack.c.b16 %v1223, %v1215
          %v1408 = vpack.c.b16 %v1224, %v1216
          %v1409 = vpack.c.b16 %v1233, %v1225
          %v1410 = vpack.c.b16 %v1234, %v1226
          %v1411 = vpack.c.b16 %v1235, %v1227
          %v1412 = vpack.c.b16 %v1236, %v1228
          %v1413 = vpack.c.b16 %v1237, %v1229
          %v1414 = vpack.c.b16 %v1238, %v1230
          %v1415 = vpack.c.b16 %v1239, %v1231
          %v1416 = vpack.c.b16 %v1240, %v1232
          %v1417 = vpack.c.b16 %v1249, %v1241
          %v1418 = vpack.c.b16 %v1250, %v1242
          %v1419 = vpack.c.b16 %v1251, %v1243
          %v1420 = vpack.c.b16 %v1252, %v1244
          %v1421 = vpack.c.b16 %v1253, %v1245
          %v1422 = vpack.c.b16 %v1254, %v1246
          %v1423 = vpack.c.b16 %v1255, %v1247
          %v1424 = vpack.c.b16 %v1256, %v1248
          %v1425 = vpack.c.b16 %v1265, %v1257
          %v1426 = vpack.c.b16 %v1266, %v1258
          %v1427 = vpack.c.b16 %v1267, %v1259
          %v1428 = vpack.c.b16 %v1268, %v1260
          %v1429 = vpack.c.b16 %v1269, %v1261
          %v1430 = vpack.c.b16 %v1270, %v1262
          %v1431 = vpack.c.b16 %v1271, %v1263
          %v1432 = vpack.c.b16 %v1272, %v1264
          %v1433 = vpack.c.b16 %v1281, %v1273
          %v1434 = vpack.c.b16 %v1282, %v1274
          %v1435 = vpack.c.b16 %v1283, %v1275
          %v1436 = vpack.c.b16 %v1284, %v1276
          %v1437 = vpack.c.b16 %v1285, %v1277
          %v1438 = vpack.c.b16 %v1286, %v1278
          %v1439 = vpack.c.b16 %v1287, %v1279
          %v1440 = vpack.c.b16 %v1288, %v1280
          %v1441 = vpack.c.b16 %v1297, %v1289
          %v1442 = vpack.c.b16 %v1298, %v1290
          %v1443 = vpack.c.b16 %v1299, %v1291
          %v1444 = vpack.c.b16 %v1300, %v1292
          %v1445 = vpack.c.b16 %v1301, %v1293
          %v1446 = vpack.c.b16 %v1302, %v1294
          %v1447 = vpack.c.b16 %v1303, %v1295
          %v1448 = vpack.c.b16 %v1304, %v1296
          %v1449 = vpack.c.b16 %v1313, %v1305
          %v1450 = vpack.c.b16 %v1314, %v1306
          %v1451 = vpack.c.b16 %v1315, %v1307
          %v1452 = vpack.c.b16 %v1316, %v1308
          %v1453 = vpack.c.b16 %v1317, %v1309
          %v1454 = vpack.c.b16 %v1318, %v1310
          %v1455 = vpack.c.b16 %v1319, %v1311
          %v1456 = vpack.c.b16 %v1320, %v1312
          %v1457 = vpack.c.b16 %v1329, %v1321
          %v1458 = vpack.c.b16 %v1330, %v1322
          %v1459 = vpack.c.b16 %v1331, %v1323
          %v1460 = vpack.c.b16 %v1332, %v1324
          %v1461 = vpack.c.b16 %v1333, %v1325
          %v1462 = vpack.c.b16 %v1334, %v1326
          %v1463 = vpack.c.b16 %v1335, %v1327
          %v1464 = vpack.c.b16 %v1336, %v1328
          %1593 = vmatpush.bf16.msra.mxu0 %v1393
          %1594 = vmatpush.bf16.msra.mxu0 %v1385
          %1595 = vmatpush.bf16.msra.mxu0 %v1377
          %1596 = vmatpush.bf16.msra.mxu0 %v1369
          %1597 = vmatpush.bf16.msra.mxu0 %v1361
          %1598 = vmatpush.bf16.msra.mxu0 %v1353
          %1599 = vmatpush.bf16.msra.mxu0 %v1345
          %1600 = vmatpush.bf16.msra.mxu0 %v1337
          %1601 = vmatmul.bf16.gmra.mxu0 %v933
          %v1602 = vpop.f32.mrf.mxu0
          %v1603 = vadd.f32 %v937, %v1602
          %v1604 = vpop.f32.mrf.mxu0
          %1605 = vdwg.mxu0
          %1606 = vmatpush.bf16.msra.mxu0 %v1457
          %1607 = vmatpush.bf16.msra.mxu0 %v1449
          %1608 = vmatpush.bf16.msra.mxu0 %v1441
          %1609 = vmatpush.bf16.msra.mxu0 %v1433
          %1610 = vmatpush.bf16.msra.mxu0 %v1425
          %1611 = vmatpush.bf16.msra.mxu0 %v1417
          %1612 = vmatpush.bf16.msra.mxu0 %v1409
          %1613 = vmatpush.bf16.msra.mxu0 %v1401
          %1614 = vmatmul.bf16.gmra.mxu0 %v934
          %v1615 = vpop.f32.mrf.mxu0
          %v1616 = vadd.f32 %v1603, %v1615
          %v1617 = vpop.f32.mrf.mxu0
          %1618 = vdwg.mxu0
          %1619 = vmatpush.bf16.msra.mxu0 %v1394
          %1620 = vmatpush.bf16.msra.mxu0 %v1386
          %1621 = vmatpush.bf16.msra.mxu0 %v1378
          %1622 = vmatpush.bf16.msra.mxu0 %v1370
          %1623 = vmatpush.bf16.msra.mxu0 %v1362
          %1624 = vmatpush.bf16.msra.mxu0 %v1354
          %1625 = vmatpush.bf16.msra.mxu0 %v1346
          %1626 = vmatpush.bf16.msra.mxu0 %v1338
          %1627 = vmatmul.bf16.gmra.mxu0 %v933
          %v1628 = vpop.f32.mrf.mxu0
          %v1629 = vadd.f32 %v938, %v1628
          %v1630 = vpop.f32.mrf.mxu0
          %1631 = vdwg.mxu0
          %1632 = vmatpush.bf16.msra.mxu0 %v1458
          %1633 = vmatpush.bf16.msra.mxu0 %v1450
          %1634 = vmatpush.bf16.msra.mxu0 %v1442
          %1635 = vmatpush.bf16.msra.mxu0 %v1434
          %1636 = vmatpush.bf16.msra.mxu0 %v1426
          %1637 = vmatpush.bf16.msra.mxu0 %v1418
          %1638 = vmatpush.bf16.msra.mxu0 %v1410
          %1639 = vmatpush.bf16.msra.mxu0 %v1402
          %1640 = vmatmul.bf16.gmra.mxu0 %v934
          %v1641 = vpop.f32.mrf.mxu0
          %v1642 = vadd.f32 %v1629, %v1641
          %v1643 = vpop.f32.mrf.mxu0
          %1644 = vdwg.mxu0
          %1645 = vmatpush.bf16.msra.mxu0 %v1395
          %1646 = vmatpush.bf16.msra.mxu0 %v1387
          %1647 = vmatpush.bf16.msra.mxu0 %v1379
          %1648 = vmatpush.bf16.msra.mxu0 %v1371
          %1649 = vmatpush.bf16.msra.mxu0 %v1363
          %1650 = vmatpush.bf16.msra.mxu0 %v1355
          %1651 = vmatpush.bf16.msra.mxu0 %v1347
          %1652 = vmatpush.bf16.msra.mxu0 %v1339
          %1653 = vmatmul.bf16.gmra.mxu0 %v933
          %v1654 = vpop.f32.mrf.mxu0
          %v1655 = vadd.f32 %v939, %v1654
          %v1656 = vpop.f32.mrf.mxu0
          %1657 = vdwg.mxu0
          %1658 = vmatpush.bf16.msra.mxu0 %v1459
          %1659 = vmatpush.bf16.msra.mxu0 %v1451
          %1660 = vmatpush.bf16.msra.mxu0 %v1443
          %1661 = vmatpush.bf16.msra.mxu0 %v1435
          %1662 = vmatpush.bf16.msra.mxu0 %v1427
          %1663 = vmatpush.bf16.msra.mxu0 %v1419
          %1664 = vmatpush.bf16.msra.mxu0 %v1411
          %1665 = vmatpush.bf16.msra.mxu0 %v1403
          %1666 = vmatmul.bf16.gmra.mxu0 %v934
          %v1667 = vpop.f32.mrf.mxu0
          %v1668 = vadd.f32 %v1655, %v1667
          %v1669 = vpop.f32.mrf.mxu0
          %1670 = vdwg.mxu0
          %1671 = vmatpush.bf16.msra.mxu0 %v1396
          %1672 = vmatpush.bf16.msra.mxu0 %v1388
          %1673 = vmatpush.bf16.msra.mxu0 %v1380
          %1674 = vmatpush.bf16.msra.mxu0 %v1372
          %1675 = vmatpush.bf16.msra.mxu0 %v1364
          %1676 = vmatpush.bf16.msra.mxu0 %v1356
          %1677 = vmatpush.bf16.msra.mxu0 %v1348
          %1678 = vmatpush.bf16.msra.mxu0 %v1340
          %1679 = vmatmul.bf16.gmra.mxu0 %v933
          %v1680 = vpop.f32.mrf.mxu0
          %v1681 = vadd.f32 %v940, %v1680
          %v1682 = vpop.f32.mrf.mxu0
          %1683 = vdwg.mxu0
          %1684 = vmatpush.bf16.msra.mxu0 %v1460
          %1685 = vmatpush.bf16.msra.mxu0 %v1452
          %1686 = vmatpush.bf16.msra.mxu0 %v1444
          %1687 = vmatpush.bf16.msra.mxu0 %v1436
          %1688 = vmatpush.bf16.msra.mxu0 %v1428
          %1689 = vmatpush.bf16.msra.mxu0 %v1420
          %1690 = vmatpush.bf16.msra.mxu0 %v1412
          %1691 = vmatpush.bf16.msra.mxu0 %v1404
          %1692 = vmatmul.bf16.gmra.mxu0 %v934
          %v1693 = vpop.f32.mrf.mxu0
          %v1694 = vadd.f32 %v1681, %v1693
          %v1695 = vpop.f32.mrf.mxu0
          %1696 = vdwg.mxu0
          %1697 = vmatpush.bf16.msra.mxu0 %v1397
          %1698 = vmatpush.bf16.msra.mxu0 %v1389
          %1699 = vmatpush.bf16.msra.mxu0 %v1381
          %1700 = vmatpush.bf16.msra.mxu0 %v1373
          %1701 = vmatpush.bf16.msra.mxu0 %v1365
          %1702 = vmatpush.bf16.msra.mxu0 %v1357
          %1703 = vmatpush.bf16.msra.mxu0 %v1349
          %1704 = vmatpush.bf16.msra.mxu0 %v1341
          %1705 = vmatmul.bf16.gmra.mxu0 %v933
          %v1706 = vpop.f32.mrf.mxu0
          %v1707 = vadd.f32 %v941, %v1706
          %v1708 = vpop.f32.mrf.mxu0
          %1709 = vdwg.mxu0
          %1710 = vmatpush.bf16.msra.mxu0 %v1461
          %1711 = vmatpush.bf16.msra.mxu0 %v1453
          %1712 = vmatpush.bf16.msra.mxu0 %v1445
          %1713 = vmatpush.bf16.msra.mxu0 %v1437
          %1714 = vmatpush.bf16.msra.mxu0 %v1429
          %1715 = vmatpush.bf16.msra.mxu0 %v1421
          %1716 = vmatpush.bf16.msra.mxu0 %v1413
          %1717 = vmatpush.bf16.msra.mxu0 %v1405
          %1718 = vmatmul.bf16.gmra.mxu0 %v934
          %v1719 = vpop.f32.mrf.mxu0
          %v1720 = vadd.f32 %v1707, %v1719
          %v1721 = vpop.f32.mrf.mxu0
          %1722 = vdwg.mxu0
          %1723 = vmatpush.bf16.msra.mxu0 %v1398
          %1724 = vmatpush.bf16.msra.mxu0 %v1390
          %1725 = vmatpush.bf16.msra.mxu0 %v1382
          %1726 = vmatpush.bf16.msra.mxu0 %v1374
          %1727 = vmatpush.bf16.msra.mxu0 %v1366
          %1728 = vmatpush.bf16.msra.mxu0 %v1358
          %1729 = vmatpush.bf16.msra.mxu0 %v1350
          %1730 = vmatpush.bf16.msra.mxu0 %v1342
          %1731 = vmatmul.bf16.gmra.mxu0 %v933
          %v1732 = vpop.f32.mrf.mxu0
          %v1733 = vadd.f32 %v942, %v1732
          %v1734 = vpop.f32.mrf.mxu0
          %1735 = vdwg.mxu0
          %1736 = vmatpush.bf16.msra.mxu0 %v1462
          %1737 = vmatpush.bf16.msra.mxu0 %v1454
          %1738 = vmatpush.bf16.msra.mxu0 %v1446
          %1739 = vmatpush.bf16.msra.mxu0 %v1438
          %1740 = vmatpush.bf16.msra.mxu0 %v1430
          %1741 = vmatpush.bf16.msra.mxu0 %v1422
          %1742 = vmatpush.bf16.msra.mxu0 %v1414
          %1743 = vmatpush.bf16.msra.mxu0 %v1406
          %1744 = vmatmul.bf16.gmra.mxu0 %v934
          %v1745 = vpop.f32.mrf.mxu0
          %v1746 = vadd.f32 %v1733, %v1745
          %v1747 = vpop.f32.mrf.mxu0
          %1748 = vdwg.mxu0
          %1749 = vmatpush.bf16.msra.mxu0 %v1399
          %1750 = vmatpush.bf16.msra.mxu0 %v1391
          %1751 = vmatpush.bf16.msra.mxu0 %v1383
          %1752 = vmatpush.bf16.msra.mxu0 %v1375
          %1753 = vmatpush.bf16.msra.mxu0 %v1367
          %1754 = vmatpush.bf16.msra.mxu0 %v1359
          %1755 = vmatpush.bf16.msra.mxu0 %v1351
          %1756 = vmatpush.bf16.msra.mxu0 %v1343
          %1757 = vmatmul.bf16.gmra.mxu0 %v933
          %v1758 = vpop.f32.mrf.mxu0
          %v1759 = vadd.f32 %v943, %v1758
          %v1760 = vpop.f32.mrf.mxu0
          %1761 = vdwg.mxu0
          %1762 = vmatpush.bf16.msra.mxu0 %v1463
          %1763 = vmatpush.bf16.msra.mxu0 %v1455
          %1764 = vmatpush.bf16.msra.mxu0 %v1447
          %1765 = vmatpush.bf16.msra.mxu0 %v1439
          %1766 = vmatpush.bf16.msra.mxu0 %v1431
          %1767 = vmatpush.bf16.msra.mxu0 %v1423
          %1768 = vmatpush.bf16.msra.mxu0 %v1415
          %1769 = vmatpush.bf16.msra.mxu0 %v1407
          %1770 = vmatmul.bf16.gmra.mxu0 %v934
          %v1771 = vpop.f32.mrf.mxu0
          %v1772 = vadd.f32 %v1759, %v1771
          %v1773 = vpop.f32.mrf.mxu0
          %1774 = vdwg.mxu0
          %1775 = vmatpush.bf16.msra.mxu0 %v1400
          %1776 = vmatpush.bf16.msra.mxu0 %v1392
          %1777 = vmatpush.bf16.msra.mxu0 %v1384
          %1778 = vmatpush.bf16.msra.mxu0 %v1376
          %1779 = vmatpush.bf16.msra.mxu0 %v1368
          %1780 = vmatpush.bf16.msra.mxu0 %v1360
          %1781 = vmatpush.bf16.msra.mxu0 %v1352
          %1782 = vmatpush.bf16.msra.mxu0 %v1344
          %1783 = vmatmul.bf16.gmra.mxu0 %v933
          %v1784 = vpop.f32.mrf.mxu0
          %v1785 = vadd.f32 %v944, %v1784
          %v1786 = vpop.f32.mrf.mxu0
          %1787 = vdwg.mxu0
          %1788 = vmatpush.bf16.msra.mxu0 %v1464
          %1789 = vmatpush.bf16.msra.mxu0 %v1456
          %1790 = vmatpush.bf16.msra.mxu0 %v1448
          %1791 = vmatpush.bf16.msra.mxu0 %v1440
          %1792 = vmatpush.bf16.msra.mxu0 %v1432
          %1793 = vmatpush.bf16.msra.mxu0 %v1424
          %1794 = vmatpush.bf16.msra.mxu0 %v1416
          %1795 = vmatpush.bf16.msra.mxu0 %v1408
          %1796 = vmatmul.bf16.gmra.mxu0 %v934
          %v1797 = vpop.f32.mrf.mxu0
          %v1798 = vadd.f32 %v1785, %v1797
          %v1799 = vpop.f32.mrf.mxu0
          %1800 = vdwg.mxu0
          %v1801 = vmax.f32 %v1616, 0.0
          %v1802 = vmax.f32 %v1642, 0.0
          %v1803 = vmax.f32 %v1668, 0.0
          %v1804 = vmax.f32 %v1694, 0.0
          %v1805 = vmax.f32 %v1720, 0.0
          %v1806 = vmax.f32 %v1746, 0.0
          %v1807 = vmax.f32 %v1772, 0.0
          %v1808 = vmax.f32 %v1798, 0.0
          %1809 = vst [vmem:[#allocation2] sm:$0xff] %v1801
          %1810 = vst [vmem:[#allocation2 + $0x8] sm:$0xff] %v1802
          %1811 = vst [vmem:[#allocation2 + $0x10] sm:$0xff] %v1803
          %1812 = vst [vmem:[#allocation2 + $0x18] sm:$0xff] %v1804
          %1813 = vst [vmem:[#allocation2 + $0x20] sm:$0xff] %v1805
          %1814 = vst [vmem:[#allocation2 + $0x28] sm:$0xff] %v1806
          %1815 = vst [vmem:[#allocation2 + $0x30] sm:$0xff] %v1807
          %1816 = vst [vmem:[#allocation2 + $0x38] sm:$0xff] %v1808
          %1817 = vst [vmem:[%s670] sm:$0xff] 0.0
          %1818 = vst [vmem:[%s670 + $0x8] sm:$0xff] 0.0
        $region116: #{recon_detection_map_with_kp.1} parent=67 // pred_fallthru
          _
        %v1819 = vld [vmem:[#allocation2] sm:$0xff]
        %v1820 = vld [vmem:[#allocation2 + $0x8] sm:$0xff]
        %v1821 = vld [vmem:[#allocation2 + $0x10] sm:$0xff]
        %v1822 = vld [vmem:[#allocation2 + $0x18] sm:$0xff]
        %v1823 = vld [vmem:[#allocation2 + $0x20] sm:$0xff]
        %v1824 = vld [vmem:[#allocation2 + $0x28] sm:$0xff]
        %v1825 = vld [vmem:[#allocation2 + $0x30] sm:$0xff]
        %v1826 = vld [vmem:[#allocation2 + $0x38] sm:$0xff]
        %v1827 = vpack.c.bf16 %v1819, %v1819
        %v1828 = vpack.c.bf16 %v1820, %v1820
        %v1829 = vpack.c.bf16 %v1821, %v1821
        %v1830 = vpack.c.bf16 %v1822, %v1822
        %v1831 = vpack.c.bf16 %v1823, %v1823
        %v1832 = vpack.c.bf16 %v1824, %v1824
        %v1833 = vpack.c.bf16 %v1825, %v1825
        %v1834 = vpack.c.bf16 %v1826, %v1826
        %v1835 = vld [vmem:[%s585] sm:$0xff]
        %v1836 = vld [vmem:[%s585 + $0x8] sm:$0xff]
        %v1837 = vld [vmem:[%s585 + $0x10] sm:$0xff]
        %v1838 = vld [vmem:[%s585 + $0x18] sm:$0xff]
        %v1839 = vld [vmem:[%s585 + $0x20] sm:$0xff]
        %v1840 = vld [vmem:[%s585 + $0x28] sm:$0xff]
        %v1841 = vld [vmem:[%s585 + $0x30] sm:$0xff]
        %v1842 = vld [vmem:[%s585 + $0x38] sm:$0xff]
        %v1843 = vld [vmem:[%s585 + $0x40] sm:$0xff]
        %v1844 = vld [vmem:[%s585 + $0x48] sm:$0xff]
        %v1845 = vld [vmem:[%s585 + $0x50] sm:$0xff]
        %v1846 = vld [vmem:[%s585 + $0x58] sm:$0xff]
        %v1847 = vld [vmem:[%s585 + $0x60] sm:$0xff]
        %v1848 = vld [vmem:[%s585 + $0x68] sm:$0xff]
        %v1849 = vld [vmem:[%s585 + $0x70] sm:$0xff]
        %v1850 = vld [vmem:[%s585 + $0x78] sm:$0xff]
        %v1851 = vld [vmem:[%s585 + $0x80] sm:$0xff]
        %v1852 = vld [vmem:[%s585 + $0x88] sm:$0xff]
        %v1853 = vld [vmem:[%s585 + $0x90] sm:$0xff]
        %v1854 = vld [vmem:[%s585 + $0x98] sm:$0xff]
        %v1855 = vld [vmem:[%s585 + $0xa0] sm:$0xff]
        %v1856 = vld [vmem:[%s585 + $0xa8] sm:$0xff]
        %v1857 = vld [vmem:[%s585 + $0xb0] sm:$0xff]
        %v1858 = vld [vmem:[%s585 + $0xb8] sm:$0xff]
        %v1859 = vld [vmem:[%s585 + $0xc0] sm:$0xff]
        %v1860 = vld [vmem:[%s585 + $0xc8] sm:$0xff]
        %v1861 = vld [vmem:[%s585 + $0xd0] sm:$0xff]
        %v1862 = vld [vmem:[%s585 + $0xd8] sm:$0xff]
        %v1863 = vld [vmem:[%s585 + $0xe0] sm:$0xff]
        %v1864 = vld [vmem:[%s585 + $0xe8] sm:$0xff]
        %v1865 = vld [vmem:[%s585 + $0xf0] sm:$0xff]
        %v1866 = vld [vmem:[%s585 + $0xf8] sm:$0xff]
        %v1867 = vld [vmem:[%s585 + $0x100] sm:$0xff]
        %v1868 = vld [vmem:[%s585 + $0x108] sm:$0xff]
        %v1869 = vld [vmem:[%s585 + $0x110] sm:$0xff]
        %v1870 = vld [vmem:[%s585 + $0x118] sm:$0xff]
        %v1871 = vld [vmem:[%s585 + $0x120] sm:$0xff]
        %v1872 = vld [vmem:[%s585 + $0x128] sm:$0xff]
        %v1873 = vld [vmem:[%s585 + $0x130] sm:$0xff]
        %v1874 = vld [vmem:[%s585 + $0x138] sm:$0xff]
        %v1875 = vld [vmem:[%s585 + $0x140] sm:$0xff]
        %v1876 = vld [vmem:[%s585 + $0x148] sm:$0xff]
        %v1877 = vld [vmem:[%s585 + $0x150] sm:$0xff]
        %v1878 = vld [vmem:[%s585 + $0x158] sm:$0xff]
        %v1879 = vld [vmem:[%s585 + $0x160] sm:$0xff]
        %v1880 = vld [vmem:[%s585 + $0x168] sm:$0xff]
        %v1881 = vld [vmem:[%s585 + $0x170] sm:$0xff]
        %v1882 = vld [vmem:[%s585 + $0x178] sm:$0xff]
        %v1883 = vld [vmem:[%s585 + $0x180] sm:$0xff]
        %v1884 = vld [vmem:[%s585 + $0x188] sm:$0xff]
        %v1885 = vld [vmem:[%s585 + $0x190] sm:$0xff]
        %v1886 = vld [vmem:[%s585 + $0x198] sm:$0xff]
        %v1887 = vld [vmem:[%s585 + $0x1a0] sm:$0xff]
        %v1888 = vld [vmem:[%s585 + $0x1a8] sm:$0xff]
        %v1889 = vld [vmem:[%s585 + $0x1b0] sm:$0xff]
        %v1890 = vld [vmem:[%s585 + $0x1b8] sm:$0xff]
        %v1891 = vld [vmem:[%s585 + $0x1c0] sm:$0xff]
        %v1892 = vld [vmem:[%s585 + $0x1c8] sm:$0xff]
        %v1893 = vld [vmem:[%s585 + $0x1d0] sm:$0xff]
        %v1894 = vld [vmem:[%s585 + $0x1d8] sm:$0xff]
        %v1895 = vld [vmem:[%s585 + $0x1e0] sm:$0xff]
        %v1896 = vld [vmem:[%s585 + $0x1e8] sm:$0xff]
        %v1897 = vld [vmem:[%s585 + $0x1f0] sm:$0xff]
        %v1898 = vld [vmem:[%s585 + $0x1f8] sm:$0xff]
        %v1899 = vld [vmem:[%s585 + $0x200] sm:$0xff]
        %v1900 = vld [vmem:[%s585 + $0x208] sm:$0xff]
        %v1901 = vld [vmem:[%s585 + $0x210] sm:$0xff]
        %v1902 = vld [vmem:[%s585 + $0x218] sm:$0xff]
        %v1903 = vld [vmem:[%s585 + $0x220] sm:$0xff]
        %v1904 = vld [vmem:[%s585 + $0x228] sm:$0xff]
        %v1905 = vld [vmem:[%s585 + $0x230] sm:$0xff]
        %v1906 = vld [vmem:[%s585 + $0x238] sm:$0xff]
        %v1907 = vld [vmem:[%s585 + $0x240] sm:$0xff]
        %v1908 = vld [vmem:[%s585 + $0x248] sm:$0xff]
        %v1909 = vld [vmem:[%s585 + $0x250] sm:$0xff]
        %v1910 = vld [vmem:[%s585 + $0x258] sm:$0xff]
        %v1911 = vld [vmem:[%s585 + $0x260] sm:$0xff]
        %v1912 = vld [vmem:[%s585 + $0x268] sm:$0xff]
        %v1913 = vld [vmem:[%s585 + $0x270] sm:$0xff]
        %v1914 = vld [vmem:[%s585 + $0x278] sm:$0xff]
        %v1915 = vld [vmem:[%s585 + $0x280] sm:$0xff]
        %v1916 = vld [vmem:[%s585 + $0x288] sm:$0xff]
        %v1917 = vld [vmem:[%s585 + $0x290] sm:$0xff]
        %v1918 = vld [vmem:[%s585 + $0x298] sm:$0xff]
        %v1919 = vld [vmem:[%s585 + $0x2a0] sm:$0xff]
        %v1920 = vld [vmem:[%s585 + $0x2a8] sm:$0xff]
        %v1921 = vld [vmem:[%s585 + $0x2b0] sm:$0xff]
        %v1922 = vld [vmem:[%s585 + $0x2b8] sm:$0xff]
        %v1923 = vld [vmem:[%s585 + $0x2c0] sm:$0xff]
        %v1924 = vld [vmem:[%s585 + $0x2c8] sm:$0xff]
        %v1925 = vld [vmem:[%s585 + $0x2d0] sm:$0xff]
        %v1926 = vld [vmem:[%s585 + $0x2d8] sm:$0xff]
        %v1927 = vld [vmem:[%s585 + $0x2e0] sm:$0xff]
        %v1928 = vld [vmem:[%s585 + $0x2e8] sm:$0xff]
        %v1929 = vld [vmem:[%s585 + $0x2f0] sm:$0xff]
        %v1930 = vld [vmem:[%s585 + $0x2f8] sm:$0xff]
        %v1931 = vld [vmem:[%s585 + $0x300] sm:$0xff]
        %v1932 = vld [vmem:[%s585 + $0x308] sm:$0xff]
        %v1933 = vld [vmem:[%s585 + $0x310] sm:$0xff]
        %v1934 = vld [vmem:[%s585 + $0x318] sm:$0xff]
        %v1935 = vld [vmem:[%s585 + $0x320] sm:$0xff]
        %v1936 = vld [vmem:[%s585 + $0x328] sm:$0xff]
        %v1937 = vld [vmem:[%s585 + $0x330] sm:$0xff]
        %v1938 = vld [vmem:[%s585 + $0x338] sm:$0xff]
        %v1939 = vld [vmem:[%s585 + $0x340] sm:$0xff]
        %v1940 = vld [vmem:[%s585 + $0x348] sm:$0xff]
        %v1941 = vld [vmem:[%s585 + $0x350] sm:$0xff]
        %v1942 = vld [vmem:[%s585 + $0x358] sm:$0xff]
        %v1943 = vld [vmem:[%s585 + $0x360] sm:$0xff]
        %v1944 = vld [vmem:[%s585 + $0x368] sm:$0xff]
        %v1945 = vld [vmem:[%s585 + $0x370] sm:$0xff]
        %v1946 = vld [vmem:[%s585 + $0x378] sm:$0xff]
        %v1947 = vld [vmem:[%s585 + $0x380] sm:$0xff]
        %v1948 = vld [vmem:[%s585 + $0x388] sm:$0xff]
        %v1949 = vld [vmem:[%s585 + $0x390] sm:$0xff]
        %v1950 = vld [vmem:[%s585 + $0x398] sm:$0xff]
        %v1951 = vld [vmem:[%s585 + $0x3a0] sm:$0xff]
        %v1952 = vld [vmem:[%s585 + $0x3a8] sm:$0xff]
        %v1953 = vld [vmem:[%s585 + $0x3b0] sm:$0xff]
        %v1954 = vld [vmem:[%s585 + $0x3b8] sm:$0xff]
        %v1955 = vld [vmem:[%s585 + $0x3c0] sm:$0xff]
        %v1956 = vld [vmem:[%s585 + $0x3c8] sm:$0xff]
        %v1957 = vld [vmem:[%s585 + $0x3d0] sm:$0xff]
        %v1958 = vld [vmem:[%s585 + $0x3d8] sm:$0xff]
        %v1959 = vld [vmem:[%s585 + $0x3e0] sm:$0xff]
        %v1960 = vld [vmem:[%s585 + $0x3e8] sm:$0xff]
        %v1961 = vld [vmem:[%s585 + $0x3f0] sm:$0xff]
        %v1962 = vld [vmem:[%s585 + $0x3f8] sm:$0xff]
        %v1963 = vld [vmem:[%s585 + $0x400] sm:$0xff]
        %v1964 = vld [vmem:[%s585 + $0x408] sm:$0xff]
        %v1965 = vld [vmem:[%s585 + $0x410] sm:$0xff]
        %v1966 = vld [vmem:[%s585 + $0x418] sm:$0xff]
        %v1967 = vld [vmem:[%s585 + $0x420] sm:$0xff]
        %v1968 = vld [vmem:[%s585 + $0x428] sm:$0xff]
        %v1969 = vld [vmem:[%s585 + $0x430] sm:$0xff]
        %v1970 = vld [vmem:[%s585 + $0x438] sm:$0xff]
        %v1971 = vld [vmem:[%s585 + $0x440] sm:$0xff]
        %v1972 = vld [vmem:[%s585 + $0x448] sm:$0xff]
        %v1973 = vld [vmem:[%s585 + $0x450] sm:$0xff]
        %v1974 = vld [vmem:[%s585 + $0x458] sm:$0xff]
        %v1975 = vld [vmem:[%s585 + $0x460] sm:$0xff]
        %v1976 = vld [vmem:[%s585 + $0x468] sm:$0xff]
        %v1977 = vld [vmem:[%s585 + $0x470] sm:$0xff]
        %v1978 = vld [vmem:[%s585 + $0x478] sm:$0xff]
        %v1979 = vld [vmem:[%s585 + $0x480] sm:$0xff]
        %v1980 = vld [vmem:[%s585 + $0x488] sm:$0xff]
        %v1981 = vld [vmem:[%s585 + $0x490] sm:$0xff]
        %v1982 = vld [vmem:[%s585 + $0x498] sm:$0xff]
        %v1983 = vld [vmem:[%s585 + $0x4a0] sm:$0xff]
        %v1984 = vld [vmem:[%s585 + $0x4a8] sm:$0xff]
        %v1985 = vld [vmem:[%s585 + $0x4b0] sm:$0xff]
        %v1986 = vld [vmem:[%s585 + $0x4b8] sm:$0xff]
        %v1987 = vld [vmem:[%s585 + $0x4c0] sm:$0xff]
        %v1988 = vld [vmem:[%s585 + $0x4c8] sm:$0xff]
        %v1989 = vld [vmem:[%s585 + $0x4d0] sm:$0xff]
        %v1990 = vld [vmem:[%s585 + $0x4d8] sm:$0xff]
        %v1991 = vld [vmem:[%s585 + $0x4e0] sm:$0xff]
        %v1992 = vld [vmem:[%s585 + $0x4e8] sm:$0xff]
        %v1993 = vld [vmem:[%s585 + $0x4f0] sm:$0xff]
        %v1994 = vld [vmem:[%s585 + $0x4f8] sm:$0xff]
        %v1995 = vld [vmem:[%s585 + $0x500] sm:$0xff]
        %v1996 = vld [vmem:[%s585 + $0x508] sm:$0xff]
        %v1997 = vld [vmem:[%s585 + $0x510] sm:$0xff]
        %v1998 = vld [vmem:[%s585 + $0x518] sm:$0xff]
        %v1999 = vld [vmem:[%s585 + $0x520] sm:$0xff]
        %v2000 = vld [vmem:[%s585 + $0x528] sm:$0xff]
        %v2001 = vld [vmem:[%s585 + $0x530] sm:$0xff]
        %v2002 = vld [vmem:[%s585 + $0x538] sm:$0xff]
        %v2003 = vld [vmem:[%s585 + $0x540] sm:$0xff]
        %v2004 = vld [vmem:[%s585 + $0x548] sm:$0xff]
        %v2005 = vld [vmem:[%s585 + $0x550] sm:$0xff]
        %v2006 = vld [vmem:[%s585 + $0x558] sm:$0xff]
        %v2007 = vld [vmem:[%s585 + $0x560] sm:$0xff]
        %v2008 = vld [vmem:[%s585 + $0x568] sm:$0xff]
        %v2009 = vld [vmem:[%s585 + $0x570] sm:$0xff]
        %v2010 = vld [vmem:[%s585 + $0x578] sm:$0xff]
        %v2011 = vld [vmem:[%s585 + $0x580] sm:$0xff]
        %v2012 = vld [vmem:[%s585 + $0x588] sm:$0xff]
        %v2013 = vld [vmem:[%s585 + $0x590] sm:$0xff]
        %v2014 = vld [vmem:[%s585 + $0x598] sm:$0xff]
        %v2015 = vld [vmem:[%s585 + $0x5a0] sm:$0xff]
        %v2016 = vld [vmem:[%s585 + $0x5a8] sm:$0xff]
        %v2017 = vld [vmem:[%s585 + $0x5b0] sm:$0xff]
        %v2018 = vld [vmem:[%s585 + $0x5b8] sm:$0xff]
        %v2019 = vld [vmem:[%s585 + $0x5c0] sm:$0xff]
        %v2020 = vld [vmem:[%s585 + $0x5c8] sm:$0xff]
        %v2021 = vld [vmem:[%s585 + $0x5d0] sm:$0xff]
        %v2022 = vld [vmem:[%s585 + $0x5d8] sm:$0xff]
        %v2023 = vld [vmem:[%s585 + $0x5e0] sm:$0xff]
        %v2024 = vld [vmem:[%s585 + $0x5e8] sm:$0xff]
        %v2025 = vld [vmem:[%s585 + $0x5f0] sm:$0xff]
        %v2026 = vld [vmem:[%s585 + $0x5f8] sm:$0xff]
        %v2027 = vld [vmem:[%s585 + $0x600] sm:$0xff]
        %v2028 = vld [vmem:[%s585 + $0x608] sm:$0xff]
        %v2029 = vld [vmem:[%s585 + $0x610] sm:$0xff]
        %v2030 = vld [vmem:[%s585 + $0x618] sm:$0xff]
        %v2031 = vld [vmem:[%s585 + $0x620] sm:$0xff]
        %v2032 = vld [vmem:[%s585 + $0x628] sm:$0xff]
        %v2033 = vld [vmem:[%s585 + $0x630] sm:$0xff]
        %v2034 = vld [vmem:[%s585 + $0x638] sm:$0xff]
        %v2035 = vld [vmem:[%s585 + $0x640] sm:$0xff]
        %v2036 = vld [vmem:[%s585 + $0x648] sm:$0xff]
        %v2037 = vld [vmem:[%s585 + $0x650] sm:$0xff]
        %v2038 = vld [vmem:[%s585 + $0x658] sm:$0xff]
        %v2039 = vld [vmem:[%s585 + $0x660] sm:$0xff]
        %v2040 = vld [vmem:[%s585 + $0x668] sm:$0xff]
        %v2041 = vld [vmem:[%s585 + $0x670] sm:$0xff]
        %v2042 = vld [vmem:[%s585 + $0x678] sm:$0xff]
        %v2043 = vld [vmem:[%s585 + $0x680] sm:$0xff]
        %v2044 = vld [vmem:[%s585 + $0x688] sm:$0xff]
        %v2045 = vld [vmem:[%s585 + $0x690] sm:$0xff]
        %v2046 = vld [vmem:[%s585 + $0x698] sm:$0xff]
        %v2047 = vld [vmem:[%s585 + $0x6a0] sm:$0xff]
        %v2048 = vld [vmem:[%s585 + $0x6a8] sm:$0xff]
        %v2049 = vld [vmem:[%s585 + $0x6b0] sm:$0xff]
        %v2050 = vld [vmem:[%s585 + $0x6b8] sm:$0xff]
        %v2051 = vld [vmem:[%s585 + $0x6c0] sm:$0xff]
        %v2052 = vld [vmem:[%s585 + $0x6c8] sm:$0xff]
        %v2053 = vld [vmem:[%s585 + $0x6d0] sm:$0xff]
        %v2054 = vld [vmem:[%s585 + $0x6d8] sm:$0xff]
        %v2055 = vld [vmem:[%s585 + $0x6e0] sm:$0xff]
        %v2056 = vld [vmem:[%s585 + $0x6e8] sm:$0xff]
        %v2057 = vld [vmem:[%s585 + $0x6f0] sm:$0xff]
        %v2058 = vld [vmem:[%s585 + $0x6f8] sm:$0xff]
        %v2059 = vld [vmem:[%s585 + $0x700] sm:$0xff]
        %v2060 = vld [vmem:[%s585 + $0x708] sm:$0xff]
        %v2061 = vld [vmem:[%s585 + $0x710] sm:$0xff]
        %v2062 = vld [vmem:[%s585 + $0x718] sm:$0xff]
        %v2063 = vld [vmem:[%s585 + $0x720] sm:$0xff]
        %v2064 = vld [vmem:[%s585 + $0x728] sm:$0xff]
        %v2065 = vld [vmem:[%s585 + $0x730] sm:$0xff]
        %v2066 = vld [vmem:[%s585 + $0x738] sm:$0xff]
        %v2067 = vld [vmem:[%s585 + $0x740] sm:$0xff]
        %v2068 = vld [vmem:[%s585 + $0x748] sm:$0xff]
        %v2069 = vld [vmem:[%s585 + $0x750] sm:$0xff]
        %v2070 = vld [vmem:[%s585 + $0x758] sm:$0xff]
        %v2071 = vld [vmem:[%s585 + $0x760] sm:$0xff]
        %v2072 = vld [vmem:[%s585 + $0x768] sm:$0xff]
        %v2073 = vld [vmem:[%s585 + $0x770] sm:$0xff]
        %v2074 = vld [vmem:[%s585 + $0x778] sm:$0xff]
        %v2075 = vld [vmem:[%s585 + $0x780] sm:$0xff]
        %v2076 = vld [vmem:[%s585 + $0x788] sm:$0xff]
        %v2077 = vld [vmem:[%s585 + $0x790] sm:$0xff]
        %v2078 = vld [vmem:[%s585 + $0x798] sm:$0xff]
        %v2079 = vld [vmem:[%s585 + $0x7a0] sm:$0xff]
        %v2080 = vld [vmem:[%s585 + $0x7a8] sm:$0xff]
        %v2081 = vld [vmem:[%s585 + $0x7b0] sm:$0xff]
        %v2082 = vld [vmem:[%s585 + $0x7b8] sm:$0xff]
        %v2083 = vld [vmem:[%s585 + $0x7c0] sm:$0xff]
        %v2084 = vld [vmem:[%s585 + $0x7c8] sm:$0xff]
        %v2085 = vld [vmem:[%s585 + $0x7d0] sm:$0xff]
        %v2086 = vld [vmem:[%s585 + $0x7d8] sm:$0xff]
        %v2087 = vld [vmem:[%s585 + $0x7e0] sm:$0xff]
        %v2088 = vld [vmem:[%s585 + $0x7e8] sm:$0xff]
        %v2089 = vld [vmem:[%s585 + $0x7f0] sm:$0xff]
        %v2090 = vld [vmem:[%s585 + $0x7f8] sm:$0xff]
        %v2091 = vld [vmem:[%s585 + $0x800] sm:$0xff]
        %v2092 = vld [vmem:[%s585 + $0x808] sm:$0xff]
        %v2093 = vld [vmem:[%s585 + $0x810] sm:$0xff]
        %v2094 = vld [vmem:[%s585 + $0x818] sm:$0xff]
        %v2095 = vld [vmem:[%s585 + $0x820] sm:$0xff]
        %v2096 = vld [vmem:[%s585 + $0x828] sm:$0xff]
        %v2097 = vld [vmem:[%s585 + $0x830] sm:$0xff]
        %v2098 = vld [vmem:[%s585 + $0x838] sm:$0xff]
        %v2099 = vld [vmem:[%s585 + $0x840] sm:$0xff]
        %v2100 = vld [vmem:[%s585 + $0x848] sm:$0xff]
        %v2101 = vld [vmem:[%s585 + $0x850] sm:$0xff]
        %v2102 = vld [vmem:[%s585 + $0x858] sm:$0xff]
        %v2103 = vld [vmem:[%s585 + $0x860] sm:$0xff]
        %v2104 = vld [vmem:[%s585 + $0x868] sm:$0xff]
        %v2105 = vld [vmem:[%s585 + $0x870] sm:$0xff]
        %v2106 = vld [vmem:[%s585 + $0x878] sm:$0xff]
        %v2107 = vld [vmem:[%s585 + $0x880] sm:$0xff]
        %v2108 = vld [vmem:[%s585 + $0x888] sm:$0xff]
        %v2109 = vld [vmem:[%s585 + $0x890] sm:$0xff]
        %v2110 = vld [vmem:[%s585 + $0x898] sm:$0xff]
        %v2111 = vld [vmem:[%s585 + $0x8a0] sm:$0xff]
        %v2112 = vld [vmem:[%s585 + $0x8a8] sm:$0xff]
        %v2113 = vld [vmem:[%s585 + $0x8b0] sm:$0xff]
        %v2114 = vld [vmem:[%s585 + $0x8b8] sm:$0xff]
        %v2115 = vld [vmem:[%s585 + $0x8c0] sm:$0xff]
        %v2116 = vld [vmem:[%s585 + $0x8c8] sm:$0xff]
        %v2117 = vld [vmem:[%s585 + $0x8d0] sm:$0xff]
        %v2118 = vld [vmem:[%s585 + $0x8d8] sm:$0xff]
        %v2119 = vld [vmem:[%s585 + $0x8e0] sm:$0xff]
        %v2120 = vld [vmem:[%s585 + $0x8e8] sm:$0xff]
        %v2121 = vld [vmem:[%s585 + $0x8f0] sm:$0xff]
        %v2122 = vld [vmem:[%s585 + $0x8f8] sm:$0xff]
        %v2123 = vld [vmem:[%s585 + $0x900] sm:$0xff]
        %v2124 = vld [vmem:[%s585 + $0x908] sm:$0xff]
        %v2125 = vld [vmem:[%s585 + $0x910] sm:$0xff]
        %v2126 = vld [vmem:[%s585 + $0x918] sm:$0xff]
        %v2127 = vld [vmem:[%s585 + $0x920] sm:$0xff]
        %v2128 = vld [vmem:[%s585 + $0x928] sm:$0xff]
        %v2129 = vld [vmem:[%s585 + $0x930] sm:$0xff]
        %v2130 = vld [vmem:[%s585 + $0x938] sm:$0xff]
        %v2131 = vld [vmem:[%s585 + $0x940] sm:$0xff]
        %v2132 = vld [vmem:[%s585 + $0x948] sm:$0xff]
        %v2133 = vld [vmem:[%s585 + $0x950] sm:$0xff]
        %v2134 = vld [vmem:[%s585 + $0x958] sm:$0xff]
        %v2135 = vld [vmem:[%s585 + $0x960] sm:$0xff]
        %v2136 = vld [vmem:[%s585 + $0x968] sm:$0xff]
        %v2137 = vld [vmem:[%s585 + $0x970] sm:$0xff]
        %v2138 = vld [vmem:[%s585 + $0x978] sm:$0xff]
        %v2139 = vld [vmem:[%s585 + $0x980] sm:$0xff]
        %v2140 = vld [vmem:[%s585 + $0x988] sm:$0xff]
        %v2141 = vld [vmem:[%s585 + $0x990] sm:$0xff]
        %v2142 = vld [vmem:[%s585 + $0x998] sm:$0xff]
        %v2143 = vld [vmem:[%s585 + $0x9a0] sm:$0xff]
        %v2144 = vld [vmem:[%s585 + $0x9a8] sm:$0xff]
        %v2145 = vld [vmem:[%s585 + $0x9b0] sm:$0xff]
        %v2146 = vld [vmem:[%s585 + $0x9b8] sm:$0xff]
        %v2147 = vld [vmem:[%s585 + $0x9c0] sm:$0xff]
        %v2148 = vld [vmem:[%s585 + $0x9c8] sm:$0xff]
        %v2149 = vld [vmem:[%s585 + $0x9d0] sm:$0xff]
        %v2150 = vld [vmem:[%s585 + $0x9d8] sm:$0xff]
        %v2151 = vld [vmem:[%s585 + $0x9e0] sm:$0xff]
        %v2152 = vld [vmem:[%s585 + $0x9e8] sm:$0xff]
        %v2153 = vld [vmem:[%s585 + $0x9f0] sm:$0xff]
        %v2154 = vld [vmem:[%s585 + $0x9f8] sm:$0xff]
        %v2155 = vld [vmem:[%s585 + $0xa00] sm:$0xff]
        %v2156 = vld [vmem:[%s585 + $0xa08] sm:$0xff]
        %v2157 = vld [vmem:[%s585 + $0xa10] sm:$0xff]
        %v2158 = vld [vmem:[%s585 + $0xa18] sm:$0xff]
        %v2159 = vld [vmem:[%s585 + $0xa20] sm:$0xff]
        %v2160 = vld [vmem:[%s585 + $0xa28] sm:$0xff]
        %v2161 = vld [vmem:[%s585 + $0xa30] sm:$0xff]
        %v2162 = vld [vmem:[%s585 + $0xa38] sm:$0xff]
        %v2163 = vld [vmem:[%s585 + $0xa40] sm:$0xff]
        %v2164 = vld [vmem:[%s585 + $0xa48] sm:$0xff]
        %v2165 = vld [vmem:[%s585 + $0xa50] sm:$0xff]
        %v2166 = vld [vmem:[%s585 + $0xa58] sm:$0xff]
        %v2167 = vld [vmem:[%s585 + $0xa60] sm:$0xff]
        %v2168 = vld [vmem:[%s585 + $0xa68] sm:$0xff]
        %v2169 = vld [vmem:[%s585 + $0xa70] sm:$0xff]
        %v2170 = vld [vmem:[%s585 + $0xa78] sm:$0xff]
        %v2171 = vld [vmem:[%s585 + $0xa80] sm:$0xff]
        %v2172 = vld [vmem:[%s585 + $0xa88] sm:$0xff]
        %v2173 = vld [vmem:[%s585 + $0xa90] sm:$0xff]
        %v2174 = vld [vmem:[%s585 + $0xa98] sm:$0xff]
        %v2175 = vld [vmem:[%s585 + $0xaa0] sm:$0xff]
        %v2176 = vld [vmem:[%s585 + $0xaa8] sm:$0xff]
        %v2177 = vld [vmem:[%s585 + $0xab0] sm:$0xff]
        %v2178 = vld [vmem:[%s585 + $0xab8] sm:$0xff]
        %v2179 = vld [vmem:[%s585 + $0xac0] sm:$0xff]
        %v2180 = vld [vmem:[%s585 + $0xac8] sm:$0xff]
        %v2181 = vld [vmem:[%s585 + $0xad0] sm:$0xff]
        %v2182 = vld [vmem:[%s585 + $0xad8] sm:$0xff]
        %v2183 = vld [vmem:[%s585 + $0xae0] sm:$0xff]
        %v2184 = vld [vmem:[%s585 + $0xae8] sm:$0xff]
        %v2185 = vld [vmem:[%s585 + $0xaf0] sm:$0xff]
        %v2186 = vld [vmem:[%s585 + $0xaf8] sm:$0xff]
        %v2187 = vld [vmem:[%s585 + $0xb00] sm:$0xff]
        %v2188 = vld [vmem:[%s585 + $0xb08] sm:$0xff]
        %v2189 = vld [vmem:[%s585 + $0xb10] sm:$0xff]
        %v2190 = vld [vmem:[%s585 + $0xb18] sm:$0xff]
        %v2191 = vld [vmem:[%s585 + $0xb20] sm:$0xff]
        %v2192 = vld [vmem:[%s585 + $0xb28] sm:$0xff]
        %v2193 = vld [vmem:[%s585 + $0xb30] sm:$0xff]
        %v2194 = vld [vmem:[%s585 + $0xb38] sm:$0xff]
        %v2195 = vld [vmem:[%s585 + $0xb40] sm:$0xff]
        %v2196 = vld [vmem:[%s585 + $0xb48] sm:$0xff]
        %v2197 = vld [vmem:[%s585 + $0xb50] sm:$0xff]
        %v2198 = vld [vmem:[%s585 + $0xb58] sm:$0xff]
        %v2199 = vld [vmem:[%s585 + $0xb60] sm:$0xff]
        %v2200 = vld [vmem:[%s585 + $0xb68] sm:$0xff]
        %v2201 = vld [vmem:[%s585 + $0xb70] sm:$0xff]
        %v2202 = vld [vmem:[%s585 + $0xb78] sm:$0xff]
        %v2203 = vld [vmem:[%s585 + $0xb80] sm:$0xff]
        %v2204 = vld [vmem:[%s585 + $0xb88] sm:$0xff]
        %v2205 = vld [vmem:[%s585 + $0xb90] sm:$0xff]
        %v2206 = vld [vmem:[%s585 + $0xb98] sm:$0xff]
        %v2207 = vld [vmem:[%s585 + $0xba0] sm:$0xff]
        %v2208 = vld [vmem:[%s585 + $0xba8] sm:$0xff]
        %v2209 = vld [vmem:[%s585 + $0xbb0] sm:$0xff]
        %v2210 = vld [vmem:[%s585 + $0xbb8] sm:$0xff]
        %v2211 = vld [vmem:[%s585 + $0xbc0] sm:$0xff]
        %v2212 = vld [vmem:[%s585 + $0xbc8] sm:$0xff]
        %v2213 = vld [vmem:[%s585 + $0xbd0] sm:$0xff]
        %v2214 = vld [vmem:[%s585 + $0xbd8] sm:$0xff]
        %v2215 = vld [vmem:[%s585 + $0xbe0] sm:$0xff]
        %v2216 = vld [vmem:[%s585 + $0xbe8] sm:$0xff]
        %v2217 = vld [vmem:[%s585 + $0xbf0] sm:$0xff]
        %v2218 = vld [vmem:[%s585 + $0xbf8] sm:$0xff]
        %v2219 = vld [vmem:[%s585 + $0xc00] sm:$0xff]
        %v2220 = vld [vmem:[%s585 + $0xc08] sm:$0xff]
        %v2221 = vld [vmem:[%s585 + $0xc10] sm:$0xff]
        %v2222 = vld [vmem:[%s585 + $0xc18] sm:$0xff]
        %v2223 = vld [vmem:[%s585 + $0xc20] sm:$0xff]
        %v2224 = vld [vmem:[%s585 + $0xc28] sm:$0xff]
        %v2225 = vld [vmem:[%s585 + $0xc30] sm:$0xff]
        %v2226 = vld [vmem:[%s585 + $0xc38] sm:$0xff]
        %v2227 = vld [vmem:[%s585 + $0xc40] sm:$0xff]
        %v2228 = vld [vmem:[%s585 + $0xc48] sm:$0xff]
        %v2229 = vld [vmem:[%s585 + $0xc50] sm:$0xff]
        %v2230 = vld [vmem:[%s585 + $0xc58] sm:$0xff]
        %v2231 = vld [vmem:[%s585 + $0xc60] sm:$0xff]
        %v2232 = vld [vmem:[%s585 + $0xc68] sm:$0xff]
        %v2233 = vld [vmem:[%s585 + $0xc70] sm:$0xff]
        %v2234 = vld [vmem:[%s585 + $0xc78] sm:$0xff]
        %v2235 = vld [vmem:[%s585 + $0xc80] sm:$0xff]
        %v2236 = vld [vmem:[%s585 + $0xc88] sm:$0xff]
        %v2237 = vld [vmem:[%s585 + $0xc90] sm:$0xff]
        %v2238 = vld [vmem:[%s585 + $0xc98] sm:$0xff]
        %v2239 = vld [vmem:[%s585 + $0xca0] sm:$0xff]
        %v2240 = vld [vmem:[%s585 + $0xca8] sm:$0xff]
        %v2241 = vld [vmem:[%s585 + $0xcb0] sm:$0xff]
        %v2242 = vld [vmem:[%s585 + $0xcb8] sm:$0xff]
        %v2243 = vld [vmem:[%s585 + $0xcc0] sm:$0xff]
        %v2244 = vld [vmem:[%s585 + $0xcc8] sm:$0xff]
        %v2245 = vld [vmem:[%s585 + $0xcd0] sm:$0xff]
        %v2246 = vld [vmem:[%s585 + $0xcd8] sm:$0xff]
        %v2247 = vld [vmem:[%s585 + $0xce0] sm:$0xff]
        %v2248 = vld [vmem:[%s585 + $0xce8] sm:$0xff]
        %v2249 = vld [vmem:[%s585 + $0xcf0] sm:$0xff]
        %v2250 = vld [vmem:[%s585 + $0xcf8] sm:$0xff]
        %v2251 = vld [vmem:[%s585 + $0xd00] sm:$0xff]
        %v2252 = vld [vmem:[%s585 + $0xd08] sm:$0xff]
        %v2253 = vld [vmem:[%s585 + $0xd10] sm:$0xff]
        %v2254 = vld [vmem:[%s585 + $0xd18] sm:$0xff]
        %v2255 = vld [vmem:[%s585 + $0xd20] sm:$0xff]
        %v2256 = vld [vmem:[%s585 + $0xd28] sm:$0xff]
        %v2257 = vld [vmem:[%s585 + $0xd30] sm:$0xff]
        %v2258 = vld [vmem:[%s585 + $0xd38] sm:$0xff]
        %v2259 = vld [vmem:[%s585 + $0xd40] sm:$0xff]
        %v2260 = vld [vmem:[%s585 + $0xd48] sm:$0xff]
        %v2261 = vld [vmem:[%s585 + $0xd50] sm:$0xff]
        %v2262 = vld [vmem:[%s585 + $0xd58] sm:$0xff]
        %v2263 = vld [vmem:[%s585 + $0xd60] sm:$0xff]
        %v2264 = vld [vmem:[%s585 + $0xd68] sm:$0xff]
        %v2265 = vld [vmem:[%s585 + $0xd70] sm:$0xff]
        %v2266 = vld [vmem:[%s585 + $0xd78] sm:$0xff]
        %v2267 = vld [vmem:[%s585 + $0xd80] sm:$0xff]
        %v2268 = vld [vmem:[%s585 + $0xd88] sm:$0xff]
        %v2269 = vld [vmem:[%s585 + $0xd90] sm:$0xff]
        %v2270 = vld [vmem:[%s585 + $0xd98] sm:$0xff]
        %v2271 = vld [vmem:[%s585 + $0xda0] sm:$0xff]
        %v2272 = vld [vmem:[%s585 + $0xda8] sm:$0xff]
        %v2273 = vld [vmem:[%s585 + $0xdb0] sm:$0xff]
        %v2274 = vld [vmem:[%s585 + $0xdb8] sm:$0xff]
        %v2275 = vld [vmem:[%s585 + $0xdc0] sm:$0xff]
        %v2276 = vld [vmem:[%s585 + $0xdc8] sm:$0xff]
        %v2277 = vld [vmem:[%s585 + $0xdd0] sm:$0xff]
        %v2278 = vld [vmem:[%s585 + $0xdd8] sm:$0xff]
        %v2279 = vld [vmem:[%s585 + $0xde0] sm:$0xff]
        %v2280 = vld [vmem:[%s585 + $0xde8] sm:$0xff]
        %v2281 = vld [vmem:[%s585 + $0xdf0] sm:$0xff]
        %v2282 = vld [vmem:[%s585 + $0xdf8] sm:$0xff]
        %v2283 = vld [vmem:[%s585 + $0xe00] sm:$0xff]
        %v2284 = vld [vmem:[%s585 + $0xe08] sm:$0xff]
        %v2285 = vld [vmem:[%s585 + $0xe10] sm:$0xff]
        %v2286 = vld [vmem:[%s585 + $0xe18] sm:$0xff]
        %v2287 = vld [vmem:[%s585 + $0xe20] sm:$0xff]
        %v2288 = vld [vmem:[%s585 + $0xe28] sm:$0xff]
        %v2289 = vld [vmem:[%s585 + $0xe30] sm:$0xff]
        %v2290 = vld [vmem:[%s585 + $0xe38] sm:$0xff]
        %v2291 = vld [vmem:[%s585 + $0xe40] sm:$0xff]
        %v2292 = vld [vmem:[%s585 + $0xe48] sm:$0xff]
        %v2293 = vld [vmem:[%s585 + $0xe50] sm:$0xff]
        %v2294 = vld [vmem:[%s585 + $0xe58] sm:$0xff]
        %v2295 = vld [vmem:[%s585 + $0xe60] sm:$0xff]
        %v2296 = vld [vmem:[%s585 + $0xe68] sm:$0xff]
        %v2297 = vld [vmem:[%s585 + $0xe70] sm:$0xff]
        %v2298 = vld [vmem:[%s585 + $0xe78] sm:$0xff]
        %v2299 = vld [vmem:[%s585 + $0xe80] sm:$0xff]
        %v2300 = vld [vmem:[%s585 + $0xe88] sm:$0xff]
        %v2301 = vld [vmem:[%s585 + $0xe90] sm:$0xff]
        %v2302 = vld [vmem:[%s585 + $0xe98] sm:$0xff]
        %v2303 = vld [vmem:[%s585 + $0xea0] sm:$0xff]
        %v2304 = vld [vmem:[%s585 + $0xea8] sm:$0xff]
        %v2305 = vld [vmem:[%s585 + $0xeb0] sm:$0xff]
        %v2306 = vld [vmem:[%s585 + $0xeb8] sm:$0xff]
        %v2307 = vld [vmem:[%s585 + $0xec0] sm:$0xff]
        %v2308 = vld [vmem:[%s585 + $0xec8] sm:$0xff]
        %v2309 = vld [vmem:[%s585 + $0xed0] sm:$0xff]
        %v2310 = vld [vmem:[%s585 + $0xed8] sm:$0xff]
        %v2311 = vld [vmem:[%s585 + $0xee0] sm:$0xff]
        %v2312 = vld [vmem:[%s585 + $0xee8] sm:$0xff]
        %v2313 = vld [vmem:[%s585 + $0xef0] sm:$0xff]
        %v2314 = vld [vmem:[%s585 + $0xef8] sm:$0xff]
        %v2315 = vld [vmem:[%s585 + $0xf00] sm:$0xff]
        %v2316 = vld [vmem:[%s585 + $0xf08] sm:$0xff]
        %v2317 = vld [vmem:[%s585 + $0xf10] sm:$0xff]
        %v2318 = vld [vmem:[%s585 + $0xf18] sm:$0xff]
        %v2319 = vld [vmem:[%s585 + $0xf20] sm:$0xff]
        %v2320 = vld [vmem:[%s585 + $0xf28] sm:$0xff]
        %v2321 = vld [vmem:[%s585 + $0xf30] sm:$0xff]
        %v2322 = vld [vmem:[%s585 + $0xf38] sm:$0xff]
        %v2323 = vld [vmem:[%s585 + $0xf40] sm:$0xff]
        %v2324 = vld [vmem:[%s585 + $0xf48] sm:$0xff]
        %v2325 = vld [vmem:[%s585 + $0xf50] sm:$0xff]
        %v2326 = vld [vmem:[%s585 + $0xf58] sm:$0xff]
        %v2327 = vld [vmem:[%s585 + $0xf60] sm:$0xff]
        %v2328 = vld [vmem:[%s585 + $0xf68] sm:$0xff]
        %v2329 = vld [vmem:[%s585 + $0xf70] sm:$0xff]
        %v2330 = vld [vmem:[%s585 + $0xf78] sm:$0xff]
        %v2331 = vld [vmem:[%s585 + $0xf80] sm:$0xff]
        %v2332 = vld [vmem:[%s585 + $0xf88] sm:$0xff]
        %v2333 = vld [vmem:[%s585 + $0xf90] sm:$0xff]
        %v2334 = vld [vmem:[%s585 + $0xf98] sm:$0xff]
        %v2335 = vld [vmem:[%s585 + $0xfa0] sm:$0xff]
        %v2336 = vld [vmem:[%s585 + $0xfa8] sm:$0xff]
        %v2337 = vld [vmem:[%s585 + $0xfb0] sm:$0xff]
        %v2338 = vld [vmem:[%s585 + $0xfb8] sm:$0xff]
        %v2339 = vld [vmem:[%s585 + $0xfc0] sm:$0xff]
        %v2340 = vld [vmem:[%s585 + $0xfc8] sm:$0xff]
        %v2341 = vld [vmem:[%s585 + $0xfd0] sm:$0xff]
        %v2342 = vld [vmem:[%s585 + $0xfd8] sm:$0xff]
        %v2343 = vld [vmem:[%s585 + $0xfe0] sm:$0xff]
        %v2344 = vld [vmem:[%s585 + $0xfe8] sm:$0xff]
        %v2345 = vld [vmem:[%s585 + $0xff0] sm:$0xff]
        %v2346 = vld [vmem:[%s585 + $0xff8] sm:$0xff]
        %v2347 = vld [vmem:[%s595] sm:$0xff]
        %v2349 = vperm.slane %v2347, 0
        %v2350 = vperm.slane %v2347, 1
        %v2351 = vperm.slane %v2347, 2
        %v2352 = vperm.slane %v2347, 3
        %v2353 = vperm.slane %v2347, 4
        %v2354 = vperm.slane %v2347, 5
        %v2355 = vperm.slane %v2347, 6
        %v2356 = vperm.slane %v2347, 7
        %v2877 = vunpack.c.l.b16 %v1835
        %v2878 = vunpack.c.h.b16 %v1835
        %v2879 = vunpack.c.l.b16 %v1836
        %v2880 = vunpack.c.h.b16 %v1836
        %v2881 = vunpack.c.l.b16 %v1837
        %v2882 = vunpack.c.h.b16 %v1837
        %v2883 = vunpack.c.l.b16 %v1838
        %v2884 = vunpack.c.h.b16 %v1838
        %v2885 = vunpack.c.l.b16 %v1839
        %v2886 = vunpack.c.h.b16 %v1839
        %v2887 = vunpack.c.l.b16 %v1840
        %v2888 = vunpack.c.h.b16 %v1840
        %v2889 = vunpack.c.l.b16 %v1841
        %v2890 = vunpack.c.h.b16 %v1841
        %v2891 = vunpack.c.l.b16 %v1842
        %v2892 = vunpack.c.h.b16 %v1842
        %v2893 = vunpack.c.l.b16 %v1843
        %v2894 = vunpack.c.h.b16 %v1843
        %v2895 = vunpack.c.l.b16 %v1844
        %v2896 = vunpack.c.h.b16 %v1844
        %v2897 = vunpack.c.l.b16 %v1845
        %v2898 = vunpack.c.h.b16 %v1845
        %v2899 = vunpack.c.l.b16 %v1846
        %v2900 = vunpack.c.h.b16 %v1846
        %v2901 = vunpack.c.l.b16 %v1847
        %v2902 = vunpack.c.h.b16 %v1847
        %v2903 = vunpack.c.l.b16 %v1848
        %v2904 = vunpack.c.h.b16 %v1848
        %v2905 = vunpack.c.l.b16 %v1849
        %v2906 = vunpack.c.h.b16 %v1849
        %v2907 = vunpack.c.l.b16 %v1850
        %v2908 = vunpack.c.h.b16 %v1850
        %v2909 = vunpack.c.l.b16 %v1851
        %v2910 = vunpack.c.h.b16 %v1851
        %v2911 = vunpack.c.l.b16 %v1852
        %v2912 = vunpack.c.h.b16 %v1852
        %v2913 = vunpack.c.l.b16 %v1853
        %v2914 = vunpack.c.h.b16 %v1853
        %v2915 = vunpack.c.l.b16 %v1854
        %v2916 = vunpack.c.h.b16 %v1854
        %v2917 = vunpack.c.l.b16 %v1855
        %v2918 = vunpack.c.h.b16 %v1855
        %v2919 = vunpack.c.l.b16 %v1856
        %v2920 = vunpack.c.h.b16 %v1856
        %v2921 = vunpack.c.l.b16 %v1857
        %v2922 = vunpack.c.h.b16 %v1857
        %v2923 = vunpack.c.l.b16 %v1858
        %v2924 = vunpack.c.h.b16 %v1858
        %v2925 = vunpack.c.l.b16 %v1859
        %v2926 = vunpack.c.h.b16 %v1859
        %v2927 = vunpack.c.l.b16 %v1860
        %v2928 = vunpack.c.h.b16 %v1860
        %v2929 = vunpack.c.l.b16 %v1861
        %v2930 = vunpack.c.h.b16 %v1861
        %v2931 = vunpack.c.l.b16 %v1862
        %v2932 = vunpack.c.h.b16 %v1862
        %v2933 = vunpack.c.l.b16 %v1863
        %v2934 = vunpack.c.h.b16 %v1863
        %v2935 = vunpack.c.l.b16 %v1864
        %v2936 = vunpack.c.h.b16 %v1864
        %v2937 = vunpack.c.l.b16 %v1865
        %v2938 = vunpack.c.h.b16 %v1865
        %v2939 = vunpack.c.l.b16 %v1866
        %v2940 = vunpack.c.h.b16 %v1866
        %v2941 = vunpack.c.l.b16 %v1867
        %v2942 = vunpack.c.h.b16 %v1867
        %v2943 = vunpack.c.l.b16 %v1868
        %v2944 = vunpack.c.h.b16 %v1868
        %v2945 = vunpack.c.l.b16 %v1869
        %v2946 = vunpack.c.h.b16 %v1869
        %v2947 = vunpack.c.l.b16 %v1870
        %v2948 = vunpack.c.h.b16 %v1870
        %v2949 = vunpack.c.l.b16 %v1871
        %v2950 = vunpack.c.h.b16 %v1871
        %v2951 = vunpack.c.l.b16 %v1872
        %v2952 = vunpack.c.h.b16 %v1872
        %v2953 = vunpack.c.l.b16 %v1873
        %v2954 = vunpack.c.h.b16 %v1873
        %v2955 = vunpack.c.l.b16 %v1874
        %v2956 = vunpack.c.h.b16 %v1874
        %v2957 = vunpack.c.l.b16 %v1875
        %v2958 = vunpack.c.h.b16 %v1875
        %v2959 = vunpack.c.l.b16 %v1876
        %v2960 = vunpack.c.h.b16 %v1876
        %v2961 = vunpack.c.l.b16 %v1877
        %v2962 = vunpack.c.h.b16 %v1877
        %v2963 = vunpack.c.l.b16 %v1878
        %v2964 = vunpack.c.h.b16 %v1878
        %v2965 = vunpack.c.l.b16 %v1879
        %v2966 = vunpack.c.h.b16 %v1879
        %v2967 = vunpack.c.l.b16 %v1880
        %v2968 = vunpack.c.h.b16 %v1880
        %v2969 = vunpack.c.l.b16 %v1881
        %v2970 = vunpack.c.h.b16 %v1881
        %v2971 = vunpack.c.l.b16 %v1882
        %v2972 = vunpack.c.h.b16 %v1882
        %v2973 = vunpack.c.l.b16 %v1883
        %v2974 = vunpack.c.h.b16 %v1883
        %v2975 = vunpack.c.l.b16 %v1884
        %v2976 = vunpack.c.h.b16 %v1884
        %v2977 = vunpack.c.l.b16 %v1885
        %v2978 = vunpack.c.h.b16 %v1885
        %v2979 = vunpack.c.l.b16 %v1886
        %v2980 = vunpack.c.h.b16 %v1886
        %v2981 = vunpack.c.l.b16 %v1887
        %v2982 = vunpack.c.h.b16 %v1887
        %v2983 = vunpack.c.l.b16 %v1888
        %v2984 = vunpack.c.h.b16 %v1888
        %v2985 = vunpack.c.l.b16 %v1889
        %v2986 = vunpack.c.h.b16 %v1889
        %v2987 = vunpack.c.l.b16 %v1890
        %v2988 = vunpack.c.h.b16 %v1890
        %v2989 = vunpack.c.l.b16 %v1891
        %v2990 = vunpack.c.h.b16 %v1891
        %v2991 = vunpack.c.l.b16 %v1892
        %v2992 = vunpack.c.h.b16 %v1892
        %v2993 = vunpack.c.l.b16 %v1893
        %v2994 = vunpack.c.h.b16 %v1893
        %v2995 = vunpack.c.l.b16 %v1894
        %v2996 = vunpack.c.h.b16 %v1894
        %v2997 = vunpack.c.l.b16 %v1895
        %v2998 = vunpack.c.h.b16 %v1895
        %v2999 = vunpack.c.l.b16 %v1896
        %v3000 = vunpack.c.h.b16 %v1896
        %v3001 = vunpack.c.l.b16 %v1897
        %v3002 = vunpack.c.h.b16 %v1897
        %v3003 = vunpack.c.l.b16 %v1898
        %v3004 = vunpack.c.h.b16 %v1898
        %v3005 = vunpack.c.l.b16 %v1899
        %v3006 = vunpack.c.h.b16 %v1899
        %v3007 = vunpack.c.l.b16 %v1900
        %v3008 = vunpack.c.h.b16 %v1900
        %v3009 = vunpack.c.l.b16 %v1901
        %v3010 = vunpack.c.h.b16 %v1901
        %v3011 = vunpack.c.l.b16 %v1902
        %v3012 = vunpack.c.h.b16 %v1902
        %v3013 = vunpack.c.l.b16 %v1903
        %v3014 = vunpack.c.h.b16 %v1903
        %v3015 = vunpack.c.l.b16 %v1904
        %v3016 = vunpack.c.h.b16 %v1904
        %v3017 = vunpack.c.l.b16 %v1905
        %v3018 = vunpack.c.h.b16 %v1905
        %v3019 = vunpack.c.l.b16 %v1906
        %v3020 = vunpack.c.h.b16 %v1906
        %v3021 = vunpack.c.l.b16 %v1907
        %v3022 = vunpack.c.h.b16 %v1907
        %v3023 = vunpack.c.l.b16 %v1908
        %v3024 = vunpack.c.h.b16 %v1908
        %v3025 = vunpack.c.l.b16 %v1909
        %v3026 = vunpack.c.h.b16 %v1909
        %v3027 = vunpack.c.l.b16 %v1910
        %v3028 = vunpack.c.h.b16 %v1910
        %v3029 = vunpack.c.l.b16 %v1911
        %v3030 = vunpack.c.h.b16 %v1911
        %v3031 = vunpack.c.l.b16 %v1912
        %v3032 = vunpack.c.h.b16 %v1912
        %v3033 = vunpack.c.l.b16 %v1913
        %v3034 = vunpack.c.h.b16 %v1913
        %v3035 = vunpack.c.l.b16 %v1914
        %v3036 = vunpack.c.h.b16 %v1914
        %v3037 = vunpack.c.l.b16 %v1915
        %v3038 = vunpack.c.h.b16 %v1915
        %v3039 = vunpack.c.l.b16 %v1916
        %v3040 = vunpack.c.h.b16 %v1916
        %v3041 = vunpack.c.l.b16 %v1917
        %v3042 = vunpack.c.h.b16 %v1917
        %v3043 = vunpack.c.l.b16 %v1918
        %v3044 = vunpack.c.h.b16 %v1918
        %v3045 = vunpack.c.l.b16 %v1919
        %v3046 = vunpack.c.h.b16 %v1919
        %v3047 = vunpack.c.l.b16 %v1920
        %v3048 = vunpack.c.h.b16 %v1920
        %v3049 = vunpack.c.l.b16 %v1921
        %v3050 = vunpack.c.h.b16 %v1921
        %v3051 = vunpack.c.l.b16 %v1922
        %v3052 = vunpack.c.h.b16 %v1922
        %v3053 = vunpack.c.l.b16 %v1923
        %v3054 = vunpack.c.h.b16 %v1923
        %v3055 = vunpack.c.l.b16 %v1924
        %v3056 = vunpack.c.h.b16 %v1924
        %v3057 = vunpack.c.l.b16 %v1925
        %v3058 = vunpack.c.h.b16 %v1925
        %v3059 = vunpack.c.l.b16 %v1926
        %v3060 = vunpack.c.h.b16 %v1926
        %v3061 = vunpack.c.l.b16 %v1927
        %v3062 = vunpack.c.h.b16 %v1927
        %v3063 = vunpack.c.l.b16 %v1928
        %v3064 = vunpack.c.h.b16 %v1928
        %v3065 = vunpack.c.l.b16 %v1929
        %v3066 = vunpack.c.h.b16 %v1929
        %v3067 = vunpack.c.l.b16 %v1930
        %v3068 = vunpack.c.h.b16 %v1930
        %v3069 = vunpack.c.l.b16 %v1931
        %v3070 = vunpack.c.h.b16 %v1931
        %v3071 = vunpack.c.l.b16 %v1932
        %v3072 = vunpack.c.h.b16 %v1932
        %v3073 = vunpack.c.l.b16 %v1933
        %v3074 = vunpack.c.h.b16 %v1933
        %v3075 = vunpack.c.l.b16 %v1934
        %v3076 = vunpack.c.h.b16 %v1934
        %v3077 = vunpack.c.l.b16 %v1935
        %v3078 = vunpack.c.h.b16 %v1935
        %v3079 = vunpack.c.l.b16 %v1936
        %v3080 = vunpack.c.h.b16 %v1936
        %v3081 = vunpack.c.l.b16 %v1937
        %v3082 = vunpack.c.h.b16 %v1937
        %v3083 = vunpack.c.l.b16 %v1938
        %v3084 = vunpack.c.h.b16 %v1938
        %v3085 = vunpack.c.l.b16 %v1939
        %v3086 = vunpack.c.h.b16 %v1939
        %v3087 = vunpack.c.l.b16 %v1940
        %v3088 = vunpack.c.h.b16 %v1940
        %v3089 = vunpack.c.l.b16 %v1941
        %v3090 = vunpack.c.h.b16 %v1941
        %v3091 = vunpack.c.l.b16 %v1942
        %v3092 = vunpack.c.h.b16 %v1942
        %v3093 = vunpack.c.l.b16 %v1943
        %v3094 = vunpack.c.h.b16 %v1943
        %v3095 = vunpack.c.l.b16 %v1944
        %v3096 = vunpack.c.h.b16 %v1944
        %v3097 = vunpack.c.l.b16 %v1945
        %v3098 = vunpack.c.h.b16 %v1945
        %v3099 = vunpack.c.l.b16 %v1946
        %v3100 = vunpack.c.h.b16 %v1946
        %v3101 = vunpack.c.l.b16 %v1947
        %v3102 = vunpack.c.h.b16 %v1947
        %v3103 = vunpack.c.l.b16 %v1948
        %v3104 = vunpack.c.h.b16 %v1948
        %v3105 = vunpack.c.l.b16 %v1949
        %v3106 = vunpack.c.h.b16 %v1949
        %v3107 = vunpack.c.l.b16 %v1950
        %v3108 = vunpack.c.h.b16 %v1950
        %v3109 = vunpack.c.l.b16 %v1951
        %v3110 = vunpack.c.h.b16 %v1951
        %v3111 = vunpack.c.l.b16 %v1952
        %v3112 = vunpack.c.h.b16 %v1952
        %v3113 = vunpack.c.l.b16 %v1953
        %v3114 = vunpack.c.h.b16 %v1953
        %v3115 = vunpack.c.l.b16 %v1954
        %v3116 = vunpack.c.h.b16 %v1954
        %v3117 = vunpack.c.l.b16 %v1955
        %v3118 = vunpack.c.h.b16 %v1955
        %v3119 = vunpack.c.l.b16 %v1956
        %v3120 = vunpack.c.h.b16 %v1956
        %v3121 = vunpack.c.l.b16 %v1957
        %v3122 = vunpack.c.h.b16 %v1957
        %v3123 = vunpack.c.l.b16 %v1958
        %v3124 = vunpack.c.h.b16 %v1958
        %v3125 = vunpack.c.l.b16 %v1959
        %v3126 = vunpack.c.h.b16 %v1959
        %v3127 = vunpack.c.l.b16 %v1960
        %v3128 = vunpack.c.h.b16 %v1960
        %v3129 = vunpack.c.l.b16 %v1961
        %v3130 = vunpack.c.h.b16 %v1961
        %v3131 = vunpack.c.l.b16 %v1962
        %v3132 = vunpack.c.h.b16 %v1962
        %v3133 = vunpack.c.l.b16 %v1963
        %v3134 = vunpack.c.h.b16 %v1963
        %v3135 = vunpack.c.l.b16 %v1964
        %v3136 = vunpack.c.h.b16 %v1964
        %v3137 = vunpack.c.l.b16 %v1965
        %v3138 = vunpack.c.h.b16 %v1965
        %v3139 = vunpack.c.l.b16 %v1966
        %v3140 = vunpack.c.h.b16 %v1966
        %v3141 = vunpack.c.l.b16 %v1967
        %v3142 = vunpack.c.h.b16 %v1967
        %v3143 = vunpack.c.l.b16 %v1968
        %v3144 = vunpack.c.h.b16 %v1968
        %v3145 = vunpack.c.l.b16 %v1969
        %v3146 = vunpack.c.h.b16 %v1969
        %v3147 = vunpack.c.l.b16 %v1970
        %v3148 = vunpack.c.h.b16 %v1970
        %v3149 = vunpack.c.l.b16 %v1971
        %v3150 = vunpack.c.h.b16 %v1971
        %v3151 = vunpack.c.l.b16 %v1972
        %v3152 = vunpack.c.h.b16 %v1972
        %v3153 = vunpack.c.l.b16 %v1973
        %v3154 = vunpack.c.h.b16 %v1973
        %v3155 = vunpack.c.l.b16 %v1974
        %v3156 = vunpack.c.h.b16 %v1974
        %v3157 = vunpack.c.l.b16 %v1975
        %v3158 = vunpack.c.h.b16 %v1975
        %v3159 = vunpack.c.l.b16 %v1976
        %v3160 = vunpack.c.h.b16 %v1976
        %v3161 = vunpack.c.l.b16 %v1977
        %v3162 = vunpack.c.h.b16 %v1977
        %v3163 = vunpack.c.l.b16 %v1978
        %v3164 = vunpack.c.h.b16 %v1978
        %v3165 = vunpack.c.l.b16 %v1979
        %v3166 = vunpack.c.h.b16 %v1979
        %v3167 = vunpack.c.l.b16 %v1980
        %v3168 = vunpack.c.h.b16 %v1980
        %v3169 = vunpack.c.l.b16 %v1981
        %v3170 = vunpack.c.h.b16 %v1981
        %v3171 = vunpack.c.l.b16 %v1982
        %v3172 = vunpack.c.h.b16 %v1982
        %v3173 = vunpack.c.l.b16 %v1983
        %v3174 = vunpack.c.h.b16 %v1983
        %v3175 = vunpack.c.l.b16 %v1984
        %v3176 = vunpack.c.h.b16 %v1984
        %v3177 = vunpack.c.l.b16 %v1985
        %v3178 = vunpack.c.h.b16 %v1985
        %v3179 = vunpack.c.l.b16 %v1986
        %v3180 = vunpack.c.h.b16 %v1986
        %v3181 = vunpack.c.l.b16 %v1987
        %v3182 = vunpack.c.h.b16 %v1987
        %v3183 = vunpack.c.l.b16 %v1988
        %v3184 = vunpack.c.h.b16 %v1988
        %v3185 = vunpack.c.l.b16 %v1989
        %v3186 = vunpack.c.h.b16 %v1989
        %v3187 = vunpack.c.l.b16 %v1990
        %v3188 = vunpack.c.h.b16 %v1990
        %v3189 = vunpack.c.l.b16 %v1991
        %v3190 = vunpack.c.h.b16 %v1991
        %v3191 = vunpack.c.l.b16 %v1992
        %v3192 = vunpack.c.h.b16 %v1992
        %v3193 = vunpack.c.l.b16 %v1993
        %v3194 = vunpack.c.h.b16 %v1993
        %v3195 = vunpack.c.l.b16 %v1994
        %v3196 = vunpack.c.h.b16 %v1994
        %v3197 = vunpack.c.l.b16 %v1995
        %v3198 = vunpack.c.h.b16 %v1995
        %v3199 = vunpack.c.l.b16 %v1996
        %v3200 = vunpack.c.h.b16 %v1996
        %v3201 = vunpack.c.l.b16 %v1997
        %v3202 = vunpack.c.h.b16 %v1997
        %v3203 = vunpack.c.l.b16 %v1998
        %v3204 = vunpack.c.h.b16 %v1998
        %v3205 = vunpack.c.l.b16 %v1999
        %v3206 = vunpack.c.h.b16 %v1999
        %v3207 = vunpack.c.l.b16 %v2000
        %v3208 = vunpack.c.h.b16 %v2000
        %v3209 = vunpack.c.l.b16 %v2001
        %v3210 = vunpack.c.h.b16 %v2001
        %v3211 = vunpack.c.l.b16 %v2002
        %v3212 = vunpack.c.h.b16 %v2002
        %v3213 = vunpack.c.l.b16 %v2003
        %v3214 = vunpack.c.h.b16 %v2003
        %v3215 = vunpack.c.l.b16 %v2004
        %v3216 = vunpack.c.h.b16 %v2004
        %v3217 = vunpack.c.l.b16 %v2005
        %v3218 = vunpack.c.h.b16 %v2005
        %v3219 = vunpack.c.l.b16 %v2006
        %v3220 = vunpack.c.h.b16 %v2006
        %v3221 = vunpack.c.l.b16 %v2007
        %v3222 = vunpack.c.h.b16 %v2007
        %v3223 = vunpack.c.l.b16 %v2008
        %v3224 = vunpack.c.h.b16 %v2008
        %v3225 = vunpack.c.l.b16 %v2009
        %v3226 = vunpack.c.h.b16 %v2009
        %v3227 = vunpack.c.l.b16 %v2010
        %v3228 = vunpack.c.h.b16 %v2010
        %v3229 = vunpack.c.l.b16 %v2011
        %v3230 = vunpack.c.h.b16 %v2011
        %v3231 = vunpack.c.l.b16 %v2012
        %v3232 = vunpack.c.h.b16 %v2012
        %v3233 = vunpack.c.l.b16 %v2013
        %v3234 = vunpack.c.h.b16 %v2013
        %v3235 = vunpack.c.l.b16 %v2014
        %v3236 = vunpack.c.h.b16 %v2014
        %v3237 = vunpack.c.l.b16 %v2015
        %v3238 = vunpack.c.h.b16 %v2015
        %v3239 = vunpack.c.l.b16 %v2016
        %v3240 = vunpack.c.h.b16 %v2016
        %v3241 = vunpack.c.l.b16 %v2017
        %v3242 = vunpack.c.h.b16 %v2017
        %v3243 = vunpack.c.l.b16 %v2018
        %v3244 = vunpack.c.h.b16 %v2018
        %v3245 = vunpack.c.l.b16 %v2019
        %v3246 = vunpack.c.h.b16 %v2019
        %v3247 = vunpack.c.l.b16 %v2020
        %v3248 = vunpack.c.h.b16 %v2020
        %v3249 = vunpack.c.l.b16 %v2021
        %v3250 = vunpack.c.h.b16 %v2021
        %v3251 = vunpack.c.l.b16 %v2022
        %v3252 = vunpack.c.h.b16 %v2022
        %v3253 = vunpack.c.l.b16 %v2023
        %v3254 = vunpack.c.h.b16 %v2023
        %v3255 = vunpack.c.l.b16 %v2024
        %v3256 = vunpack.c.h.b16 %v2024
        %v3257 = vunpack.c.l.b16 %v2025
        %v3258 = vunpack.c.h.b16 %v2025
        %v3259 = vunpack.c.l.b16 %v2026
        %v3260 = vunpack.c.h.b16 %v2026
        %v3261 = vunpack.c.l.b16 %v2027
        %v3262 = vunpack.c.h.b16 %v2027
        %v3263 = vunpack.c.l.b16 %v2028
        %v3264 = vunpack.c.h.b16 %v2028
        %v3265 = vunpack.c.l.b16 %v2029
        %v3266 = vunpack.c.h.b16 %v2029
        %v3267 = vunpack.c.l.b16 %v2030
        %v3268 = vunpack.c.h.b16 %v2030
        %v3269 = vunpack.c.l.b16 %v2031
        %v3270 = vunpack.c.h.b16 %v2031
        %v3271 = vunpack.c.l.b16 %v2032
        %v3272 = vunpack.c.h.b16 %v2032
        %v3273 = vunpack.c.l.b16 %v2033
        %v3274 = vunpack.c.h.b16 %v2033
        %v3275 = vunpack.c.l.b16 %v2034
        %v3276 = vunpack.c.h.b16 %v2034
        %v3277 = vunpack.c.l.b16 %v2035
        %v3278 = vunpack.c.h.b16 %v2035
        %v3279 = vunpack.c.l.b16 %v2036
        %v3280 = vunpack.c.h.b16 %v2036
        %v3281 = vunpack.c.l.b16 %v2037
        %v3282 = vunpack.c.h.b16 %v2037
        %v3283 = vunpack.c.l.b16 %v2038
        %v3284 = vunpack.c.h.b16 %v2038
        %v3285 = vunpack.c.l.b16 %v2039
        %v3286 = vunpack.c.h.b16 %v2039
        %v3287 = vunpack.c.l.b16 %v2040
        %v3288 = vunpack.c.h.b16 %v2040
        %v3289 = vunpack.c.l.b16 %v2041
        %v3290 = vunpack.c.h.b16 %v2041
        %v3291 = vunpack.c.l.b16 %v2042
        %v3292 = vunpack.c.h.b16 %v2042
        %v3293 = vunpack.c.l.b16 %v2043
        %v3294 = vunpack.c.h.b16 %v2043
        %v3295 = vunpack.c.l.b16 %v2044
        %v3296 = vunpack.c.h.b16 %v2044
        %v3297 = vunpack.c.l.b16 %v2045
        %v3298 = vunpack.c.h.b16 %v2045
        %v3299 = vunpack.c.l.b16 %v2046
        %v3300 = vunpack.c.h.b16 %v2046
        %v3301 = vunpack.c.l.b16 %v2047
        %v3302 = vunpack.c.h.b16 %v2047
        %v3303 = vunpack.c.l.b16 %v2048
        %v3304 = vunpack.c.h.b16 %v2048
        %v3305 = vunpack.c.l.b16 %v2049
        %v3306 = vunpack.c.h.b16 %v2049
        %v3307 = vunpack.c.l.b16 %v2050
        %v3308 = vunpack.c.h.b16 %v2050
        %v3309 = vunpack.c.l.b16 %v2051
        %v3310 = vunpack.c.h.b16 %v2051
        %v3311 = vunpack.c.l.b16 %v2052
        %v3312 = vunpack.c.h.b16 %v2052
        %v3313 = vunpack.c.l.b16 %v2053
        %v3314 = vunpack.c.h.b16 %v2053
        %v3315 = vunpack.c.l.b16 %v2054
        %v3316 = vunpack.c.h.b16 %v2054
        %v3317 = vunpack.c.l.b16 %v2055
        %v3318 = vunpack.c.h.b16 %v2055
        %v3319 = vunpack.c.l.b16 %v2056
        %v3320 = vunpack.c.h.b16 %v2056
        %v3321 = vunpack.c.l.b16 %v2057
        %v3322 = vunpack.c.h.b16 %v2057
        %v3323 = vunpack.c.l.b16 %v2058
        %v3324 = vunpack.c.h.b16 %v2058
        %v3325 = vunpack.c.l.b16 %v2059
        %v3326 = vunpack.c.h.b16 %v2059
        %v3327 = vunpack.c.l.b16 %v2060
        %v3328 = vunpack.c.h.b16 %v2060
        %v3329 = vunpack.c.l.b16 %v2061
        %v3330 = vunpack.c.h.b16 %v2061
        %v3331 = vunpack.c.l.b16 %v2062
        %v3332 = vunpack.c.h.b16 %v2062
        %v3333 = vunpack.c.l.b16 %v2063
        %v3334 = vunpack.c.h.b16 %v2063
        %v3335 = vunpack.c.l.b16 %v2064
        %v3336 = vunpack.c.h.b16 %v2064
        %v3337 = vunpack.c.l.b16 %v2065
        %v3338 = vunpack.c.h.b16 %v2065
        %v3339 = vunpack.c.l.b16 %v2066
        %v3340 = vunpack.c.h.b16 %v2066
        %v3341 = vunpack.c.l.b16 %v2067
        %v3342 = vunpack.c.h.b16 %v2067
        %v3343 = vunpack.c.l.b16 %v2068
        %v3344 = vunpack.c.h.b16 %v2068
        %v3345 = vunpack.c.l.b16 %v2069
        %v3346 = vunpack.c.h.b16 %v2069
        %v3347 = vunpack.c.l.b16 %v2070
        %v3348 = vunpack.c.h.b16 %v2070
        %v3349 = vunpack.c.l.b16 %v2071
        %v3350 = vunpack.c.h.b16 %v2071
        %v3351 = vunpack.c.l.b16 %v2072
        %v3352 = vunpack.c.h.b16 %v2072
        %v3353 = vunpack.c.l.b16 %v2073
        %v3354 = vunpack.c.h.b16 %v2073
        %v3355 = vunpack.c.l.b16 %v2074
        %v3356 = vunpack.c.h.b16 %v2074
        %v3357 = vunpack.c.l.b16 %v2075
        %v3358 = vunpack.c.h.b16 %v2075
        %v3359 = vunpack.c.l.b16 %v2076
        %v3360 = vunpack.c.h.b16 %v2076
        %v3361 = vunpack.c.l.b16 %v2077
        %v3362 = vunpack.c.h.b16 %v2077
        %v3363 = vunpack.c.l.b16 %v2078
        %v3364 = vunpack.c.h.b16 %v2078
        %v3365 = vunpack.c.l.b16 %v2079
        %v3366 = vunpack.c.h.b16 %v2079
        %v3367 = vunpack.c.l.b16 %v2080
        %v3368 = vunpack.c.h.b16 %v2080
        %v3369 = vunpack.c.l.b16 %v2081
        %v3370 = vunpack.c.h.b16 %v2081
        %v3371 = vunpack.c.l.b16 %v2082
        %v3372 = vunpack.c.h.b16 %v2082
        %v3373 = vunpack.c.l.b16 %v2083
        %v3374 = vunpack.c.h.b16 %v2083
        %v3375 = vunpack.c.l.b16 %v2084
        %v3376 = vunpack.c.h.b16 %v2084
        %v3377 = vunpack.c.l.b16 %v2085
        %v3378 = vunpack.c.h.b16 %v2085
        %v3379 = vunpack.c.l.b16 %v2086
        %v3380 = vunpack.c.h.b16 %v2086
        %v3381 = vunpack.c.l.b16 %v2087
        %v3382 = vunpack.c.h.b16 %v2087
        %v3383 = vunpack.c.l.b16 %v2088
        %v3384 = vunpack.c.h.b16 %v2088
        %v3385 = vunpack.c.l.b16 %v2089
        %v3386 = vunpack.c.h.b16 %v2089
        %v3387 = vunpack.c.l.b16 %v2090
        %v3388 = vunpack.c.h.b16 %v2090
        %v3389 = vunpack.c.l.b16 %v2091
        %v3390 = vunpack.c.h.b16 %v2091
        %v3391 = vunpack.c.l.b16 %v2092
        %v3392 = vunpack.c.h.b16 %v2092
        %v3393 = vunpack.c.l.b16 %v2093
        %v3394 = vunpack.c.h.b16 %v2093
        %v3395 = vunpack.c.l.b16 %v2094
        %v3396 = vunpack.c.h.b16 %v2094
        %v3397 = vunpack.c.l.b16 %v2095
        %v3398 = vunpack.c.h.b16 %v2095
        %v3399 = vunpack.c.l.b16 %v2096
        %v3400 = vunpack.c.h.b16 %v2096
        %v3401 = vunpack.c.l.b16 %v2097
        %v3402 = vunpack.c.h.b16 %v2097
        %v3403 = vunpack.c.l.b16 %v2098
        %v3404 = vunpack.c.h.b16 %v2098
        %v3405 = vunpack.c.l.b16 %v2099
        %v3406 = vunpack.c.h.b16 %v2099
        %v3407 = vunpack.c.l.b16 %v2100
        %v3408 = vunpack.c.h.b16 %v2100
        %v3409 = vunpack.c.l.b16 %v2101
        %v3410 = vunpack.c.h.b16 %v2101
        %v3411 = vunpack.c.l.b16 %v2102
        %v3412 = vunpack.c.h.b16 %v2102
        %v3413 = vunpack.c.l.b16 %v2103
        %v3414 = vunpack.c.h.b16 %v2103
        %v3415 = vunpack.c.l.b16 %v2104
        %v3416 = vunpack.c.h.b16 %v2104
        %v3417 = vunpack.c.l.b16 %v2105
        %v3418 = vunpack.c.h.b16 %v2105
        %v3419 = vunpack.c.l.b16 %v2106
        %v3420 = vunpack.c.h.b16 %v2106
        %v3421 = vunpack.c.l.b16 %v2107
        %v3422 = vunpack.c.h.b16 %v2107
        %v3423 = vunpack.c.l.b16 %v2108
        %v3424 = vunpack.c.h.b16 %v2108
        %v3425 = vunpack.c.l.b16 %v2109
        %v3426 = vunpack.c.h.b16 %v2109
        %v3427 = vunpack.c.l.b16 %v2110
        %v3428 = vunpack.c.h.b16 %v2110
        %v3429 = vunpack.c.l.b16 %v2111
        %v3430 = vunpack.c.h.b16 %v2111
        %v3431 = vunpack.c.l.b16 %v2112
        %v3432 = vunpack.c.h.b16 %v2112
        %v3433 = vunpack.c.l.b16 %v2113
        %v3434 = vunpack.c.h.b16 %v2113
        %v3435 = vunpack.c.l.b16 %v2114
        %v3436 = vunpack.c.h.b16 %v2114
        %v3437 = vunpack.c.l.b16 %v2115
        %v3438 = vunpack.c.h.b16 %v2115
        %v3439 = vunpack.c.l.b16 %v2116
        %v3440 = vunpack.c.h.b16 %v2116
        %v3441 = vunpack.c.l.b16 %v2117
        %v3442 = vunpack.c.h.b16 %v2117
        %v3443 = vunpack.c.l.b16 %v2118
        %v3444 = vunpack.c.h.b16 %v2118
        %v3445 = vunpack.c.l.b16 %v2119
        %v3446 = vunpack.c.h.b16 %v2119
        %v3447 = vunpack.c.l.b16 %v2120
        %v3448 = vunpack.c.h.b16 %v2120
        %v3449 = vunpack.c.l.b16 %v2121
        %v3450 = vunpack.c.h.b16 %v2121
        %v3451 = vunpack.c.l.b16 %v2122
        %v3452 = vunpack.c.h.b16 %v2122
        %v3453 = vunpack.c.l.b16 %v2123
        %v3454 = vunpack.c.h.b16 %v2123
        %v3455 = vunpack.c.l.b16 %v2124
        %v3456 = vunpack.c.h.b16 %v2124
        %v3457 = vunpack.c.l.b16 %v2125
        %v3458 = vunpack.c.h.b16 %v2125
        %v3459 = vunpack.c.l.b16 %v2126
        %v3460 = vunpack.c.h.b16 %v2126
        %v3461 = vunpack.c.l.b16 %v2127
        %v3462 = vunpack.c.h.b16 %v2127
        %v3463 = vunpack.c.l.b16 %v2128
        %v3464 = vunpack.c.h.b16 %v2128
        %v3465 = vunpack.c.l.b16 %v2129
        %v3466 = vunpack.c.h.b16 %v2129
        %v3467 = vunpack.c.l.b16 %v2130
        %v3468 = vunpack.c.h.b16 %v2130
        %v3469 = vunpack.c.l.b16 %v2131
        %v3470 = vunpack.c.h.b16 %v2131
        %v3471 = vunpack.c.l.b16 %v2132
        %v3472 = vunpack.c.h.b16 %v2132
        %v3473 = vunpack.c.l.b16 %v2133
        %v3474 = vunpack.c.h.b16 %v2133
        %v3475 = vunpack.c.l.b16 %v2134
        %v3476 = vunpack.c.h.b16 %v2134
        %v3477 = vunpack.c.l.b16 %v2135
        %v3478 = vunpack.c.h.b16 %v2135
        %v3479 = vunpack.c.l.b16 %v2136
        %v3480 = vunpack.c.h.b16 %v2136
        %v3481 = vunpack.c.l.b16 %v2137
        %v3482 = vunpack.c.h.b16 %v2137
        %v3483 = vunpack.c.l.b16 %v2138
        %v3484 = vunpack.c.h.b16 %v2138
        %v3485 = vunpack.c.l.b16 %v2139
        %v3486 = vunpack.c.h.b16 %v2139
        %v3487 = vunpack.c.l.b16 %v2140
        %v3488 = vunpack.c.h.b16 %v2140
        %v3489 = vunpack.c.l.b16 %v2141
        %v3490 = vunpack.c.h.b16 %v2141
        %v3491 = vunpack.c.l.b16 %v2142
        %v3492 = vunpack.c.h.b16 %v2142
        %v3493 = vunpack.c.l.b16 %v2143
        %v3494 = vunpack.c.h.b16 %v2143
        %v3495 = vunpack.c.l.b16 %v2144
        %v3496 = vunpack.c.h.b16 %v2144
        %v3497 = vunpack.c.l.b16 %v2145
        %v3498 = vunpack.c.h.b16 %v2145
        %v3499 = vunpack.c.l.b16 %v2146
        %v3500 = vunpack.c.h.b16 %v2146
        %v3501 = vunpack.c.l.b16 %v2147
        %v3502 = vunpack.c.h.b16 %v2147
        %v3503 = vunpack.c.l.b16 %v2148
        %v3504 = vunpack.c.h.b16 %v2148
        %v3505 = vunpack.c.l.b16 %v2149
        %v3506 = vunpack.c.h.b16 %v2149
        %v3507 = vunpack.c.l.b16 %v2150
        %v3508 = vunpack.c.h.b16 %v2150
        %v3509 = vunpack.c.l.b16 %v2151
        %v3510 = vunpack.c.h.b16 %v2151
        %v3511 = vunpack.c.l.b16 %v2152
        %v3512 = vunpack.c.h.b16 %v2152
        %v3513 = vunpack.c.l.b16 %v2153
        %v3514 = vunpack.c.h.b16 %v2153
        %v3515 = vunpack.c.l.b16 %v2154
        %v3516 = vunpack.c.h.b16 %v2154
        %v3517 = vunpack.c.l.b16 %v2155
        %v3518 = vunpack.c.h.b16 %v2155
        %v3519 = vunpack.c.l.b16 %v2156
        %v3520 = vunpack.c.h.b16 %v2156
        %v3521 = vunpack.c.l.b16 %v2157
        %v3522 = vunpack.c.h.b16 %v2157
        %v3523 = vunpack.c.l.b16 %v2158
        %v3524 = vunpack.c.h.b16 %v2158
        %v3525 = vunpack.c.l.b16 %v2159
        %v3526 = vunpack.c.h.b16 %v2159
        %v3527 = vunpack.c.l.b16 %v2160
        %v3528 = vunpack.c.h.b16 %v2160
        %v3529 = vunpack.c.l.b16 %v2161
        %v3530 = vunpack.c.h.b16 %v2161
        %v3531 = vunpack.c.l.b16 %v2162
        %v3532 = vunpack.c.h.b16 %v2162
        %v3533 = vunpack.c.l.b16 %v2163
        %v3534 = vunpack.c.h.b16 %v2163
        %v3535 = vunpack.c.l.b16 %v2164
        %v3536 = vunpack.c.h.b16 %v2164
        %v3537 = vunpack.c.l.b16 %v2165
        %v3538 = vunpack.c.h.b16 %v2165
        %v3539 = vunpack.c.l.b16 %v2166
        %v3540 = vunpack.c.h.b16 %v2166
        %v3541 = vunpack.c.l.b16 %v2167
        %v3542 = vunpack.c.h.b16 %v2167
        %v3543 = vunpack.c.l.b16 %v2168
        %v3544 = vunpack.c.h.b16 %v2168
        %v3545 = vunpack.c.l.b16 %v2169
        %v3546 = vunpack.c.h.b16 %v2169
        %v3547 = vunpack.c.l.b16 %v2170
        %v3548 = vunpack.c.h.b16 %v2170
        %v3549 = vunpack.c.l.b16 %v2171
        %v3550 = vunpack.c.h.b16 %v2171
        %v3551 = vunpack.c.l.b16 %v2172
        %v3552 = vunpack.c.h.b16 %v2172
        %v3553 = vunpack.c.l.b16 %v2173
        %v3554 = vunpack.c.h.b16 %v2173
        %v3555 = vunpack.c.l.b16 %v2174
        %v3556 = vunpack.c.h.b16 %v2174
        %v3557 = vunpack.c.l.b16 %v2175
        %v3558 = vunpack.c.h.b16 %v2175
        %v3559 = vunpack.c.l.b16 %v2176
        %v3560 = vunpack.c.h.b16 %v2176
        %v3561 = vunpack.c.l.b16 %v2177
        %v3562 = vunpack.c.h.b16 %v2177
        %v3563 = vunpack.c.l.b16 %v2178
        %v3564 = vunpack.c.h.b16 %v2178
        %v3565 = vunpack.c.l.b16 %v2179
        %v3566 = vunpack.c.h.b16 %v2179
        %v3567 = vunpack.c.l.b16 %v2180
        %v3568 = vunpack.c.h.b16 %v2180
        %v3569 = vunpack.c.l.b16 %v2181
        %v3570 = vunpack.c.h.b16 %v2181
        %v3571 = vunpack.c.l.b16 %v2182
        %v3572 = vunpack.c.h.b16 %v2182
        %v3573 = vunpack.c.l.b16 %v2183
        %v3574 = vunpack.c.h.b16 %v2183
        %v3575 = vunpack.c.l.b16 %v2184
        %v3576 = vunpack.c.h.b16 %v2184
        %v3577 = vunpack.c.l.b16 %v2185
        %v3578 = vunpack.c.h.b16 %v2185
        %v3579 = vunpack.c.l.b16 %v2186
        %v3580 = vunpack.c.h.b16 %v2186
        %v3581 = vunpack.c.l.b16 %v2187
        %v3582 = vunpack.c.h.b16 %v2187
        %v3583 = vunpack.c.l.b16 %v2188
        %v3584 = vunpack.c.h.b16 %v2188
        %v3585 = vunpack.c.l.b16 %v2189
        %v3586 = vunpack.c.h.b16 %v2189
        %v3587 = vunpack.c.l.b16 %v2190
        %v3588 = vunpack.c.h.b16 %v2190
        %v3589 = vunpack.c.l.b16 %v2191
        %v3590 = vunpack.c.h.b16 %v2191
        %v3591 = vunpack.c.l.b16 %v2192
        %v3592 = vunpack.c.h.b16 %v2192
        %v3593 = vunpack.c.l.b16 %v2193
        %v3594 = vunpack.c.h.b16 %v2193
        %v3595 = vunpack.c.l.b16 %v2194
        %v3596 = vunpack.c.h.b16 %v2194
        %v3597 = vunpack.c.l.b16 %v2195
        %v3598 = vunpack.c.h.b16 %v2195
        %v3599 = vunpack.c.l.b16 %v2196
        %v3600 = vunpack.c.h.b16 %v2196
        %v3601 = vunpack.c.l.b16 %v2197
        %v3602 = vunpack.c.h.b16 %v2197
        %v3603 = vunpack.c.l.b16 %v2198
        %v3604 = vunpack.c.h.b16 %v2198
        %v3605 = vunpack.c.l.b16 %v2199
        %v3606 = vunpack.c.h.b16 %v2199
        %v3607 = vunpack.c.l.b16 %v2200
        %v3608 = vunpack.c.h.b16 %v2200
        %v3609 = vunpack.c.l.b16 %v2201
        %v3610 = vunpack.c.h.b16 %v2201
        %v3611 = vunpack.c.l.b16 %v2202
        %v3612 = vunpack.c.h.b16 %v2202
        %v3613 = vunpack.c.l.b16 %v2203
        %v3614 = vunpack.c.h.b16 %v2203
        %v3615 = vunpack.c.l.b16 %v2204
        %v3616 = vunpack.c.h.b16 %v2204
        %v3617 = vunpack.c.l.b16 %v2205
        %v3618 = vunpack.c.h.b16 %v2205
        %v3619 = vunpack.c.l.b16 %v2206
        %v3620 = vunpack.c.h.b16 %v2206
        %v3621 = vunpack.c.l.b16 %v2207
        %v3622 = vunpack.c.h.b16 %v2207
        %v3623 = vunpack.c.l.b16 %v2208
        %v3624 = vunpack.c.h.b16 %v2208
        %v3625 = vunpack.c.l.b16 %v2209
        %v3626 = vunpack.c.h.b16 %v2209
        %v3627 = vunpack.c.l.b16 %v2210
        %v3628 = vunpack.c.h.b16 %v2210
        %v3629 = vunpack.c.l.b16 %v2211
        %v3630 = vunpack.c.h.b16 %v2211
        %v3631 = vunpack.c.l.b16 %v2212
        %v3632 = vunpack.c.h.b16 %v2212
        %v3633 = vunpack.c.l.b16 %v2213
        %v3634 = vunpack.c.h.b16 %v2213
        %v3635 = vunpack.c.l.b16 %v2214
        %v3636 = vunpack.c.h.b16 %v2214
        %v3637 = vunpack.c.l.b16 %v2215
        %v3638 = vunpack.c.h.b16 %v2215
        %v3639 = vunpack.c.l.b16 %v2216
        %v3640 = vunpack.c.h.b16 %v2216
        %v3641 = vunpack.c.l.b16 %v2217
        %v3642 = vunpack.c.h.b16 %v2217
        %v3643 = vunpack.c.l.b16 %v2218
        %v3644 = vunpack.c.h.b16 %v2218
        %v3645 = vunpack.c.l.b16 %v2219
        %v3646 = vunpack.c.h.b16 %v2219
        %v3647 = vunpack.c.l.b16 %v2220
        %v3648 = vunpack.c.h.b16 %v2220
        %v3649 = vunpack.c.l.b16 %v2221
        %v3650 = vunpack.c.h.b16 %v2221
        %v3651 = vunpack.c.l.b16 %v2222
        %v3652 = vunpack.c.h.b16 %v2222
        %v3653 = vunpack.c.l.b16 %v2223
        %v3654 = vunpack.c.h.b16 %v2223
        %v3655 = vunpack.c.l.b16 %v2224
        %v3656 = vunpack.c.h.b16 %v2224
        %v3657 = vunpack.c.l.b16 %v2225
        %v3658 = vunpack.c.h.b16 %v2225
        %v3659 = vunpack.c.l.b16 %v2226
        %v3660 = vunpack.c.h.b16 %v2226
        %v3661 = vunpack.c.l.b16 %v2227
        %v3662 = vunpack.c.h.b16 %v2227
        %v3663 = vunpack.c.l.b16 %v2228
        %v3664 = vunpack.c.h.b16 %v2228
        %v3665 = vunpack.c.l.b16 %v2229
        %v3666 = vunpack.c.h.b16 %v2229
        %v3667 = vunpack.c.l.b16 %v2230
        %v3668 = vunpack.c.h.b16 %v2230
        %v3669 = vunpack.c.l.b16 %v2231
        %v3670 = vunpack.c.h.b16 %v2231
        %v3671 = vunpack.c.l.b16 %v2232
        %v3672 = vunpack.c.h.b16 %v2232
        %v3673 = vunpack.c.l.b16 %v2233
        %v3674 = vunpack.c.h.b16 %v2233
        %v3675 = vunpack.c.l.b16 %v2234
        %v3676 = vunpack.c.h.b16 %v2234
        %v3677 = vunpack.c.l.b16 %v2235
        %v3678 = vunpack.c.h.b16 %v2235
        %v3679 = vunpack.c.l.b16 %v2236
        %v3680 = vunpack.c.h.b16 %v2236
        %v3681 = vunpack.c.l.b16 %v2237
        %v3682 = vunpack.c.h.b16 %v2237
        %v3683 = vunpack.c.l.b16 %v2238
        %v3684 = vunpack.c.h.b16 %v2238
        %v3685 = vunpack.c.l.b16 %v2239
        %v3686 = vunpack.c.h.b16 %v2239
        %v3687 = vunpack.c.l.b16 %v2240
        %v3688 = vunpack.c.h.b16 %v2240
        %v3689 = vunpack.c.l.b16 %v2241
        %v3690 = vunpack.c.h.b16 %v2241
        %v3691 = vunpack.c.l.b16 %v2242
        %v3692 = vunpack.c.h.b16 %v2242
        %v3693 = vunpack.c.l.b16 %v2243
        %v3694 = vunpack.c.h.b16 %v2243
        %v3695 = vunpack.c.l.b16 %v2244
        %v3696 = vunpack.c.h.b16 %v2244
        %v3697 = vunpack.c.l.b16 %v2245
        %v3698 = vunpack.c.h.b16 %v2245
        %v3699 = vunpack.c.l.b16 %v2246
        %v3700 = vunpack.c.h.b16 %v2246
        %v3701 = vunpack.c.l.b16 %v2247
        %v3702 = vunpack.c.h.b16 %v2247
        %v3703 = vunpack.c.l.b16 %v2248
        %v3704 = vunpack.c.h.b16 %v2248
        %v3705 = vunpack.c.l.b16 %v2249
        %v3706 = vunpack.c.h.b16 %v2249
        %v3707 = vunpack.c.l.b16 %v2250
        %v3708 = vunpack.c.h.b16 %v2250
        %v3709 = vunpack.c.l.b16 %v2251
        %v3710 = vunpack.c.h.b16 %v2251
        %v3711 = vunpack.c.l.b16 %v2252
        %v3712 = vunpack.c.h.b16 %v2252
        %v3713 = vunpack.c.l.b16 %v2253
        %v3714 = vunpack.c.h.b16 %v2253
        %v3715 = vunpack.c.l.b16 %v2254
        %v3716 = vunpack.c.h.b16 %v2254
        %v3717 = vunpack.c.l.b16 %v2255
        %v3718 = vunpack.c.h.b16 %v2255
        %v3719 = vunpack.c.l.b16 %v2256
        %v3720 = vunpack.c.h.b16 %v2256
        %v3721 = vunpack.c.l.b16 %v2257
        %v3722 = vunpack.c.h.b16 %v2257
        %v3723 = vunpack.c.l.b16 %v2258
        %v3724 = vunpack.c.h.b16 %v2258
        %v3725 = vunpack.c.l.b16 %v2259
        %v3726 = vunpack.c.h.b16 %v2259
        %v3727 = vunpack.c.l.b16 %v2260
        %v3728 = vunpack.c.h.b16 %v2260
        %v3729 = vunpack.c.l.b16 %v2261
        %v3730 = vunpack.c.h.b16 %v2261
        %v3731 = vunpack.c.l.b16 %v2262
        %v3732 = vunpack.c.h.b16 %v2262
        %v3733 = vunpack.c.l.b16 %v2263
        %v3734 = vunpack.c.h.b16 %v2263
        %v3735 = vunpack.c.l.b16 %v2264
        %v3736 = vunpack.c.h.b16 %v2264
        %v3737 = vunpack.c.l.b16 %v2265
        %v3738 = vunpack.c.h.b16 %v2265
        %v3739 = vunpack.c.l.b16 %v2266
        %v3740 = vunpack.c.h.b16 %v2266
        %v3741 = vunpack.c.l.b16 %v2267
        %v3742 = vunpack.c.h.b16 %v2267
        %v3743 = vunpack.c.l.b16 %v2268
        %v3744 = vunpack.c.h.b16 %v2268
        %v3745 = vunpack.c.l.b16 %v2269
        %v3746 = vunpack.c.h.b16 %v2269
        %v3747 = vunpack.c.l.b16 %v2270
        %v3748 = vunpack.c.h.b16 %v2270
        %v3749 = vunpack.c.l.b16 %v2271
        %v3750 = vunpack.c.h.b16 %v2271
        %v3751 = vunpack.c.l.b16 %v2272
        %v3752 = vunpack.c.h.b16 %v2272
        %v3753 = vunpack.c.l.b16 %v2273
        %v3754 = vunpack.c.h.b16 %v2273
        %v3755 = vunpack.c.l.b16 %v2274
        %v3756 = vunpack.c.h.b16 %v2274
        %v3757 = vunpack.c.l.b16 %v2275
        %v3758 = vunpack.c.h.b16 %v2275
        %v3759 = vunpack.c.l.b16 %v2276
        %v3760 = vunpack.c.h.b16 %v2276
        %v3761 = vunpack.c.l.b16 %v2277
        %v3762 = vunpack.c.h.b16 %v2277
        %v3763 = vunpack.c.l.b16 %v2278
        %v3764 = vunpack.c.h.b16 %v2278
        %v3765 = vunpack.c.l.b16 %v2279
        %v3766 = vunpack.c.h.b16 %v2279
        %v3767 = vunpack.c.l.b16 %v2280
        %v3768 = vunpack.c.h.b16 %v2280
        %v3769 = vunpack.c.l.b16 %v2281
        %v3770 = vunpack.c.h.b16 %v2281
        %v3771 = vunpack.c.l.b16 %v2282
        %v3772 = vunpack.c.h.b16 %v2282
        %v3773 = vunpack.c.l.b16 %v2283
        %v3774 = vunpack.c.h.b16 %v2283
        %v3775 = vunpack.c.l.b16 %v2284
        %v3776 = vunpack.c.h.b16 %v2284
        %v3777 = vunpack.c.l.b16 %v2285
        %v3778 = vunpack.c.h.b16 %v2285
        %v3779 = vunpack.c.l.b16 %v2286
        %v3780 = vunpack.c.h.b16 %v2286
        %v3781 = vunpack.c.l.b16 %v2287
        %v3782 = vunpack.c.h.b16 %v2287
        %v3783 = vunpack.c.l.b16 %v2288
        %v3784 = vunpack.c.h.b16 %v2288
        %v3785 = vunpack.c.l.b16 %v2289
        %v3786 = vunpack.c.h.b16 %v2289
        %v3787 = vunpack.c.l.b16 %v2290
        %v3788 = vunpack.c.h.b16 %v2290
        %v3789 = vunpack.c.l.b16 %v2291
        %v3790 = vunpack.c.h.b16 %v2291
        %v3791 = vunpack.c.l.b16 %v2292
        %v3792 = vunpack.c.h.b16 %v2292
        %v3793 = vunpack.c.l.b16 %v2293
        %v3794 = vunpack.c.h.b16 %v2293
        %v3795 = vunpack.c.l.b16 %v2294
        %v3796 = vunpack.c.h.b16 %v2294
        %v3797 = vunpack.c.l.b16 %v2295
        %v3798 = vunpack.c.h.b16 %v2295
        %v3799 = vunpack.c.l.b16 %v2296
        %v3800 = vunpack.c.h.b16 %v2296
        %v3801 = vunpack.c.l.b16 %v2297
        %v3802 = vunpack.c.h.b16 %v2297
        %v3803 = vunpack.c.l.b16 %v2298
        %v3804 = vunpack.c.h.b16 %v2298
        %v3805 = vunpack.c.l.b16 %v2299
        %v3806 = vunpack.c.h.b16 %v2299
        %v3807 = vunpack.c.l.b16 %v2300
        %v3808 = vunpack.c.h.b16 %v2300
        %v3809 = vunpack.c.l.b16 %v2301
        %v3810 = vunpack.c.h.b16 %v2301
        %v3811 = vunpack.c.l.b16 %v2302
        %v3812 = vunpack.c.h.b16 %v2302
        %v3813 = vunpack.c.l.b16 %v2303
        %v3814 = vunpack.c.h.b16 %v2303
        %v3815 = vunpack.c.l.b16 %v2304
        %v3816 = vunpack.c.h.b16 %v2304
        %v3817 = vunpack.c.l.b16 %v2305
        %v3818 = vunpack.c.h.b16 %v2305
        %v3819 = vunpack.c.l.b16 %v2306
        %v3820 = vunpack.c.h.b16 %v2306
        %v3821 = vunpack.c.l.b16 %v2307
        %v3822 = vunpack.c.h.b16 %v2307
        %v3823 = vunpack.c.l.b16 %v2308
        %v3824 = vunpack.c.h.b16 %v2308
        %v3825 = vunpack.c.l.b16 %v2309
        %v3826 = vunpack.c.h.b16 %v2309
        %v3827 = vunpack.c.l.b16 %v2310
        %v3828 = vunpack.c.h.b16 %v2310
        %v3829 = vunpack.c.l.b16 %v2311
        %v3830 = vunpack.c.h.b16 %v2311
        %v3831 = vunpack.c.l.b16 %v2312
        %v3832 = vunpack.c.h.b16 %v2312
        %v3833 = vunpack.c.l.b16 %v2313
        %v3834 = vunpack.c.h.b16 %v2313
        %v3835 = vunpack.c.l.b16 %v2314
        %v3836 = vunpack.c.h.b16 %v2314
        %v3837 = vunpack.c.l.b16 %v2315
        %v3838 = vunpack.c.h.b16 %v2315
        %v3839 = vunpack.c.l.b16 %v2316
        %v3840 = vunpack.c.h.b16 %v2316
        %v3841 = vunpack.c.l.b16 %v2317
        %v3842 = vunpack.c.h.b16 %v2317
        %v3843 = vunpack.c.l.b16 %v2318
        %v3844 = vunpack.c.h.b16 %v2318
        %v3845 = vunpack.c.l.b16 %v2319
        %v3846 = vunpack.c.h.b16 %v2319
        %v3847 = vunpack.c.l.b16 %v2320
        %v3848 = vunpack.c.h.b16 %v2320
        %v3849 = vunpack.c.l.b16 %v2321
        %v3850 = vunpack.c.h.b16 %v2321
        %v3851 = vunpack.c.l.b16 %v2322
        %v3852 = vunpack.c.h.b16 %v2322
        %v3853 = vunpack.c.l.b16 %v2323
        %v3854 = vunpack.c.h.b16 %v2323
        %v3855 = vunpack.c.l.b16 %v2324
        %v3856 = vunpack.c.h.b16 %v2324
        %v3857 = vunpack.c.l.b16 %v2325
        %v3858 = vunpack.c.h.b16 %v2325
        %v3859 = vunpack.c.l.b16 %v2326
        %v3860 = vunpack.c.h.b16 %v2326
        %v3861 = vunpack.c.l.b16 %v2327
        %v3862 = vunpack.c.h.b16 %v2327
        %v3863 = vunpack.c.l.b16 %v2328
        %v3864 = vunpack.c.h.b16 %v2328
        %v3865 = vunpack.c.l.b16 %v2329
        %v3866 = vunpack.c.h.b16 %v2329
        %v3867 = vunpack.c.l.b16 %v2330
        %v3868 = vunpack.c.h.b16 %v2330
        %v3869 = vunpack.c.l.b16 %v2331
        %v3870 = vunpack.c.h.b16 %v2331
        %v3871 = vunpack.c.l.b16 %v2332
        %v3872 = vunpack.c.h.b16 %v2332
        %v3873 = vunpack.c.l.b16 %v2333
        %v3874 = vunpack.c.h.b16 %v2333
        %v3875 = vunpack.c.l.b16 %v2334
        %v3876 = vunpack.c.h.b16 %v2334
        %v3877 = vunpack.c.l.b16 %v2335
        %v3878 = vunpack.c.h.b16 %v2335
        %v3879 = vunpack.c.l.b16 %v2336
        %v3880 = vunpack.c.h.b16 %v2336
        %v3881 = vunpack.c.l.b16 %v2337
        %v3882 = vunpack.c.h.b16 %v2337
        %v3883 = vunpack.c.l.b16 %v2338
        %v3884 = vunpack.c.h.b16 %v2338
        %v3885 = vunpack.c.l.b16 %v2339
        %v3886 = vunpack.c.h.b16 %v2339
        %v3887 = vunpack.c.l.b16 %v2340
        %v3888 = vunpack.c.h.b16 %v2340
        %v3889 = vunpack.c.l.b16 %v2341
        %v3890 = vunpack.c.h.b16 %v2341
        %v3891 = vunpack.c.l.b16 %v2342
        %v3892 = vunpack.c.h.b16 %v2342
        %v3893 = vunpack.c.l.b16 %v2343
        %v3894 = vunpack.c.h.b16 %v2343
        %v3895 = vunpack.c.l.b16 %v2344
        %v3896 = vunpack.c.h.b16 %v2344
        %v3897 = vunpack.c.l.b16 %v2345
        %v3898 = vunpack.c.h.b16 %v2345
        %v3899 = vunpack.c.l.b16 %v2346
        %v3900 = vunpack.c.h.b16 %v2346
        %v3901 = vpack.c.b16 %v2885, %v2877
        %v3902 = vpack.c.b16 %v2886, %v2878
        %v3903 = vpack.c.b16 %v2887, %v2879
        %v3904 = vpack.c.b16 %v2888, %v2880
        %v3905 = vpack.c.b16 %v2889, %v2881
        %v3906 = vpack.c.b16 %v2890, %v2882
        %v3907 = vpack.c.b16 %v2891, %v2883
        %v3908 = vpack.c.b16 %v2892, %v2884
        %v3909 = vpack.c.b16 %v2901, %v2893
        %v3910 = vpack.c.b16 %v2902, %v2894
        %v3911 = vpack.c.b16 %v2903, %v2895
        %v3912 = vpack.c.b16 %v2904, %v2896
        %v3913 = vpack.c.b16 %v2905, %v2897
        %v3914 = vpack.c.b16 %v2906, %v2898
        %v3915 = vpack.c.b16 %v2907, %v2899
        %v3916 = vpack.c.b16 %v2908, %v2900
        %v3917 = vpack.c.b16 %v2917, %v2909
        %v3918 = vpack.c.b16 %v2918, %v2910
        %v3919 = vpack.c.b16 %v2919, %v2911
        %v3920 = vpack.c.b16 %v2920, %v2912
        %v3921 = vpack.c.b16 %v2921, %v2913
        %v3922 = vpack.c.b16 %v2922, %v2914
        %v3923 = vpack.c.b16 %v2923, %v2915
        %v3924 = vpack.c.b16 %v2924, %v2916
        %v3925 = vpack.c.b16 %v2933, %v2925
        %v3926 = vpack.c.b16 %v2934, %v2926
        %v3927 = vpack.c.b16 %v2935, %v2927
        %v3928 = vpack.c.b16 %v2936, %v2928
        %v3929 = vpack.c.b16 %v2937, %v2929
        %v3930 = vpack.c.b16 %v2938, %v2930
        %v3931 = vpack.c.b16 %v2939, %v2931
        %v3932 = vpack.c.b16 %v2940, %v2932
        %v3933 = vpack.c.b16 %v2949, %v2941
        %v3934 = vpack.c.b16 %v2950, %v2942
        %v3935 = vpack.c.b16 %v2951, %v2943
        %v3936 = vpack.c.b16 %v2952, %v2944
        %v3937 = vpack.c.b16 %v2953, %v2945
        %v3938 = vpack.c.b16 %v2954, %v2946
        %v3939 = vpack.c.b16 %v2955, %v2947
        %v3940 = vpack.c.b16 %v2956, %v2948
        %v3941 = vpack.c.b16 %v2965, %v2957
        %v3942 = vpack.c.b16 %v2966, %v2958
        %v3943 = vpack.c.b16 %v2967, %v2959
        %v3944 = vpack.c.b16 %v2968, %v2960
        %v3945 = vpack.c.b16 %v2969, %v2961
        %v3946 = vpack.c.b16 %v2970, %v2962
        %v3947 = vpack.c.b16 %v2971, %v2963
        %v3948 = vpack.c.b16 %v2972, %v2964
        %v3949 = vpack.c.b16 %v2981, %v2973
        %v3950 = vpack.c.b16 %v2982, %v2974
        %v3951 = vpack.c.b16 %v2983, %v2975
        %v3952 = vpack.c.b16 %v2984, %v2976
        %v3953 = vpack.c.b16 %v2985, %v2977
        %v3954 = vpack.c.b16 %v2986, %v2978
        %v3955 = vpack.c.b16 %v2987, %v2979
        %v3956 = vpack.c.b16 %v2988, %v2980
        %v3957 = vpack.c.b16 %v2997, %v2989
        %v3958 = vpack.c.b16 %v2998, %v2990
        %v3959 = vpack.c.b16 %v2999, %v2991
        %v3960 = vpack.c.b16 %v3000, %v2992
        %v3961 = vpack.c.b16 %v3001, %v2993
        %v3962 = vpack.c.b16 %v3002, %v2994
        %v3963 = vpack.c.b16 %v3003, %v2995
        %v3964 = vpack.c.b16 %v3004, %v2996
        %v3965 = vpack.c.b16 %v3013, %v3005
        %v3966 = vpack.c.b16 %v3014, %v3006
        %v3967 = vpack.c.b16 %v3015, %v3007
        %v3968 = vpack.c.b16 %v3016, %v3008
        %v3969 = vpack.c.b16 %v3017, %v3009
        %v3970 = vpack.c.b16 %v3018, %v3010
        %v3971 = vpack.c.b16 %v3019, %v3011
        %v3972 = vpack.c.b16 %v3020, %v3012
        %v3973 = vpack.c.b16 %v3029, %v3021
        %v3974 = vpack.c.b16 %v3030, %v3022
        %v3975 = vpack.c.b16 %v3031, %v3023
        %v3976 = vpack.c.b16 %v3032, %v3024
        %v3977 = vpack.c.b16 %v3033, %v3025
        %v3978 = vpack.c.b16 %v3034, %v3026
        %v3979 = vpack.c.b16 %v3035, %v3027
        %v3980 = vpack.c.b16 %v3036, %v3028
        %v3981 = vpack.c.b16 %v3045, %v3037
        %v3982 = vpack.c.b16 %v3046, %v3038
        %v3983 = vpack.c.b16 %v3047, %v3039
        %v3984 = vpack.c.b16 %v3048, %v3040
        %v3985 = vpack.c.b16 %v3049, %v3041
        %v3986 = vpack.c.b16 %v3050, %v3042
        %v3987 = vpack.c.b16 %v3051, %v3043
        %v3988 = vpack.c.b16 %v3052, %v3044
        %v3989 = vpack.c.b16 %v3061, %v3053
        %v3990 = vpack.c.b16 %v3062, %v3054
        %v3991 = vpack.c.b16 %v3063, %v3055
        %v3992 = vpack.c.b16 %v3064, %v3056
        %v3993 = vpack.c.b16 %v3065, %v3057
        %v3994 = vpack.c.b16 %v3066, %v3058
        %v3995 = vpack.c.b16 %v3067, %v3059
        %v3996 = vpack.c.b16 %v3068, %v3060
        %v3997 = vpack.c.b16 %v3077, %v3069
        %v3998 = vpack.c.b16 %v3078, %v3070
        %v3999 = vpack.c.b16 %v3079, %v3071
        %v4000 = vpack.c.b16 %v3080, %v3072
        %v4001 = vpack.c.b16 %v3081, %v3073
        %v4002 = vpack.c.b16 %v3082, %v3074
        %v4003 = vpack.c.b16 %v3083, %v3075
        %v4004 = vpack.c.b16 %v3084, %v3076
        %v4005 = vpack.c.b16 %v3093, %v3085
        %v4006 = vpack.c.b16 %v3094, %v3086
        %v4007 = vpack.c.b16 %v3095, %v3087
        %v4008 = vpack.c.b16 %v3096, %v3088
        %v4009 = vpack.c.b16 %v3097, %v3089
        %v4010 = vpack.c.b16 %v3098, %v3090
        %v4011 = vpack.c.b16 %v3099, %v3091
        %v4012 = vpack.c.b16 %v3100, %v3092
        %v4013 = vpack.c.b16 %v3109, %v3101
        %v4014 = vpack.c.b16 %v3110, %v3102
        %v4015 = vpack.c.b16 %v3111, %v3103
        %v4016 = vpack.c.b16 %v3112, %v3104
        %v4017 = vpack.c.b16 %v3113, %v3105
        %v4018 = vpack.c.b16 %v3114, %v3106
        %v4019 = vpack.c.b16 %v3115, %v3107
        %v4020 = vpack.c.b16 %v3116, %v3108
        %v4021 = vpack.c.b16 %v3125, %v3117
        %v4022 = vpack.c.b16 %v3126, %v3118
        %v4023 = vpack.c.b16 %v3127, %v3119
        %v4024 = vpack.c.b16 %v3128, %v3120
        %v4025 = vpack.c.b16 %v3129, %v3121
        %v4026 = vpack.c.b16 %v3130, %v3122
        %v4027 = vpack.c.b16 %v3131, %v3123
        %v4028 = vpack.c.b16 %v3132, %v3124
        %v4029 = vpack.c.b16 %v3141, %v3133
        %v4030 = vpack.c.b16 %v3142, %v3134
        %v4031 = vpack.c.b16 %v3143, %v3135
        %v4032 = vpack.c.b16 %v3144, %v3136
        %v4033 = vpack.c.b16 %v3145, %v3137
        %v4034 = vpack.c.b16 %v3146, %v3138
        %v4035 = vpack.c.b16 %v3147, %v3139
        %v4036 = vpack.c.b16 %v3148, %v3140
        %v4037 = vpack.c.b16 %v3157, %v3149
        %v4038 = vpack.c.b16 %v3158, %v3150
        %v4039 = vpack.c.b16 %v3159, %v3151
        %v4040 = vpack.c.b16 %v3160, %v3152
        %v4041 = vpack.c.b16 %v3161, %v3153
        %v4042 = vpack.c.b16 %v3162, %v3154
        %v4043 = vpack.c.b16 %v3163, %v3155
        %v4044 = vpack.c.b16 %v3164, %v3156
        %v4045 = vpack.c.b16 %v3173, %v3165
        %v4046 = vpack.c.b16 %v3174, %v3166
        %v4047 = vpack.c.b16 %v3175, %v3167
        %v4048 = vpack.c.b16 %v3176, %v3168
        %v4049 = vpack.c.b16 %v3177, %v3169
        %v4050 = vpack.c.b16 %v3178, %v3170
        %v4051 = vpack.c.b16 %v3179, %v3171
        %v4052 = vpack.c.b16 %v3180, %v3172
        %v4053 = vpack.c.b16 %v3189, %v3181
        %v4054 = vpack.c.b16 %v3190, %v3182
        %v4055 = vpack.c.b16 %v3191, %v3183
        %v4056 = vpack.c.b16 %v3192, %v3184
        %v4057 = vpack.c.b16 %v3193, %v3185
        %v4058 = vpack.c.b16 %v3194, %v3186
        %v4059 = vpack.c.b16 %v3195, %v3187
        %v4060 = vpack.c.b16 %v3196, %v3188
        %v4061 = vpack.c.b16 %v3205, %v3197
        %v4062 = vpack.c.b16 %v3206, %v3198
        %v4063 = vpack.c.b16 %v3207, %v3199
        %v4064 = vpack.c.b16 %v3208, %v3200
        %v4065 = vpack.c.b16 %v3209, %v3201
        %v4066 = vpack.c.b16 %v3210, %v3202
        %v4067 = vpack.c.b16 %v3211, %v3203
        %v4068 = vpack.c.b16 %v3212, %v3204
        %v4069 = vpack.c.b16 %v3221, %v3213
        %v4070 = vpack.c.b16 %v3222, %v3214
        %v4071 = vpack.c.b16 %v3223, %v3215
        %v4072 = vpack.c.b16 %v3224, %v3216
        %v4073 = vpack.c.b16 %v3225, %v3217
        %v4074 = vpack.c.b16 %v3226, %v3218
        %v4075 = vpack.c.b16 %v3227, %v3219
        %v4076 = vpack.c.b16 %v3228, %v3220
        %v4077 = vpack.c.b16 %v3237, %v3229
        %v4078 = vpack.c.b16 %v3238, %v3230
        %v4079 = vpack.c.b16 %v3239, %v3231
        %v4080 = vpack.c.b16 %v3240, %v3232
        %v4081 = vpack.c.b16 %v3241, %v3233
        %v4082 = vpack.c.b16 %v3242, %v3234
        %v4083 = vpack.c.b16 %v3243, %v3235
        %v4084 = vpack.c.b16 %v3244, %v3236
        %v4085 = vpack.c.b16 %v3253, %v3245
        %v4086 = vpack.c.b16 %v3254, %v3246
        %v4087 = vpack.c.b16 %v3255, %v3247
        %v4088 = vpack.c.b16 %v3256, %v3248
        %v4089 = vpack.c.b16 %v3257, %v3249
        %v4090 = vpack.c.b16 %v3258, %v3250
        %v4091 = vpack.c.b16 %v3259, %v3251
        %v4092 = vpack.c.b16 %v3260, %v3252
        %v4093 = vpack.c.b16 %v3269, %v3261
        %v4094 = vpack.c.b16 %v3270, %v3262
        %v4095 = vpack.c.b16 %v3271, %v3263
        %v4096 = vpack.c.b16 %v3272, %v3264
        %v4097 = vpack.c.b16 %v3273, %v3265
        %v4098 = vpack.c.b16 %v3274, %v3266
        %v4099 = vpack.c.b16 %v3275, %v3267
        %v4100 = vpack.c.b16 %v3276, %v3268
        %v4101 = vpack.c.b16 %v3285, %v3277
        %v4102 = vpack.c.b16 %v3286, %v3278
        %v4103 = vpack.c.b16 %v3287, %v3279
        %v4104 = vpack.c.b16 %v3288, %v3280
        %v4105 = vpack.c.b16 %v3289, %v3281
        %v4106 = vpack.c.b16 %v3290, %v3282
        %v4107 = vpack.c.b16 %v3291, %v3283
        %v4108 = vpack.c.b16 %v3292, %v3284
        %v4109 = vpack.c.b16 %v3301, %v3293
        %v4110 = vpack.c.b16 %v3302, %v3294
        %v4111 = vpack.c.b16 %v3303, %v3295
        %v4112 = vpack.c.b16 %v3304, %v3296
        %v4113 = vpack.c.b16 %v3305, %v3297
        %v4114 = vpack.c.b16 %v3306, %v3298
        %v4115 = vpack.c.b16 %v3307, %v3299
        %v4116 = vpack.c.b16 %v3308, %v3300
        %v4117 = vpack.c.b16 %v3317, %v3309
        %v4118 = vpack.c.b16 %v3318, %v3310
        %v4119 = vpack.c.b16 %v3319, %v3311
        %v4120 = vpack.c.b16 %v3320, %v3312
        %v4121 = vpack.c.b16 %v3321, %v3313
        %v4122 = vpack.c.b16 %v3322, %v3314
        %v4123 = vpack.c.b16 %v3323, %v3315
        %v4124 = vpack.c.b16 %v3324, %v3316
        %v4125 = vpack.c.b16 %v3333, %v3325
        %v4126 = vpack.c.b16 %v3334, %v3326
        %v4127 = vpack.c.b16 %v3335, %v3327
        %v4128 = vpack.c.b16 %v3336, %v3328
        %v4129 = vpack.c.b16 %v3337, %v3329
        %v4130 = vpack.c.b16 %v3338, %v3330
        %v4131 = vpack.c.b16 %v3339, %v3331
        %v4132 = vpack.c.b16 %v3340, %v3332
        %v4133 = vpack.c.b16 %v3349, %v3341
        %v4134 = vpack.c.b16 %v3350, %v3342
        %v4135 = vpack.c.b16 %v3351, %v3343
        %v4136 = vpack.c.b16 %v3352, %v3344
        %v4137 = vpack.c.b16 %v3353, %v3345
        %v4138 = vpack.c.b16 %v3354, %v3346
        %v4139 = vpack.c.b16 %v3355, %v3347
        %v4140 = vpack.c.b16 %v3356, %v3348
        %v4141 = vpack.c.b16 %v3365, %v3357
        %v4142 = vpack.c.b16 %v3366, %v3358
        %v4143 = vpack.c.b16 %v3367, %v3359
        %v4144 = vpack.c.b16 %v3368, %v3360
        %v4145 = vpack.c.b16 %v3369, %v3361
        %v4146 = vpack.c.b16 %v3370, %v3362
        %v4147 = vpack.c.b16 %v3371, %v3363
        %v4148 = vpack.c.b16 %v3372, %v3364
        %v4149 = vpack.c.b16 %v3381, %v3373
        %v4150 = vpack.c.b16 %v3382, %v3374
        %v4151 = vpack.c.b16 %v3383, %v3375
        %v4152 = vpack.c.b16 %v3384, %v3376
        %v4153 = vpack.c.b16 %v3385, %v3377
        %v4154 = vpack.c.b16 %v3386, %v3378
        %v4155 = vpack.c.b16 %v3387, %v3379
        %v4156 = vpack.c.b16 %v3388, %v3380
        %v4157 = vpack.c.b16 %v3397, %v3389
        %v4158 = vpack.c.b16 %v3398, %v3390
        %v4159 = vpack.c.b16 %v3399, %v3391
        %v4160 = vpack.c.b16 %v3400, %v3392
        %v4161 = vpack.c.b16 %v3401, %v3393
        %v4162 = vpack.c.b16 %v3402, %v3394
        %v4163 = vpack.c.b16 %v3403, %v3395
        %v4164 = vpack.c.b16 %v3404, %v3396
        %v4165 = vpack.c.b16 %v3413, %v3405
        %v4166 = vpack.c.b16 %v3414, %v3406
        %v4167 = vpack.c.b16 %v3415, %v3407
        %v4168 = vpack.c.b16 %v3416, %v3408
        %v4169 = vpack.c.b16 %v3417, %v3409
        %v4170 = vpack.c.b16 %v3418, %v3410
        %v4171 = vpack.c.b16 %v3419, %v3411
        %v4172 = vpack.c.b16 %v3420, %v3412
        %v4173 = vpack.c.b16 %v3429, %v3421
        %v4174 = vpack.c.b16 %v3430, %v3422
        %v4175 = vpack.c.b16 %v3431, %v3423
        %v4176 = vpack.c.b16 %v3432, %v3424
        %v4177 = vpack.c.b16 %v3433, %v3425
        %v4178 = vpack.c.b16 %v3434, %v3426
        %v4179 = vpack.c.b16 %v3435, %v3427
        %v4180 = vpack.c.b16 %v3436, %v3428
        %v4181 = vpack.c.b16 %v3445, %v3437
        %v4182 = vpack.c.b16 %v3446, %v3438
        %v4183 = vpack.c.b16 %v3447, %v3439
        %v4184 = vpack.c.b16 %v3448, %v3440
        %v4185 = vpack.c.b16 %v3449, %v3441
        %v4186 = vpack.c.b16 %v3450, %v3442
        %v4187 = vpack.c.b16 %v3451, %v3443
        %v4188 = vpack.c.b16 %v3452, %v3444
        %v4189 = vpack.c.b16 %v3461, %v3453
        %v4190 = vpack.c.b16 %v3462, %v3454
        %v4191 = vpack.c.b16 %v3463, %v3455
        %v4192 = vpack.c.b16 %v3464, %v3456
        %v4193 = vpack.c.b16 %v3465, %v3457
        %v4194 = vpack.c.b16 %v3466, %v3458
        %v4195 = vpack.c.b16 %v3467, %v3459
        %v4196 = vpack.c.b16 %v3468, %v3460
        %v4197 = vpack.c.b16 %v3477, %v3469
        %v4198 = vpack.c.b16 %v3478, %v3470
        %v4199 = vpack.c.b16 %v3479, %v3471
        %v4200 = vpack.c.b16 %v3480, %v3472
        %v4201 = vpack.c.b16 %v3481, %v3473
        %v4202 = vpack.c.b16 %v3482, %v3474
        %v4203 = vpack.c.b16 %v3483, %v3475
        %v4204 = vpack.c.b16 %v3484, %v3476
        %v4205 = vpack.c.b16 %v3493, %v3485
        %v4206 = vpack.c.b16 %v3494, %v3486
        %v4207 = vpack.c.b16 %v3495, %v3487
        %v4208 = vpack.c.b16 %v3496, %v3488
        %v4209 = vpack.c.b16 %v3497, %v3489
        %v4210 = vpack.c.b16 %v3498, %v3490
        %v4211 = vpack.c.b16 %v3499, %v3491
        %v4212 = vpack.c.b16 %v3500, %v3492
        %v4213 = vpack.c.b16 %v3509, %v3501
        %v4214 = vpack.c.b16 %v3510, %v3502
        %v4215 = vpack.c.b16 %v3511, %v3503
        %v4216 = vpack.c.b16 %v3512, %v3504
        %v4217 = vpack.c.b16 %v3513, %v3505
        %v4218 = vpack.c.b16 %v3514, %v3506
        %v4219 = vpack.c.b16 %v3515, %v3507
        %v4220 = vpack.c.b16 %v3516, %v3508
        %v4221 = vpack.c.b16 %v3525, %v3517
        %v4222 = vpack.c.b16 %v3526, %v3518
        %v4223 = vpack.c.b16 %v3527, %v3519
        %v4224 = vpack.c.b16 %v3528, %v3520
        %v4225 = vpack.c.b16 %v3529, %v3521
        %v4226 = vpack.c.b16 %v3530, %v3522
        %v4227 = vpack.c.b16 %v3531, %v3523
        %v4228 = vpack.c.b16 %v3532, %v3524
        %v4229 = vpack.c.b16 %v3541, %v3533
        %v4230 = vpack.c.b16 %v3542, %v3534
        %v4231 = vpack.c.b16 %v3543, %v3535
        %v4232 = vpack.c.b16 %v3544, %v3536
        %v4233 = vpack.c.b16 %v3545, %v3537
        %v4234 = vpack.c.b16 %v3546, %v3538
        %v4235 = vpack.c.b16 %v3547, %v3539
        %v4236 = vpack.c.b16 %v3548, %v3540
        %v4237 = vpack.c.b16 %v3557, %v3549
        %v4238 = vpack.c.b16 %v3558, %v3550
        %v4239 = vpack.c.b16 %v3559, %v3551
        %v4240 = vpack.c.b16 %v3560, %v3552
        %v4241 = vpack.c.b16 %v3561, %v3553
        %v4242 = vpack.c.b16 %v3562, %v3554
        %v4243 = vpack.c.b16 %v3563, %v3555
        %v4244 = vpack.c.b16 %v3564, %v3556
        %v4245 = vpack.c.b16 %v3573, %v3565
        %v4246 = vpack.c.b16 %v3574, %v3566
        %v4247 = vpack.c.b16 %v3575, %v3567
        %v4248 = vpack.c.b16 %v3576, %v3568
        %v4249 = vpack.c.b16 %v3577, %v3569
        %v4250 = vpack.c.b16 %v3578, %v3570
        %v4251 = vpack.c.b16 %v3579, %v3571
        %v4252 = vpack.c.b16 %v3580, %v3572
        %v4253 = vpack.c.b16 %v3589, %v3581
        %v4254 = vpack.c.b16 %v3590, %v3582
        %v4255 = vpack.c.b16 %v3591, %v3583
        %v4256 = vpack.c.b16 %v3592, %v3584
        %v4257 = vpack.c.b16 %v3593, %v3585
        %v4258 = vpack.c.b16 %v3594, %v3586
        %v4259 = vpack.c.b16 %v3595, %v3587
        %v4260 = vpack.c.b16 %v3596, %v3588
        %v4261 = vpack.c.b16 %v3605, %v3597
        %v4262 = vpack.c.b16 %v3606, %v3598
        %v4263 = vpack.c.b16 %v3607, %v3599
        %v4264 = vpack.c.b16 %v3608, %v3600
        %v4265 = vpack.c.b16 %v3609, %v3601
        %v4266 = vpack.c.b16 %v3610, %v3602
        %v4267 = vpack.c.b16 %v3611, %v3603
        %v4268 = vpack.c.b16 %v3612, %v3604
        %v4269 = vpack.c.b16 %v3621, %v3613
        %v4270 = vpack.c.b16 %v3622, %v3614
        %v4271 = vpack.c.b16 %v3623, %v3615
        %v4272 = vpack.c.b16 %v3624, %v3616
        %v4273 = vpack.c.b16 %v3625, %v3617
        %v4274 = vpack.c.b16 %v3626, %v3618
        %v4275 = vpack.c.b16 %v3627, %v3619
        %v4276 = vpack.c.b16 %v3628, %v3620
        %v4277 = vpack.c.b16 %v3637, %v3629
        %v4278 = vpack.c.b16 %v3638, %v3630
        %v4279 = vpack.c.b16 %v3639, %v3631
        %v4280 = vpack.c.b16 %v3640, %v3632
        %v4281 = vpack.c.b16 %v3641, %v3633
        %v4282 = vpack.c.b16 %v3642, %v3634
        %v4283 = vpack.c.b16 %v3643, %v3635
        %v4284 = vpack.c.b16 %v3644, %v3636
        %v4285 = vpack.c.b16 %v3653, %v3645
        %v4286 = vpack.c.b16 %v3654, %v3646
        %v4287 = vpack.c.b16 %v3655, %v3647
        %v4288 = vpack.c.b16 %v3656, %v3648
        %v4289 = vpack.c.b16 %v3657, %v3649
        %v4290 = vpack.c.b16 %v3658, %v3650
        %v4291 = vpack.c.b16 %v3659, %v3651
        %v4292 = vpack.c.b16 %v3660, %v3652
        %v4293 = vpack.c.b16 %v3669, %v3661
        %v4294 = vpack.c.b16 %v3670, %v3662
        %v4295 = vpack.c.b16 %v3671, %v3663
        %v4296 = vpack.c.b16 %v3672, %v3664
        %v4297 = vpack.c.b16 %v3673, %v3665
        %v4298 = vpack.c.b16 %v3674, %v3666
        %v4299 = vpack.c.b16 %v3675, %v3667
        %v4300 = vpack.c.b16 %v3676, %v3668
        %v4301 = vpack.c.b16 %v3685, %v3677
        %v4302 = vpack.c.b16 %v3686, %v3678
        %v4303 = vpack.c.b16 %v3687, %v3679
        %v4304 = vpack.c.b16 %v3688, %v3680
        %v4305 = vpack.c.b16 %v3689, %v3681
        %v4306 = vpack.c.b16 %v3690, %v3682
        %v4307 = vpack.c.b16 %v3691, %v3683
        %v4308 = vpack.c.b16 %v3692, %v3684
        %v4309 = vpack.c.b16 %v3701, %v3693
        %v4310 = vpack.c.b16 %v3702, %v3694
        %v4311 = vpack.c.b16 %v3703, %v3695
        %v4312 = vpack.c.b16 %v3704, %v3696
        %v4313 = vpack.c.b16 %v3705, %v3697
        %v4314 = vpack.c.b16 %v3706, %v3698
        %v4315 = vpack.c.b16 %v3707, %v3699
        %v4316 = vpack.c.b16 %v3708, %v3700
        %v4317 = vpack.c.b16 %v3717, %v3709
        %v4318 = vpack.c.b16 %v3718, %v3710
        %v4319 = vpack.c.b16 %v3719, %v3711
        %v4320 = vpack.c.b16 %v3720, %v3712
        %v4321 = vpack.c.b16 %v3721, %v3713
        %v4322 = vpack.c.b16 %v3722, %v3714
        %v4323 = vpack.c.b16 %v3723, %v3715
        %v4324 = vpack.c.b16 %v3724, %v3716
        %v4325 = vpack.c.b16 %v3733, %v3725
        %v4326 = vpack.c.b16 %v3734, %v3726
        %v4327 = vpack.c.b16 %v3735, %v3727
        %v4328 = vpack.c.b16 %v3736, %v3728
        %v4329 = vpack.c.b16 %v3737, %v3729
        %v4330 = vpack.c.b16 %v3738, %v3730
        %v4331 = vpack.c.b16 %v3739, %v3731
        %v4332 = vpack.c.b16 %v3740, %v3732
        %v4333 = vpack.c.b16 %v3749, %v3741
        %v4334 = vpack.c.b16 %v3750, %v3742
        %v4335 = vpack.c.b16 %v3751, %v3743
        %v4336 = vpack.c.b16 %v3752, %v3744
        %v4337 = vpack.c.b16 %v3753, %v3745
        %v4338 = vpack.c.b16 %v3754, %v3746
        %v4339 = vpack.c.b16 %v3755, %v3747
        %v4340 = vpack.c.b16 %v3756, %v3748
        %v4341 = vpack.c.b16 %v3765, %v3757
        %v4342 = vpack.c.b16 %v3766, %v3758
        %v4343 = vpack.c.b16 %v3767, %v3759
        %v4344 = vpack.c.b16 %v3768, %v3760
        %v4345 = vpack.c.b16 %v3769, %v3761
        %v4346 = vpack.c.b16 %v3770, %v3762
        %v4347 = vpack.c.b16 %v3771, %v3763
        %v4348 = vpack.c.b16 %v3772, %v3764
        %v4349 = vpack.c.b16 %v3781, %v3773
        %v4350 = vpack.c.b16 %v3782, %v3774
        %v4351 = vpack.c.b16 %v3783, %v3775
        %v4352 = vpack.c.b16 %v3784, %v3776
        %v4353 = vpack.c.b16 %v3785, %v3777
        %v4354 = vpack.c.b16 %v3786, %v3778
        %v4355 = vpack.c.b16 %v3787, %v3779
        %v4356 = vpack.c.b16 %v3788, %v3780
        %v4357 = vpack.c.b16 %v3797, %v3789
        %v4358 = vpack.c.b16 %v3798, %v3790
        %v4359 = vpack.c.b16 %v3799, %v3791
        %v4360 = vpack.c.b16 %v3800, %v3792
        %v4361 = vpack.c.b16 %v3801, %v3793
        %v4362 = vpack.c.b16 %v3802, %v3794
        %v4363 = vpack.c.b16 %v3803, %v3795
        %v4364 = vpack.c.b16 %v3804, %v3796
        %v4365 = vpack.c.b16 %v3813, %v3805
        %v4366 = vpack.c.b16 %v3814, %v3806
        %v4367 = vpack.c.b16 %v3815, %v3807
        %v4368 = vpack.c.b16 %v3816, %v3808
        %v4369 = vpack.c.b16 %v3817, %v3809
        %v4370 = vpack.c.b16 %v3818, %v3810
        %v4371 = vpack.c.b16 %v3819, %v3811
        %v4372 = vpack.c.b16 %v3820, %v3812
        %v4373 = vpack.c.b16 %v3829, %v3821
        %v4374 = vpack.c.b16 %v3830, %v3822
        %v4375 = vpack.c.b16 %v3831, %v3823
        %v4376 = vpack.c.b16 %v3832, %v3824
        %v4377 = vpack.c.b16 %v3833, %v3825
        %v4378 = vpack.c.b16 %v3834, %v3826
        %v4379 = vpack.c.b16 %v3835, %v3827
        %v4380 = vpack.c.b16 %v3836, %v3828
        %v4381 = vpack.c.b16 %v3845, %v3837
        %v4382 = vpack.c.b16 %v3846, %v3838
        %v4383 = vpack.c.b16 %v3847, %v3839
        %v4384 = vpack.c.b16 %v3848, %v3840
        %v4385 = vpack.c.b16 %v3849, %v3841
        %v4386 = vpack.c.b16 %v3850, %v3842
        %v4387 = vpack.c.b16 %v3851, %v3843
        %v4388 = vpack.c.b16 %v3852, %v3844
        %v4389 = vpack.c.b16 %v3861, %v3853
        %v4390 = vpack.c.b16 %v3862, %v3854
        %v4391 = vpack.c.b16 %v3863, %v3855
        %v4392 = vpack.c.b16 %v3864, %v3856
        %v4393 = vpack.c.b16 %v3865, %v3857
        %v4394 = vpack.c.b16 %v3866, %v3858
        %v4395 = vpack.c.b16 %v3867, %v3859
        %v4396 = vpack.c.b16 %v3868, %v3860
        %v4397 = vpack.c.b16 %v3877, %v3869
        %v4398 = vpack.c.b16 %v3878, %v3870
        %v4399 = vpack.c.b16 %v3879, %v3871
        %v4400 = vpack.c.b16 %v3880, %v3872
        %v4401 = vpack.c.b16 %v3881, %v3873
        %v4402 = vpack.c.b16 %v3882, %v3874
        %v4403 = vpack.c.b16 %v3883, %v3875
        %v4404 = vpack.c.b16 %v3884, %v3876
        %v4405 = vpack.c.b16 %v3893, %v3885
        %v4406 = vpack.c.b16 %v3894, %v3886
        %v4407 = vpack.c.b16 %v3895, %v3887
        %v4408 = vpack.c.b16 %v3896, %v3888
        %v4409 = vpack.c.b16 %v3897, %v3889
        %v4410 = vpack.c.b16 %v3898, %v3890
        %v4411 = vpack.c.b16 %v3899, %v3891
        %v4412 = vpack.c.b16 %v3900, %v3892
        %4925 = vmatpush.bf16.msra.mxu0 %v3957
        %4926 = vmatpush.bf16.msra.mxu0 %v3949
        %4927 = vmatpush.bf16.msra.mxu0 %v3941
        %4928 = vmatpush.bf16.msra.mxu0 %v3933
        %4929 = vmatpush.bf16.msra.mxu0 %v3925
        %4930 = vmatpush.bf16.msra.mxu0 %v3917
        %4931 = vmatpush.bf16.msra.mxu0 %v3909
        %4932 = vmatpush.bf16.msra.mxu0 %v3901
        %4933 = vmatmul.bf16.gmra.mxu0 %v1827
        %v4934 = vpop.f32.mrf.mxu0
        %v4935 = vadd.f32 %v2349, %v4934
        %v4936 = vpop.f32.mrf.mxu0
        %4937 = vdwg.mxu0
        %4938 = vmatpush.bf16.msra.mxu0 %v4021
        %4939 = vmatpush.bf16.msra.mxu0 %v4013
        %4940 = vmatpush.bf16.msra.mxu0 %v4005
        %4941 = vmatpush.bf16.msra.mxu0 %v3997
        %4942 = vmatpush.bf16.msra.mxu0 %v3989
        %4943 = vmatpush.bf16.msra.mxu0 %v3981
        %4944 = vmatpush.bf16.msra.mxu0 %v3973
        %4945 = vmatpush.bf16.msra.mxu0 %v3965
        %4946 = vmatmul.bf16.gmra.mxu0 %v1828
        %v4947 = vpop.f32.mrf.mxu0
        %v4948 = vadd.f32 %v4935, %v4947
        %v4949 = vpop.f32.mrf.mxu0
        %4950 = vdwg.mxu0
        %4951 = vmatpush.bf16.msra.mxu0 %v4085
        %4952 = vmatpush.bf16.msra.mxu0 %v4077
        %4953 = vmatpush.bf16.msra.mxu0 %v4069
        %4954 = vmatpush.bf16.msra.mxu0 %v4061
        %4955 = vmatpush.bf16.msra.mxu0 %v4053
        %4956 = vmatpush.bf16.msra.mxu0 %v4045
        %4957 = vmatpush.bf16.msra.mxu0 %v4037
        %4958 = vmatpush.bf16.msra.mxu0 %v4029
        %4959 = vmatmul.bf16.gmra.mxu0 %v1829
        %v4960 = vpop.f32.mrf.mxu0
        %v4961 = vadd.f32 %v4948, %v4960
        %v4962 = vpop.f32.mrf.mxu0
        %4963 = vdwg.mxu0
        %4964 = vmatpush.bf16.msra.mxu0 %v4149
        %4965 = vmatpush.bf16.msra.mxu0 %v4141
        %4966 = vmatpush.bf16.msra.mxu0 %v4133
        %4967 = vmatpush.bf16.msra.mxu0 %v4125
        %4968 = vmatpush.bf16.msra.mxu0 %v4117
        %4969 = vmatpush.bf16.msra.mxu0 %v4109
        %4970 = vmatpush.bf16.msra.mxu0 %v4101
        %4971 = vmatpush.bf16.msra.mxu0 %v4093
        %4972 = vmatmul.bf16.gmra.mxu0 %v1830
        %v4973 = vpop.f32.mrf.mxu0
        %v4974 = vadd.f32 %v4961, %v4973
        %v4975 = vpop.f32.mrf.mxu0
        %4976 = vdwg.mxu0
        %4977 = vmatpush.bf16.msra.mxu0 %v4213
        %4978 = vmatpush.bf16.msra.mxu0 %v4205
        %4979 = vmatpush.bf16.msra.mxu0 %v4197
        %4980 = vmatpush.bf16.msra.mxu0 %v4189
        %4981 = vmatpush.bf16.msra.mxu0 %v4181
        %4982 = vmatpush.bf16.msra.mxu0 %v4173
        %4983 = vmatpush.bf16.msra.mxu0 %v4165
        %4984 = vmatpush.bf16.msra.mxu0 %v4157
        %4985 = vmatmul.bf16.gmra.mxu0 %v1831
        %v4986 = vpop.f32.mrf.mxu0
        %v4987 = vadd.f32 %v4974, %v4986
        %v4988 = vpop.f32.mrf.mxu0
        %4989 = vdwg.mxu0
        %4990 = vmatpush.bf16.msra.mxu0 %v4277
        %4991 = vmatpush.bf16.msra.mxu0 %v4269
        %4992 = vmatpush.bf16.msra.mxu0 %v4261
        %4993 = vmatpush.bf16.msra.mxu0 %v4253
        %4994 = vmatpush.bf16.msra.mxu0 %v4245
        %4995 = vmatpush.bf16.msra.mxu0 %v4237
        %4996 = vmatpush.bf16.msra.mxu0 %v4229
        %4997 = vmatpush.bf16.msra.mxu0 %v4221
        %4998 = vmatmul.bf16.gmra.mxu0 %v1832
        %v4999 = vpop.f32.mrf.mxu0
        %v5000 = vadd.f32 %v4987, %v4999
        %v5001 = vpop.f32.mrf.mxu0
        %5002 = vdwg.mxu0
        %5003 = vmatpush.bf16.msra.mxu0 %v4341
        %5004 = vmatpush.bf16.msra.mxu0 %v4333
        %5005 = vmatpush.bf16.msra.mxu0 %v4325
        %5006 = vmatpush.bf16.msra.mxu0 %v4317
        %5007 = vmatpush.bf16.msra.mxu0 %v4309
        %5008 = vmatpush.bf16.msra.mxu0 %v4301
        %5009 = vmatpush.bf16.msra.mxu0 %v4293
        %5010 = vmatpush.bf16.msra.mxu0 %v4285
        %5011 = vmatmul.bf16.gmra.mxu0 %v1833
        %v5012 = vpop.f32.mrf.mxu0
        %v5013 = vadd.f32 %v5000, %v5012
        %v5014 = vpop.f32.mrf.mxu0
        %5015 = vdwg.mxu0
        %5016 = vmatpush.bf16.msra.mxu0 %v4405
        %5017 = vmatpush.bf16.msra.mxu0 %v4397
        %5018 = vmatpush.bf16.msra.mxu0 %v4389
        %5019 = vmatpush.bf16.msra.mxu0 %v4381
        %5020 = vmatpush.bf16.msra.mxu0 %v4373
        %5021 = vmatpush.bf16.msra.mxu0 %v4365
        %5022 = vmatpush.bf16.msra.mxu0 %v4357
        %5023 = vmatpush.bf16.msra.mxu0 %v4349
        %5024 = vmatmul.bf16.gmra.mxu0 %v1834
        %v5025 = vpop.f32.mrf.mxu0
        %v5026 = vadd.f32 %v5013, %v5025
        %v5027 = vpop.f32.mrf.mxu0
        %5028 = vdwg.mxu0
        %5029 = vmatpush.bf16.msra.mxu0 %v3958
        %5030 = vmatpush.bf16.msra.mxu0 %v3950
        %5031 = vmatpush.bf16.msra.mxu0 %v3942
        %5032 = vmatpush.bf16.msra.mxu0 %v3934
        %5033 = vmatpush.bf16.msra.mxu0 %v3926
        %5034 = vmatpush.bf16.msra.mxu0 %v3918
        %5035 = vmatpush.bf16.msra.mxu0 %v3910
        %5036 = vmatpush.bf16.msra.mxu0 %v3902
        %5037 = vmatmul.bf16.gmra.mxu0 %v1827
        %v5038 = vpop.f32.mrf.mxu0
        %v5039 = vadd.f32 %v2350, %v5038
        %v5040 = vpop.f32.mrf.mxu0
        %5041 = vdwg.mxu0
        %5042 = vmatpush.bf16.msra.mxu0 %v4022
        %5043 = vmatpush.bf16.msra.mxu0 %v4014
        %5044 = vmatpush.bf16.msra.mxu0 %v4006
        %5045 = vmatpush.bf16.msra.mxu0 %v3998
        %5046 = vmatpush.bf16.msra.mxu0 %v3990
        %5047 = vmatpush.bf16.msra.mxu0 %v3982
        %5048 = vmatpush.bf16.msra.mxu0 %v3974
        %5049 = vmatpush.bf16.msra.mxu0 %v3966
        %5050 = vmatmul.bf16.gmra.mxu0 %v1828
        %v5051 = vpop.f32.mrf.mxu0
        %v5052 = vadd.f32 %v5039, %v5051
        %v5053 = vpop.f32.mrf.mxu0
        %5054 = vdwg.mxu0
        %5055 = vmatpush.bf16.msra.mxu0 %v4086
        %5056 = vmatpush.bf16.msra.mxu0 %v4078
        %5057 = vmatpush.bf16.msra.mxu0 %v4070
        %5058 = vmatpush.bf16.msra.mxu0 %v4062
        %5059 = vmatpush.bf16.msra.mxu0 %v4054
        %5060 = vmatpush.bf16.msra.mxu0 %v4046
        %5061 = vmatpush.bf16.msra.mxu0 %v4038
        %5062 = vmatpush.bf16.msra.mxu0 %v4030
        %5063 = vmatmul.bf16.gmra.mxu0 %v1829
        %v5064 = vpop.f32.mrf.mxu0
        %v5065 = vadd.f32 %v5052, %v5064
        %v5066 = vpop.f32.mrf.mxu0
        %5067 = vdwg.mxu0
        %5068 = vmatpush.bf16.msra.mxu0 %v4150
        %5069 = vmatpush.bf16.msra.mxu0 %v4142
        %5070 = vmatpush.bf16.msra.mxu0 %v4134
        %5071 = vmatpush.bf16.msra.mxu0 %v4126
        %5072 = vmatpush.bf16.msra.mxu0 %v4118
        %5073 = vmatpush.bf16.msra.mxu0 %v4110
        %5074 = vmatpush.bf16.msra.mxu0 %v4102
        %5075 = vmatpush.bf16.msra.mxu0 %v4094
        %5076 = vmatmul.bf16.gmra.mxu0 %v1830
        %v5077 = vpop.f32.mrf.mxu0
        %v5078 = vadd.f32 %v5065, %v5077
        %v5079 = vpop.f32.mrf.mxu0
        %5080 = vdwg.mxu0
        %5081 = vmatpush.bf16.msra.mxu0 %v4214
        %5082 = vmatpush.bf16.msra.mxu0 %v4206
        %5083 = vmatpush.bf16.msra.mxu0 %v4198
        %5084 = vmatpush.bf16.msra.mxu0 %v4190
        %5085 = vmatpush.bf16.msra.mxu0 %v4182
        %5086 = vmatpush.bf16.msra.mxu0 %v4174
        %5087 = vmatpush.bf16.msra.mxu0 %v4166
        %5088 = vmatpush.bf16.msra.mxu0 %v4158
        %5089 = vmatmul.bf16.gmra.mxu0 %v1831
        %v5090 = vpop.f32.mrf.mxu0
        %v5091 = vadd.f32 %v5078, %v5090
        %v5092 = vpop.f32.mrf.mxu0
        %5093 = vdwg.mxu0
        %5094 = vmatpush.bf16.msra.mxu0 %v4278
        %5095 = vmatpush.bf16.msra.mxu0 %v4270
        %5096 = vmatpush.bf16.msra.mxu0 %v4262
        %5097 = vmatpush.bf16.msra.mxu0 %v4254
        %5098 = vmatpush.bf16.msra.mxu0 %v4246
        %5099 = vmatpush.bf16.msra.mxu0 %v4238
        %5100 = vmatpush.bf16.msra.mxu0 %v4230
        %5101 = vmatpush.bf16.msra.mxu0 %v4222
        %5102 = vmatmul.bf16.gmra.mxu0 %v1832
        %v5103 = vpop.f32.mrf.mxu0
        %v5104 = vadd.f32 %v5091, %v5103
        %v5105 = vpop.f32.mrf.mxu0
        %5106 = vdwg.mxu0
        %5107 = vmatpush.bf16.msra.mxu0 %v4342
        %5108 = vmatpush.bf16.msra.mxu0 %v4334
        %5109 = vmatpush.bf16.msra.mxu0 %v4326
        %5110 = vmatpush.bf16.msra.mxu0 %v4318
        %5111 = vmatpush.bf16.msra.mxu0 %v4310
        %5112 = vmatpush.bf16.msra.mxu0 %v4302
        %5113 = vmatpush.bf16.msra.mxu0 %v4294
        %5114 = vmatpush.bf16.msra.mxu0 %v4286
        %5115 = vmatmul.bf16.gmra.mxu0 %v1833
        %v5116 = vpop.f32.mrf.mxu0
        %v5117 = vadd.f32 %v5104, %v5116
        %v5118 = vpop.f32.mrf.mxu0
        %5119 = vdwg.mxu0
        %5120 = vmatpush.bf16.msra.mxu0 %v4406
        %5121 = vmatpush.bf16.msra.mxu0 %v4398
        %5122 = vmatpush.bf16.msra.mxu0 %v4390
        %5123 = vmatpush.bf16.msra.mxu0 %v4382
        %5124 = vmatpush.bf16.msra.mxu0 %v4374
        %5125 = vmatpush.bf16.msra.mxu0 %v4366
        %5126 = vmatpush.bf16.msra.mxu0 %v4358
        %5127 = vmatpush.bf16.msra.mxu0 %v4350
        %5128 = vmatmul.bf16.gmra.mxu0 %v1834
        %v5129 = vpop.f32.mrf.mxu0
        %v5130 = vadd.f32 %v5117, %v5129
        %v5131 = vpop.f32.mrf.mxu0
        %5132 = vdwg.mxu0
        %5133 = vmatpush.bf16.msra.mxu0 %v3959
        %5134 = vmatpush.bf16.msra.mxu0 %v3951
        %5135 = vmatpush.bf16.msra.mxu0 %v3943
        %5136 = vmatpush.bf16.msra.mxu0 %v3935
        %5137 = vmatpush.bf16.msra.mxu0 %v3927
        %5138 = vmatpush.bf16.msra.mxu0 %v3919
        %5139 = vmatpush.bf16.msra.mxu0 %v3911
        %5140 = vmatpush.bf16.msra.mxu0 %v3903
        %5141 = vmatmul.bf16.gmra.mxu0 %v1827
        %v5142 = vpop.f32.mrf.mxu0
        %v5143 = vadd.f32 %v2351, %v5142
        %v5144 = vpop.f32.mrf.mxu0
        %5145 = vdwg.mxu0
        %5146 = vmatpush.bf16.msra.mxu0 %v4023
        %5147 = vmatpush.bf16.msra.mxu0 %v4015
        %5148 = vmatpush.bf16.msra.mxu0 %v4007
        %5149 = vmatpush.bf16.msra.mxu0 %v3999
        %5150 = vmatpush.bf16.msra.mxu0 %v3991
        %5151 = vmatpush.bf16.msra.mxu0 %v3983
        %5152 = vmatpush.bf16.msra.mxu0 %v3975
        %5153 = vmatpush.bf16.msra.mxu0 %v3967
        %5154 = vmatmul.bf16.gmra.mxu0 %v1828
        %v5155 = vpop.f32.mrf.mxu0
        %v5156 = vadd.f32 %v5143, %v5155
        %v5157 = vpop.f32.mrf.mxu0
        %5158 = vdwg.mxu0
        %5159 = vmatpush.bf16.msra.mxu0 %v4087
        %5160 = vmatpush.bf16.msra.mxu0 %v4079
        %5161 = vmatpush.bf16.msra.mxu0 %v4071
        %5162 = vmatpush.bf16.msra.mxu0 %v4063
        %5163 = vmatpush.bf16.msra.mxu0 %v4055
        %5164 = vmatpush.bf16.msra.mxu0 %v4047
        %5165 = vmatpush.bf16.msra.mxu0 %v4039
        %5166 = vmatpush.bf16.msra.mxu0 %v4031
        %5167 = vmatmul.bf16.gmra.mxu0 %v1829
        %v5168 = vpop.f32.mrf.mxu0
        %v5169 = vadd.f32 %v5156, %v5168
        %v5170 = vpop.f32.mrf.mxu0
        %5171 = vdwg.mxu0
        %5172 = vmatpush.bf16.msra.mxu0 %v4151
        %5173 = vmatpush.bf16.msra.mxu0 %v4143
        %5174 = vmatpush.bf16.msra.mxu0 %v4135
        %5175 = vmatpush.bf16.msra.mxu0 %v4127
        %5176 = vmatpush.bf16.msra.mxu0 %v4119
        %5177 = vmatpush.bf16.msra.mxu0 %v4111
        %5178 = vmatpush.bf16.msra.mxu0 %v4103
        %5179 = vmatpush.bf16.msra.mxu0 %v4095
        %5180 = vmatmul.bf16.gmra.mxu0 %v1830
        %v5181 = vpop.f32.mrf.mxu0
        %v5182 = vadd.f32 %v5169, %v5181
        %v5183 = vpop.f32.mrf.mxu0
        %5184 = vdwg.mxu0
        %5185 = vmatpush.bf16.msra.mxu0 %v4215
        %5186 = vmatpush.bf16.msra.mxu0 %v4207
        %5187 = vmatpush.bf16.msra.mxu0 %v4199
        %5188 = vmatpush.bf16.msra.mxu0 %v4191
        %5189 = vmatpush.bf16.msra.mxu0 %v4183
        %5190 = vmatpush.bf16.msra.mxu0 %v4175
        %5191 = vmatpush.bf16.msra.mxu0 %v4167
        %5192 = vmatpush.bf16.msra.mxu0 %v4159
        %5193 = vmatmul.bf16.gmra.mxu0 %v1831
        %v5194 = vpop.f32.mrf.mxu0
        %v5195 = vadd.f32 %v5182, %v5194
        %v5196 = vpop.f32.mrf.mxu0
        %5197 = vdwg.mxu0
        %5198 = vmatpush.bf16.msra.mxu0 %v4279
        %5199 = vmatpush.bf16.msra.mxu0 %v4271
        %5200 = vmatpush.bf16.msra.mxu0 %v4263
        %5201 = vmatpush.bf16.msra.mxu0 %v4255
        %5202 = vmatpush.bf16.msra.mxu0 %v4247
        %5203 = vmatpush.bf16.msra.mxu0 %v4239
        %5204 = vmatpush.bf16.msra.mxu0 %v4231
        %5205 = vmatpush.bf16.msra.mxu0 %v4223
        %5206 = vmatmul.bf16.gmra.mxu0 %v1832
        %v5207 = vpop.f32.mrf.mxu0
        %v5208 = vadd.f32 %v5195, %v5207
        %v5209 = vpop.f32.mrf.mxu0
        %5210 = vdwg.mxu0
        %5211 = vmatpush.bf16.msra.mxu0 %v4343
        %5212 = vmatpush.bf16.msra.mxu0 %v4335
        %5213 = vmatpush.bf16.msra.mxu0 %v4327
        %5214 = vmatpush.bf16.msra.mxu0 %v4319
        %5215 = vmatpush.bf16.msra.mxu0 %v4311
        %5216 = vmatpush.bf16.msra.mxu0 %v4303
        %5217 = vmatpush.bf16.msra.mxu0 %v4295
        %5218 = vmatpush.bf16.msra.mxu0 %v4287
        %5219 = vmatmul.bf16.gmra.mxu0 %v1833
        %v5220 = vpop.f32.mrf.mxu0
        %v5221 = vadd.f32 %v5208, %v5220
        %v5222 = vpop.f32.mrf.mxu0
        %5223 = vdwg.mxu0
        %5224 = vmatpush.bf16.msra.mxu0 %v4407
        %5225 = vmatpush.bf16.msra.mxu0 %v4399
        %5226 = vmatpush.bf16.msra.mxu0 %v4391
        %5227 = vmatpush.bf16.msra.mxu0 %v4383
        %5228 = vmatpush.bf16.msra.mxu0 %v4375
        %5229 = vmatpush.bf16.msra.mxu0 %v4367
        %5230 = vmatpush.bf16.msra.mxu0 %v4359
        %5231 = vmatpush.bf16.msra.mxu0 %v4351
        %5232 = vmatmul.bf16.gmra.mxu0 %v1834
        %v5233 = vpop.f32.mrf.mxu0
        %v5234 = vadd.f32 %v5221, %v5233
        %v5235 = vpop.f32.mrf.mxu0
        %5236 = vdwg.mxu0
        %5237 = vmatpush.bf16.msra.mxu0 %v3960
        %5238 = vmatpush.bf16.msra.mxu0 %v3952
        %5239 = vmatpush.bf16.msra.mxu0 %v3944
        %5240 = vmatpush.bf16.msra.mxu0 %v3936
        %5241 = vmatpush.bf16.msra.mxu0 %v3928
        %5242 = vmatpush.bf16.msra.mxu0 %v3920
        %5243 = vmatpush.bf16.msra.mxu0 %v3912
        %5244 = vmatpush.bf16.msra.mxu0 %v3904
        %5245 = vmatmul.bf16.gmra.mxu0 %v1827
        %v5246 = vpop.f32.mrf.mxu0
        %v5247 = vadd.f32 %v2352, %v5246
        %v5248 = vpop.f32.mrf.mxu0
        %5249 = vdwg.mxu0
        %5250 = vmatpush.bf16.msra.mxu0 %v4024
        %5251 = vmatpush.bf16.msra.mxu0 %v4016
        %5252 = vmatpush.bf16.msra.mxu0 %v4008
        %5253 = vmatpush.bf16.msra.mxu0 %v4000
        %5254 = vmatpush.bf16.msra.mxu0 %v3992
        %5255 = vmatpush.bf16.msra.mxu0 %v3984
        %5256 = vmatpush.bf16.msra.mxu0 %v3976
        %5257 = vmatpush.bf16.msra.mxu0 %v3968
        %5258 = vmatmul.bf16.gmra.mxu0 %v1828
        %v5259 = vpop.f32.mrf.mxu0
        %v5260 = vadd.f32 %v5247, %v5259
        %v5261 = vpop.f32.mrf.mxu0
        %5262 = vdwg.mxu0
        %5263 = vmatpush.bf16.msra.mxu0 %v4088
        %5264 = vmatpush.bf16.msra.mxu0 %v4080
        %5265 = vmatpush.bf16.msra.mxu0 %v4072
        %5266 = vmatpush.bf16.msra.mxu0 %v4064
        %5267 = vmatpush.bf16.msra.mxu0 %v4056
        %5268 = vmatpush.bf16.msra.mxu0 %v4048
        %5269 = vmatpush.bf16.msra.mxu0 %v4040
        %5270 = vmatpush.bf16.msra.mxu0 %v4032
        %5271 = vmatmul.bf16.gmra.mxu0 %v1829
        %v5272 = vpop.f32.mrf.mxu0
        %v5273 = vadd.f32 %v5260, %v5272
        %v5274 = vpop.f32.mrf.mxu0
        %5275 = vdwg.mxu0
        %5276 = vmatpush.bf16.msra.mxu0 %v4152
        %5277 = vmatpush.bf16.msra.mxu0 %v4144
        %5278 = vmatpush.bf16.msra.mxu0 %v4136
        %5279 = vmatpush.bf16.msra.mxu0 %v4128
        %5280 = vmatpush.bf16.msra.mxu0 %v4120
        %5281 = vmatpush.bf16.msra.mxu0 %v4112
        %5282 = vmatpush.bf16.msra.mxu0 %v4104
        %5283 = vmatpush.bf16.msra.mxu0 %v4096
        %5284 = vmatmul.bf16.gmra.mxu0 %v1830
        %v5285 = vpop.f32.mrf.mxu0
        %v5286 = vadd.f32 %v5273, %v5285
        %v5287 = vpop.f32.mrf.mxu0
        %5288 = vdwg.mxu0
        %5289 = vmatpush.bf16.msra.mxu0 %v4216
        %5290 = vmatpush.bf16.msra.mxu0 %v4208
        %5291 = vmatpush.bf16.msra.mxu0 %v4200
        %5292 = vmatpush.bf16.msra.mxu0 %v4192
        %5293 = vmatpush.bf16.msra.mxu0 %v4184
        %5294 = vmatpush.bf16.msra.mxu0 %v4176
        %5295 = vmatpush.bf16.msra.mxu0 %v4168
        %5296 = vmatpush.bf16.msra.mxu0 %v4160
        %5297 = vmatmul.bf16.gmra.mxu0 %v1831
        %v5298 = vpop.f32.mrf.mxu0
        %v5299 = vadd.f32 %v5286, %v5298
        %v5300 = vpop.f32.mrf.mxu0
        %5301 = vdwg.mxu0
        %5302 = vmatpush.bf16.msra.mxu0 %v4280
        %5303 = vmatpush.bf16.msra.mxu0 %v4272
        %5304 = vmatpush.bf16.msra.mxu0 %v4264
        %5305 = vmatpush.bf16.msra.mxu0 %v4256
        %5306 = vmatpush.bf16.msra.mxu0 %v4248
        %5307 = vmatpush.bf16.msra.mxu0 %v4240
        %5308 = vmatpush.bf16.msra.mxu0 %v4232
        %5309 = vmatpush.bf16.msra.mxu0 %v4224
        %5310 = vmatmul.bf16.gmra.mxu0 %v1832
        %v5311 = vpop.f32.mrf.mxu0
        %v5312 = vadd.f32 %v5299, %v5311
        %v5313 = vpop.f32.mrf.mxu0
        %5314 = vdwg.mxu0
        %5315 = vmatpush.bf16.msra.mxu0 %v4344
        %5316 = vmatpush.bf16.msra.mxu0 %v4336
        %5317 = vmatpush.bf16.msra.mxu0 %v4328
        %5318 = vmatpush.bf16.msra.mxu0 %v4320
        %5319 = vmatpush.bf16.msra.mxu0 %v4312
        %5320 = vmatpush.bf16.msra.mxu0 %v4304
        %5321 = vmatpush.bf16.msra.mxu0 %v4296
        %5322 = vmatpush.bf16.msra.mxu0 %v4288
        %5323 = vmatmul.bf16.gmra.mxu0 %v1833
        %v5324 = vpop.f32.mrf.mxu0
        %v5325 = vadd.f32 %v5312, %v5324
        %v5326 = vpop.f32.mrf.mxu0
        %5327 = vdwg.mxu0
        %5328 = vmatpush.bf16.msra.mxu0 %v4408
        %5329 = vmatpush.bf16.msra.mxu0 %v4400
        %5330 = vmatpush.bf16.msra.mxu0 %v4392
        %5331 = vmatpush.bf16.msra.mxu0 %v4384
        %5332 = vmatpush.bf16.msra.mxu0 %v4376
        %5333 = vmatpush.bf16.msra.mxu0 %v4368
        %5334 = vmatpush.bf16.msra.mxu0 %v4360
        %5335 = vmatpush.bf16.msra.mxu0 %v4352
        %5336 = vmatmul.bf16.gmra.mxu0 %v1834
        %v5337 = vpop.f32.mrf.mxu0
        %v5338 = vadd.f32 %v5325, %v5337
        %v5339 = vpop.f32.mrf.mxu0
        %5340 = vdwg.mxu0
        %5341 = vmatpush.bf16.msra.mxu0 %v3961
        %5342 = vmatpush.bf16.msra.mxu0 %v3953
        %5343 = vmatpush.bf16.msra.mxu0 %v3945
        %5344 = vmatpush.bf16.msra.mxu0 %v3937
        %5345 = vmatpush.bf16.msra.mxu0 %v3929
        %5346 = vmatpush.bf16.msra.mxu0 %v3921
        %5347 = vmatpush.bf16.msra.mxu0 %v3913
        %5348 = vmatpush.bf16.msra.mxu0 %v3905
        %5349 = vmatmul.bf16.gmra.mxu0 %v1827
        %v5350 = vpop.f32.mrf.mxu0
        %v5351 = vadd.f32 %v2353, %v5350
        %v5352 = vpop.f32.mrf.mxu0
        %5353 = vdwg.mxu0
        %5354 = vmatpush.bf16.msra.mxu0 %v4025
        %5355 = vmatpush.bf16.msra.mxu0 %v4017
        %5356 = vmatpush.bf16.msra.mxu0 %v4009
        %5357 = vmatpush.bf16.msra.mxu0 %v4001
        %5358 = vmatpush.bf16.msra.mxu0 %v3993
        %5359 = vmatpush.bf16.msra.mxu0 %v3985
        %5360 = vmatpush.bf16.msra.mxu0 %v3977
        %5361 = vmatpush.bf16.msra.mxu0 %v3969
        %5362 = vmatmul.bf16.gmra.mxu0 %v1828
        %v5363 = vpop.f32.mrf.mxu0
        %v5364 = vadd.f32 %v5351, %v5363
        %v5365 = vpop.f32.mrf.mxu0
        %5366 = vdwg.mxu0
        %5367 = vmatpush.bf16.msra.mxu0 %v4089
        %5368 = vmatpush.bf16.msra.mxu0 %v4081
        %5369 = vmatpush.bf16.msra.mxu0 %v4073
        %5370 = vmatpush.bf16.msra.mxu0 %v4065
        %5371 = vmatpush.bf16.msra.mxu0 %v4057
        %5372 = vmatpush.bf16.msra.mxu0 %v4049
        %5373 = vmatpush.bf16.msra.mxu0 %v4041
        %5374 = vmatpush.bf16.msra.mxu0 %v4033
        %5375 = vmatmul.bf16.gmra.mxu0 %v1829
        %v5376 = vpop.f32.mrf.mxu0
        %v5377 = vadd.f32 %v5364, %v5376
        %v5378 = vpop.f32.mrf.mxu0
        %5379 = vdwg.mxu0
        %5380 = vmatpush.bf16.msra.mxu0 %v4153
        %5381 = vmatpush.bf16.msra.mxu0 %v4145
        %5382 = vmatpush.bf16.msra.mxu0 %v4137
        %5383 = vmatpush.bf16.msra.mxu0 %v4129
        %5384 = vmatpush.bf16.msra.mxu0 %v4121
        %5385 = vmatpush.bf16.msra.mxu0 %v4113
        %5386 = vmatpush.bf16.msra.mxu0 %v4105
        %5387 = vmatpush.bf16.msra.mxu0 %v4097
        %5388 = vmatmul.bf16.gmra.mxu0 %v1830
        %v5389 = vpop.f32.mrf.mxu0
        %v5390 = vadd.f32 %v5377, %v5389
        %v5391 = vpop.f32.mrf.mxu0
        %5392 = vdwg.mxu0
        %5393 = vmatpush.bf16.msra.mxu0 %v4217
        %5394 = vmatpush.bf16.msra.mxu0 %v4209
        %5395 = vmatpush.bf16.msra.mxu0 %v4201
        %5396 = vmatpush.bf16.msra.mxu0 %v4193
        %5397 = vmatpush.bf16.msra.mxu0 %v4185
        %5398 = vmatpush.bf16.msra.mxu0 %v4177
        %5399 = vmatpush.bf16.msra.mxu0 %v4169
        %5400 = vmatpush.bf16.msra.mxu0 %v4161
        %5401 = vmatmul.bf16.gmra.mxu0 %v1831
        %v5402 = vpop.f32.mrf.mxu0
        %v5403 = vadd.f32 %v5390, %v5402
        %v5404 = vpop.f32.mrf.mxu0
        %5405 = vdwg.mxu0
        %5406 = vmatpush.bf16.msra.mxu0 %v4281
        %5407 = vmatpush.bf16.msra.mxu0 %v4273
        %5408 = vmatpush.bf16.msra.mxu0 %v4265
        %5409 = vmatpush.bf16.msra.mxu0 %v4257
        %5410 = vmatpush.bf16.msra.mxu0 %v4249
        %5411 = vmatpush.bf16.msra.mxu0 %v4241
        %5412 = vmatpush.bf16.msra.mxu0 %v4233
        %5413 = vmatpush.bf16.msra.mxu0 %v4225
        %5414 = vmatmul.bf16.gmra.mxu0 %v1832
        %v5415 = vpop.f32.mrf.mxu0
        %v5416 = vadd.f32 %v5403, %v5415
        %v5417 = vpop.f32.mrf.mxu0
        %5418 = vdwg.mxu0
        %5419 = vmatpush.bf16.msra.mxu0 %v4345
        %5420 = vmatpush.bf16.msra.mxu0 %v4337
        %5421 = vmatpush.bf16.msra.mxu0 %v4329
        %5422 = vmatpush.bf16.msra.mxu0 %v4321
        %5423 = vmatpush.bf16.msra.mxu0 %v4313
        %5424 = vmatpush.bf16.msra.mxu0 %v4305
        %5425 = vmatpush.bf16.msra.mxu0 %v4297
        %5426 = vmatpush.bf16.msra.mxu0 %v4289
        %5427 = vmatmul.bf16.gmra.mxu0 %v1833
        %v5428 = vpop.f32.mrf.mxu0
        %v5429 = vadd.f32 %v5416, %v5428
        %v5430 = vpop.f32.mrf.mxu0
        %5431 = vdwg.mxu0
        %5432 = vmatpush.bf16.msra.mxu0 %v4409
        %5433 = vmatpush.bf16.msra.mxu0 %v4401
        %5434 = vmatpush.bf16.msra.mxu0 %v4393
        %5435 = vmatpush.bf16.msra.mxu0 %v4385
        %5436 = vmatpush.bf16.msra.mxu0 %v4377
        %5437 = vmatpush.bf16.msra.mxu0 %v4369
        %5438 = vmatpush.bf16.msra.mxu0 %v4361
        %5439 = vmatpush.bf16.msra.mxu0 %v4353
        %5440 = vmatmul.bf16.gmra.mxu0 %v1834
        %v5441 = vpop.f32.mrf.mxu0
        %v5442 = vadd.f32 %v5429, %v5441
        %v5443 = vpop.f32.mrf.mxu0
        %5444 = vdwg.mxu0
        %5445 = vmatpush.bf16.msra.mxu0 %v3962
        %5446 = vmatpush.bf16.msra.mxu0 %v3954
        %5447 = vmatpush.bf16.msra.mxu0 %v3946
        %5448 = vmatpush.bf16.msra.mxu0 %v3938
        %5449 = vmatpush.bf16.msra.mxu0 %v3930
        %5450 = vmatpush.bf16.msra.mxu0 %v3922
        %5451 = vmatpush.bf16.msra.mxu0 %v3914
        %5452 = vmatpush.bf16.msra.mxu0 %v3906
        %5453 = vmatmul.bf16.gmra.mxu0 %v1827
        %v5454 = vpop.f32.mrf.mxu0
        %v5455 = vadd.f32 %v2354, %v5454
        %v5456 = vpop.f32.mrf.mxu0
        %5457 = vdwg.mxu0
        %5458 = vmatpush.bf16.msra.mxu0 %v4026
        %5459 = vmatpush.bf16.msra.mxu0 %v4018
        %5460 = vmatpush.bf16.msra.mxu0 %v4010
        %5461 = vmatpush.bf16.msra.mxu0 %v4002
        %5462 = vmatpush.bf16.msra.mxu0 %v3994
        %5463 = vmatpush.bf16.msra.mxu0 %v3986
        %5464 = vmatpush.bf16.msra.mxu0 %v3978
        %5465 = vmatpush.bf16.msra.mxu0 %v3970
        %5466 = vmatmul.bf16.gmra.mxu0 %v1828
        %v5467 = vpop.f32.mrf.mxu0
        %v5468 = vadd.f32 %v5455, %v5467
        %v5469 = vpop.f32.mrf.mxu0
        %5470 = vdwg.mxu0
        %5471 = vmatpush.bf16.msra.mxu0 %v4090
        %5472 = vmatpush.bf16.msra.mxu0 %v4082
        %5473 = vmatpush.bf16.msra.mxu0 %v4074
        %5474 = vmatpush.bf16.msra.mxu0 %v4066
        %5475 = vmatpush.bf16.msra.mxu0 %v4058
        %5476 = vmatpush.bf16.msra.mxu0 %v4050
        %5477 = vmatpush.bf16.msra.mxu0 %v4042
        %5478 = vmatpush.bf16.msra.mxu0 %v4034
        %5479 = vmatmul.bf16.gmra.mxu0 %v1829
        %v5480 = vpop.f32.mrf.mxu0
        %v5481 = vadd.f32 %v5468, %v5480
        %v5482 = vpop.f32.mrf.mxu0
        %5483 = vdwg.mxu0
        %5484 = vmatpush.bf16.msra.mxu0 %v4154
        %5485 = vmatpush.bf16.msra.mxu0 %v4146
        %5486 = vmatpush.bf16.msra.mxu0 %v4138
        %5487 = vmatpush.bf16.msra.mxu0 %v4130
        %5488 = vmatpush.bf16.msra.mxu0 %v4122
        %5489 = vmatpush.bf16.msra.mxu0 %v4114
        %5490 = vmatpush.bf16.msra.mxu0 %v4106
        %5491 = vmatpush.bf16.msra.mxu0 %v4098
        %5492 = vmatmul.bf16.gmra.mxu0 %v1830
        %v5493 = vpop.f32.mrf.mxu0
        %v5494 = vadd.f32 %v5481, %v5493
        %v5495 = vpop.f32.mrf.mxu0
        %5496 = vdwg.mxu0
        %5497 = vmatpush.bf16.msra.mxu0 %v4218
        %5498 = vmatpush.bf16.msra.mxu0 %v4210
        %5499 = vmatpush.bf16.msra.mxu0 %v4202
        %5500 = vmatpush.bf16.msra.mxu0 %v4194
        %5501 = vmatpush.bf16.msra.mxu0 %v4186
        %5502 = vmatpush.bf16.msra.mxu0 %v4178
        %5503 = vmatpush.bf16.msra.mxu0 %v4170
        %5504 = vmatpush.bf16.msra.mxu0 %v4162
        %5505 = vmatmul.bf16.gmra.mxu0 %v1831
        %v5506 = vpop.f32.mrf.mxu0
        %v5507 = vadd.f32 %v5494, %v5506
        %v5508 = vpop.f32.mrf.mxu0
        %5509 = vdwg.mxu0
        %5510 = vmatpush.bf16.msra.mxu0 %v4282
        %5511 = vmatpush.bf16.msra.mxu0 %v4274
        %5512 = vmatpush.bf16.msra.mxu0 %v4266
        %5513 = vmatpush.bf16.msra.mxu0 %v4258
        %5514 = vmatpush.bf16.msra.mxu0 %v4250
        %5515 = vmatpush.bf16.msra.mxu0 %v4242
        %5516 = vmatpush.bf16.msra.mxu0 %v4234
        %5517 = vmatpush.bf16.msra.mxu0 %v4226
        %5518 = vmatmul.bf16.gmra.mxu0 %v1832
        %v5519 = vpop.f32.mrf.mxu0
        %v5520 = vadd.f32 %v5507, %v5519
        %v5521 = vpop.f32.mrf.mxu0
        %5522 = vdwg.mxu0
        %5523 = vmatpush.bf16.msra.mxu0 %v4346
        %5524 = vmatpush.bf16.msra.mxu0 %v4338
        %5525 = vmatpush.bf16.msra.mxu0 %v4330
        %5526 = vmatpush.bf16.msra.mxu0 %v4322
        %5527 = vmatpush.bf16.msra.mxu0 %v4314
        %5528 = vmatpush.bf16.msra.mxu0 %v4306
        %5529 = vmatpush.bf16.msra.mxu0 %v4298
        %5530 = vmatpush.bf16.msra.mxu0 %v4290
        %5531 = vmatmul.bf16.gmra.mxu0 %v1833
        %v5532 = vpop.f32.mrf.mxu0
        %v5533 = vadd.f32 %v5520, %v5532
        %v5534 = vpop.f32.mrf.mxu0
        %5535 = vdwg.mxu0
        %5536 = vmatpush.bf16.msra.mxu0 %v4410
        %5537 = vmatpush.bf16.msra.mxu0 %v4402
        %5538 = vmatpush.bf16.msra.mxu0 %v4394
        %5539 = vmatpush.bf16.msra.mxu0 %v4386
        %5540 = vmatpush.bf16.msra.mxu0 %v4378
        %5541 = vmatpush.bf16.msra.mxu0 %v4370
        %5542 = vmatpush.bf16.msra.mxu0 %v4362
        %5543 = vmatpush.bf16.msra.mxu0 %v4354
        %5544 = vmatmul.bf16.gmra.mxu0 %v1834
        %v5545 = vpop.f32.mrf.mxu0
        %v5546 = vadd.f32 %v5533, %v5545
        %v5547 = vpop.f32.mrf.mxu0
        %5548 = vdwg.mxu0
        %5549 = vmatpush.bf16.msra.mxu0 %v3963
        %5550 = vmatpush.bf16.msra.mxu0 %v3955
        %5551 = vmatpush.bf16.msra.mxu0 %v3947
        %5552 = vmatpush.bf16.msra.mxu0 %v3939
        %5553 = vmatpush.bf16.msra.mxu0 %v3931
        %5554 = vmatpush.bf16.msra.mxu0 %v3923
        %5555 = vmatpush.bf16.msra.mxu0 %v3915
        %5556 = vmatpush.bf16.msra.mxu0 %v3907
        %5557 = vmatmul.bf16.gmra.mxu0 %v1827
        %v5558 = vpop.f32.mrf.mxu0
        %v5559 = vadd.f32 %v2355, %v5558
        %v5560 = vpop.f32.mrf.mxu0
        %5561 = vdwg.mxu0
        %5562 = vmatpush.bf16.msra.mxu0 %v4027
        %5563 = vmatpush.bf16.msra.mxu0 %v4019
        %5564 = vmatpush.bf16.msra.mxu0 %v4011
        %5565 = vmatpush.bf16.msra.mxu0 %v4003
        %5566 = vmatpush.bf16.msra.mxu0 %v3995
        %5567 = vmatpush.bf16.msra.mxu0 %v3987
        %5568 = vmatpush.bf16.msra.mxu0 %v3979
        %5569 = vmatpush.bf16.msra.mxu0 %v3971
        %5570 = vmatmul.bf16.gmra.mxu0 %v1828
        %v5571 = vpop.f32.mrf.mxu0
        %v5572 = vadd.f32 %v5559, %v5571
        %v5573 = vpop.f32.mrf.mxu0
        %5574 = vdwg.mxu0
        %5575 = vmatpush.bf16.msra.mxu0 %v4091
        %5576 = vmatpush.bf16.msra.mxu0 %v4083
        %5577 = vmatpush.bf16.msra.mxu0 %v4075
        %5578 = vmatpush.bf16.msra.mxu0 %v4067
        %5579 = vmatpush.bf16.msra.mxu0 %v4059
        %5580 = vmatpush.bf16.msra.mxu0 %v4051
        %5581 = vmatpush.bf16.msra.mxu0 %v4043
        %5582 = vmatpush.bf16.msra.mxu0 %v4035
        %5583 = vmatmul.bf16.gmra.mxu0 %v1829
        %v5584 = vpop.f32.mrf.mxu0
        %v5585 = vadd.f32 %v5572, %v5584
        %v5586 = vpop.f32.mrf.mxu0
        %5587 = vdwg.mxu0
        %5588 = vmatpush.bf16.msra.mxu0 %v4155
        %5589 = vmatpush.bf16.msra.mxu0 %v4147
        %5590 = vmatpush.bf16.msra.mxu0 %v4139
        %5591 = vmatpush.bf16.msra.mxu0 %v4131
        %5592 = vmatpush.bf16.msra.mxu0 %v4123
        %5593 = vmatpush.bf16.msra.mxu0 %v4115
        %5594 = vmatpush.bf16.msra.mxu0 %v4107
        %5595 = vmatpush.bf16.msra.mxu0 %v4099
        %5596 = vmatmul.bf16.gmra.mxu0 %v1830
        %v5597 = vpop.f32.mrf.mxu0
        %v5598 = vadd.f32 %v5585, %v5597
        %v5599 = vpop.f32.mrf.mxu0
        %5600 = vdwg.mxu0
        %5601 = vmatpush.bf16.msra.mxu0 %v4219
        %5602 = vmatpush.bf16.msra.mxu0 %v4211
        %5603 = vmatpush.bf16.msra.mxu0 %v4203
        %5604 = vmatpush.bf16.msra.mxu0 %v4195
        %5605 = vmatpush.bf16.msra.mxu0 %v4187
        %5606 = vmatpush.bf16.msra.mxu0 %v4179
        %5607 = vmatpush.bf16.msra.mxu0 %v4171
        %5608 = vmatpush.bf16.msra.mxu0 %v4163
        %5609 = vmatmul.bf16.gmra.mxu0 %v1831
        %v5610 = vpop.f32.mrf.mxu0
        %v5611 = vadd.f32 %v5598, %v5610
        %v5612 = vpop.f32.mrf.mxu0
        %5613 = vdwg.mxu0
        %5614 = vmatpush.bf16.msra.mxu0 %v4283
        %5615 = vmatpush.bf16.msra.mxu0 %v4275
        %5616 = vmatpush.bf16.msra.mxu0 %v4267
        %5617 = vmatpush.bf16.msra.mxu0 %v4259
        %5618 = vmatpush.bf16.msra.mxu0 %v4251
        %5619 = vmatpush.bf16.msra.mxu0 %v4243
        %5620 = vmatpush.bf16.msra.mxu0 %v4235
        %5621 = vmatpush.bf16.msra.mxu0 %v4227
        %5622 = vmatmul.bf16.gmra.mxu0 %v1832
        %v5623 = vpop.f32.mrf.mxu0
        %v5624 = vadd.f32 %v5611, %v5623
        %v5625 = vpop.f32.mrf.mxu0
        %5626 = vdwg.mxu0
        %5627 = vmatpush.bf16.msra.mxu0 %v4347
        %5628 = vmatpush.bf16.msra.mxu0 %v4339
        %5629 = vmatpush.bf16.msra.mxu0 %v4331
        %5630 = vmatpush.bf16.msra.mxu0 %v4323
        %5631 = vmatpush.bf16.msra.mxu0 %v4315
        %5632 = vmatpush.bf16.msra.mxu0 %v4307
        %5633 = vmatpush.bf16.msra.mxu0 %v4299
        %5634 = vmatpush.bf16.msra.mxu0 %v4291
        %5635 = vmatmul.bf16.gmra.mxu0 %v1833
        %v5636 = vpop.f32.mrf.mxu0
        %v5637 = vadd.f32 %v5624, %v5636
        %v5638 = vpop.f32.mrf.mxu0
        %5639 = vdwg.mxu0
        %5640 = vmatpush.bf16.msra.mxu0 %v4411
        %5641 = vmatpush.bf16.msra.mxu0 %v4403
        %5642 = vmatpush.bf16.msra.mxu0 %v4395
        %5643 = vmatpush.bf16.msra.mxu0 %v4387
        %5644 = vmatpush.bf16.msra.mxu0 %v4379
        %5645 = vmatpush.bf16.msra.mxu0 %v4371
        %5646 = vmatpush.bf16.msra.mxu0 %v4363
        %5647 = vmatpush.bf16.msra.mxu0 %v4355
        %5648 = vmatmul.bf16.gmra.mxu0 %v1834
        %v5649 = vpop.f32.mrf.mxu0
        %v5650 = vadd.f32 %v5637, %v5649
        %v5651 = vpop.f32.mrf.mxu0
        %5652 = vdwg.mxu0
        %5653 = vmatpush.bf16.msra.mxu0 %v3964
        %5654 = vmatpush.bf16.msra.mxu0 %v3956
        %5655 = vmatpush.bf16.msra.mxu0 %v3948
        %5656 = vmatpush.bf16.msra.mxu0 %v3940
        %5657 = vmatpush.bf16.msra.mxu0 %v3932
        %5658 = vmatpush.bf16.msra.mxu0 %v3924
        %5659 = vmatpush.bf16.msra.mxu0 %v3916
        %5660 = vmatpush.bf16.msra.mxu0 %v3908
        %5661 = vmatmul.bf16.gmra.mxu0 %v1827
        %v5662 = vpop.f32.mrf.mxu0
        %v5663 = vadd.f32 %v2356, %v5662
        %v5664 = vpop.f32.mrf.mxu0
        %5665 = vdwg.mxu0
        %5666 = vmatpush.bf16.msra.mxu0 %v4028
        %5667 = vmatpush.bf16.msra.mxu0 %v4020
        %5668 = vmatpush.bf16.msra.mxu0 %v4012
        %5669 = vmatpush.bf16.msra.mxu0 %v4004
        %5670 = vmatpush.bf16.msra.mxu0 %v3996
        %5671 = vmatpush.bf16.msra.mxu0 %v3988
        %5672 = vmatpush.bf16.msra.mxu0 %v3980
        %5673 = vmatpush.bf16.msra.mxu0 %v3972
        %5674 = vmatmul.bf16.gmra.mxu0 %v1828
        %v5675 = vpop.f32.mrf.mxu0
        %v5676 = vadd.f32 %v5663, %v5675
        %v5677 = vpop.f32.mrf.mxu0
        %5678 = vdwg.mxu0
        %5679 = vmatpush.bf16.msra.mxu0 %v4092
        %5680 = vmatpush.bf16.msra.mxu0 %v4084
        %5681 = vmatpush.bf16.msra.mxu0 %v4076
        %5682 = vmatpush.bf16.msra.mxu0 %v4068
        %5683 = vmatpush.bf16.msra.mxu0 %v4060
        %5684 = vmatpush.bf16.msra.mxu0 %v4052
        %5685 = vmatpush.bf16.msra.mxu0 %v4044
        %5686 = vmatpush.bf16.msra.mxu0 %v4036
        %5687 = vmatmul.bf16.gmra.mxu0 %v1829
        %v5688 = vpop.f32.mrf.mxu0
        %v5689 = vadd.f32 %v5676, %v5688
        %v5690 = vpop.f32.mrf.mxu0
        %5691 = vdwg.mxu0
        %5692 = vmatpush.bf16.msra.mxu0 %v4156
        %5693 = vmatpush.bf16.msra.mxu0 %v4148
        %5694 = vmatpush.bf16.msra.mxu0 %v4140
        %5695 = vmatpush.bf16.msra.mxu0 %v4132
        %5696 = vmatpush.bf16.msra.mxu0 %v4124
        %5697 = vmatpush.bf16.msra.mxu0 %v4116
        %5698 = vmatpush.bf16.msra.mxu0 %v4108
        %5699 = vmatpush.bf16.msra.mxu0 %v4100
        %5700 = vmatmul.bf16.gmra.mxu0 %v1830
        %v5701 = vpop.f32.mrf.mxu0
        %v5702 = vadd.f32 %v5689, %v5701
        %v5703 = vpop.f32.mrf.mxu0
        %5704 = vdwg.mxu0
        %5705 = vmatpush.bf16.msra.mxu0 %v4220
        %5706 = vmatpush.bf16.msra.mxu0 %v4212
        %5707 = vmatpush.bf16.msra.mxu0 %v4204
        %5708 = vmatpush.bf16.msra.mxu0 %v4196
        %5709 = vmatpush.bf16.msra.mxu0 %v4188
        %5710 = vmatpush.bf16.msra.mxu0 %v4180
        %5711 = vmatpush.bf16.msra.mxu0 %v4172
        %5712 = vmatpush.bf16.msra.mxu0 %v4164
        %5713 = vmatmul.bf16.gmra.mxu0 %v1831
        %v5714 = vpop.f32.mrf.mxu0
        %v5715 = vadd.f32 %v5702, %v5714
        %v5716 = vpop.f32.mrf.mxu0
        %5717 = vdwg.mxu0
        %5718 = vmatpush.bf16.msra.mxu0 %v4284
        %5719 = vmatpush.bf16.msra.mxu0 %v4276
        %5720 = vmatpush.bf16.msra.mxu0 %v4268
        %5721 = vmatpush.bf16.msra.mxu0 %v4260
        %5722 = vmatpush.bf16.msra.mxu0 %v4252
        %5723 = vmatpush.bf16.msra.mxu0 %v4244
        %5724 = vmatpush.bf16.msra.mxu0 %v4236
        %5725 = vmatpush.bf16.msra.mxu0 %v4228
        %5726 = vmatmul.bf16.gmra.mxu0 %v1832
        %v5727 = vpop.f32.mrf.mxu0
        %v5728 = vadd.f32 %v5715, %v5727
        %v5729 = vpop.f32.mrf.mxu0
        %5730 = vdwg.mxu0
        %5731 = vmatpush.bf16.msra.mxu0 %v4348
        %5732 = vmatpush.bf16.msra.mxu0 %v4340
        %5733 = vmatpush.bf16.msra.mxu0 %v4332
        %5734 = vmatpush.bf16.msra.mxu0 %v4324
        %5735 = vmatpush.bf16.msra.mxu0 %v4316
        %5736 = vmatpush.bf16.msra.mxu0 %v4308
        %5737 = vmatpush.bf16.msra.mxu0 %v4300
        %5738 = vmatpush.bf16.msra.mxu0 %v4292
        %5739 = vmatmul.bf16.gmra.mxu0 %v1833
        %v5740 = vpop.f32.mrf.mxu0
        %v5741 = vadd.f32 %v5728, %v5740
        %v5742 = vpop.f32.mrf.mxu0
        %5743 = vdwg.mxu0
        %5744 = vmatpush.bf16.msra.mxu0 %v4412
        %5745 = vmatpush.bf16.msra.mxu0 %v4404
        %5746 = vmatpush.bf16.msra.mxu0 %v4396
        %5747 = vmatpush.bf16.msra.mxu0 %v4388
        %5748 = vmatpush.bf16.msra.mxu0 %v4380
        %5749 = vmatpush.bf16.msra.mxu0 %v4372
        %5750 = vmatpush.bf16.msra.mxu0 %v4364
        %5751 = vmatpush.bf16.msra.mxu0 %v4356
        %5752 = vmatmul.bf16.gmra.mxu0 %v1834
        %v5753 = vpop.f32.mrf.mxu0
        %v5754 = vadd.f32 %v5741, %v5753
        %v5755 = vpop.f32.mrf.mxu0
        %5756 = vdwg.mxu0
        %v5757 = vmax.f32 %v5026, 0.0
        %v5758 = vmax.f32 %v5130, 0.0
        %v5759 = vmax.f32 %v5234, 0.0
        %v5760 = vmax.f32 %v5338, 0.0
        %v5761 = vmax.f32 %v5442, 0.0
        %v5762 = vmax.f32 %v5546, 0.0
        %v5763 = vmax.f32 %v5650, 0.0
        %v5764 = vmax.f32 %v5754, 0.0
        %v5765 = vld [vmem:[%s670] sm:$0xff]
        %v5766 = vld [vmem:[%s670 + $0x8] sm:$0xff]
        %v5767 = vpack.c.bf16 %v5757, %v5757
        %v5768 = vpack.c.bf16 %v5758, %v5758
        %v5769 = vpack.c.bf16 %v5759, %v5759
        %v5770 = vpack.c.bf16 %v5760, %v5760
        %v5771 = vpack.c.bf16 %v5761, %v5761
        %v5772 = vpack.c.bf16 %v5762, %v5762
        %v5773 = vpack.c.bf16 %v5763, %v5763
        %v5774 = vpack.c.bf16 %v5764, %v5764
        %v5775 = vld [vmem:[%s605] sm:$0xff]
        %v5776 = vld [vmem:[%s605 + $0x8] sm:$0xff]
        %v5777 = vld [vmem:[%s605 + $0x10] sm:$0xff]
        %v5778 = vld [vmem:[%s605 + $0x18] sm:$0xff]
        %v5779 = vld [vmem:[%s605 + $0x20] sm:$0xff]
        %v5780 = vld [vmem:[%s605 + $0x28] sm:$0xff]
        %v5781 = vld [vmem:[%s605 + $0x30] sm:$0xff]
        %v5782 = vld [vmem:[%s605 + $0x38] sm:$0xff]
        %v5783 = vld [vmem:[%s605 + $0x40] sm:$0xff]
        %v5784 = vld [vmem:[%s605 + $0x48] sm:$0xff]
        %v5785 = vld [vmem:[%s605 + $0x50] sm:$0xff]
        %v5786 = vld [vmem:[%s605 + $0x58] sm:$0xff]
        %v5787 = vld [vmem:[%s605 + $0x60] sm:$0xff]
        %v5788 = vld [vmem:[%s605 + $0x68] sm:$0xff]
        %v5789 = vld [vmem:[%s605 + $0x70] sm:$0xff]
        %v5790 = vld [vmem:[%s605 + $0x78] sm:$0xff]
        %v5791 = vld [vmem:[%s605 + $0x80] sm:$0xff]
        %v5792 = vld [vmem:[%s605 + $0x88] sm:$0xff]
        %v5793 = vld [vmem:[%s605 + $0x90] sm:$0xff]
        %v5794 = vld [vmem:[%s605 + $0x98] sm:$0xff]
        %v5795 = vld [vmem:[%s605 + $0xa0] sm:$0xff]
        %v5796 = vld [vmem:[%s605 + $0xa8] sm:$0xff]
        %v5797 = vld [vmem:[%s605 + $0xb0] sm:$0xff]
        %v5798 = vld [vmem:[%s605 + $0xb8] sm:$0xff]
        %v5799 = vld [vmem:[%s605 + $0xc0] sm:$0xff]
        %v5800 = vld [vmem:[%s605 + $0xc8] sm:$0xff]
        %v5801 = vld [vmem:[%s605 + $0xd0] sm:$0xff]
        %v5802 = vld [vmem:[%s605 + $0xd8] sm:$0xff]
        %v5803 = vld [vmem:[%s605 + $0xe0] sm:$0xff]
        %v5804 = vld [vmem:[%s605 + $0xe8] sm:$0xff]
        %v5805 = vld [vmem:[%s605 + $0xf0] sm:$0xff]
        %v5806 = vld [vmem:[%s605 + $0xf8] sm:$0xff]
        %v5807 = vld [vmem:[%s605 + $0x100] sm:$0xff]
        %v5808 = vld [vmem:[%s605 + $0x108] sm:$0xff]
        %v5809 = vld [vmem:[%s605 + $0x110] sm:$0xff]
        %v5810 = vld [vmem:[%s605 + $0x118] sm:$0xff]
        %v5811 = vld [vmem:[%s605 + $0x120] sm:$0xff]
        %v5812 = vld [vmem:[%s605 + $0x128] sm:$0xff]
        %v5813 = vld [vmem:[%s605 + $0x130] sm:$0xff]
        %v5814 = vld [vmem:[%s605 + $0x138] sm:$0xff]
        %v5815 = vld [vmem:[%s605 + $0x140] sm:$0xff]
        %v5816 = vld [vmem:[%s605 + $0x148] sm:$0xff]
        %v5817 = vld [vmem:[%s605 + $0x150] sm:$0xff]
        %v5818 = vld [vmem:[%s605 + $0x158] sm:$0xff]
        %v5819 = vld [vmem:[%s605 + $0x160] sm:$0xff]
        %v5820 = vld [vmem:[%s605 + $0x168] sm:$0xff]
        %v5821 = vld [vmem:[%s605 + $0x170] sm:$0xff]
        %v5822 = vld [vmem:[%s605 + $0x178] sm:$0xff]
        %v5823 = vld [vmem:[%s605 + $0x180] sm:$0xff]
        %v5824 = vld [vmem:[%s605 + $0x188] sm:$0xff]
        %v5825 = vld [vmem:[%s605 + $0x190] sm:$0xff]
        %v5826 = vld [vmem:[%s605 + $0x198] sm:$0xff]
        %v5827 = vld [vmem:[%s605 + $0x1a0] sm:$0xff]
        %v5828 = vld [vmem:[%s605 + $0x1a8] sm:$0xff]
        %v5829 = vld [vmem:[%s605 + $0x1b0] sm:$0xff]
        %v5830 = vld [vmem:[%s605 + $0x1b8] sm:$0xff]
        %v5831 = vld [vmem:[%s605 + $0x1c0] sm:$0xff]
        %v5832 = vld [vmem:[%s605 + $0x1c8] sm:$0xff]
        %v5833 = vld [vmem:[%s605 + $0x1d0] sm:$0xff]
        %v5834 = vld [vmem:[%s605 + $0x1d8] sm:$0xff]
        %v5835 = vld [vmem:[%s605 + $0x1e0] sm:$0xff]
        %v5836 = vld [vmem:[%s605 + $0x1e8] sm:$0xff]
        %v5837 = vld [vmem:[%s605 + $0x1f0] sm:$0xff]
        %v5838 = vld [vmem:[%s605 + $0x1f8] sm:$0xff]
        %v5839 = vld [vmem:[%s605 + $0x200] sm:$0xff]
        %v5840 = vld [vmem:[%s605 + $0x208] sm:$0xff]
        %v5841 = vld [vmem:[%s605 + $0x210] sm:$0xff]
        %v5842 = vld [vmem:[%s605 + $0x218] sm:$0xff]
        %v5843 = vld [vmem:[%s605 + $0x220] sm:$0xff]
        %v5844 = vld [vmem:[%s605 + $0x228] sm:$0xff]
        %v5845 = vld [vmem:[%s605 + $0x230] sm:$0xff]
        %v5846 = vld [vmem:[%s605 + $0x238] sm:$0xff]
        %v5847 = vld [vmem:[%s605 + $0x240] sm:$0xff]
        %v5848 = vld [vmem:[%s605 + $0x248] sm:$0xff]
        %v5849 = vld [vmem:[%s605 + $0x250] sm:$0xff]
        %v5850 = vld [vmem:[%s605 + $0x258] sm:$0xff]
        %v5851 = vld [vmem:[%s605 + $0x260] sm:$0xff]
        %v5852 = vld [vmem:[%s605 + $0x268] sm:$0xff]
        %v5853 = vld [vmem:[%s605 + $0x270] sm:$0xff]
        %v5854 = vld [vmem:[%s605 + $0x278] sm:$0xff]
        %v5855 = vld [vmem:[%s605 + $0x280] sm:$0xff]
        %v5856 = vld [vmem:[%s605 + $0x288] sm:$0xff]
        %v5857 = vld [vmem:[%s605 + $0x290] sm:$0xff]
        %v5858 = vld [vmem:[%s605 + $0x298] sm:$0xff]
        %v5859 = vld [vmem:[%s605 + $0x2a0] sm:$0xff]
        %v5860 = vld [vmem:[%s605 + $0x2a8] sm:$0xff]
        %v5861 = vld [vmem:[%s605 + $0x2b0] sm:$0xff]
        %v5862 = vld [vmem:[%s605 + $0x2b8] sm:$0xff]
        %v5863 = vld [vmem:[%s605 + $0x2c0] sm:$0xff]
        %v5864 = vld [vmem:[%s605 + $0x2c8] sm:$0xff]
        %v5865 = vld [vmem:[%s605 + $0x2d0] sm:$0xff]
        %v5866 = vld [vmem:[%s605 + $0x2d8] sm:$0xff]
        %v5867 = vld [vmem:[%s605 + $0x2e0] sm:$0xff]
        %v5868 = vld [vmem:[%s605 + $0x2e8] sm:$0xff]
        %v5869 = vld [vmem:[%s605 + $0x2f0] sm:$0xff]
        %v5870 = vld [vmem:[%s605 + $0x2f8] sm:$0xff]
        %v5871 = vld [vmem:[%s605 + $0x300] sm:$0xff]
        %v5872 = vld [vmem:[%s605 + $0x308] sm:$0xff]
        %v5873 = vld [vmem:[%s605 + $0x310] sm:$0xff]
        %v5874 = vld [vmem:[%s605 + $0x318] sm:$0xff]
        %v5875 = vld [vmem:[%s605 + $0x320] sm:$0xff]
        %v5876 = vld [vmem:[%s605 + $0x328] sm:$0xff]
        %v5877 = vld [vmem:[%s605 + $0x330] sm:$0xff]
        %v5878 = vld [vmem:[%s605 + $0x338] sm:$0xff]
        %v5879 = vld [vmem:[%s605 + $0x340] sm:$0xff]
        %v5880 = vld [vmem:[%s605 + $0x348] sm:$0xff]
        %v5881 = vld [vmem:[%s605 + $0x350] sm:$0xff]
        %v5882 = vld [vmem:[%s605 + $0x358] sm:$0xff]
        %v5883 = vld [vmem:[%s605 + $0x360] sm:$0xff]
        %v5884 = vld [vmem:[%s605 + $0x368] sm:$0xff]
        %v5885 = vld [vmem:[%s605 + $0x370] sm:$0xff]
        %v5886 = vld [vmem:[%s605 + $0x378] sm:$0xff]
        %v5887 = vld [vmem:[%s605 + $0x380] sm:$0xff]
        %v5888 = vld [vmem:[%s605 + $0x388] sm:$0xff]
        %v5889 = vld [vmem:[%s605 + $0x390] sm:$0xff]
        %v5890 = vld [vmem:[%s605 + $0x398] sm:$0xff]
        %v5891 = vld [vmem:[%s605 + $0x3a0] sm:$0xff]
        %v5892 = vld [vmem:[%s605 + $0x3a8] sm:$0xff]
        %v5893 = vld [vmem:[%s605 + $0x3b0] sm:$0xff]
        %v5894 = vld [vmem:[%s605 + $0x3b8] sm:$0xff]
        %v5895 = vld [vmem:[%s605 + $0x3c0] sm:$0xff]
        %v5896 = vld [vmem:[%s605 + $0x3c8] sm:$0xff]
        %v5897 = vld [vmem:[%s605 + $0x3d0] sm:$0xff]
        %v5898 = vld [vmem:[%s605 + $0x3d8] sm:$0xff]
        %v5899 = vld [vmem:[%s605 + $0x3e0] sm:$0xff]
        %v5900 = vld [vmem:[%s605 + $0x3e8] sm:$0xff]
        %v5901 = vld [vmem:[%s605 + $0x3f0] sm:$0xff]
        %v5902 = vld [vmem:[%s605 + $0x3f8] sm:$0xff]
        %v6031 = vunpack.c.l.b16 %v5775
        %v6032 = vunpack.c.h.b16 %v5775
        %v6033 = vunpack.c.l.b16 %v5776
        %v6034 = vunpack.c.h.b16 %v5776
        %v6035 = vunpack.c.l.b16 %v5777
        %v6036 = vunpack.c.h.b16 %v5777
        %v6037 = vunpack.c.l.b16 %v5778
        %v6038 = vunpack.c.h.b16 %v5778
        %v6039 = vunpack.c.l.b16 %v5779
        %v6040 = vunpack.c.h.b16 %v5779
        %v6041 = vunpack.c.l.b16 %v5780
        %v6042 = vunpack.c.h.b16 %v5780
        %v6043 = vunpack.c.l.b16 %v5781
        %v6044 = vunpack.c.h.b16 %v5781
        %v6045 = vunpack.c.l.b16 %v5782
        %v6046 = vunpack.c.h.b16 %v5782
        %v6047 = vunpack.c.l.b16 %v5783
        %v6048 = vunpack.c.h.b16 %v5783
        %v6049 = vunpack.c.l.b16 %v5784
        %v6050 = vunpack.c.h.b16 %v5784
        %v6051 = vunpack.c.l.b16 %v5785
        %v6052 = vunpack.c.h.b16 %v5785
        %v6053 = vunpack.c.l.b16 %v5786
        %v6054 = vunpack.c.h.b16 %v5786
        %v6055 = vunpack.c.l.b16 %v5787
        %v6056 = vunpack.c.h.b16 %v5787
        %v6057 = vunpack.c.l.b16 %v5788
        %v6058 = vunpack.c.h.b16 %v5788
        %v6059 = vunpack.c.l.b16 %v5789
        %v6060 = vunpack.c.h.b16 %v5789
        %v6061 = vunpack.c.l.b16 %v5790
        %v6062 = vunpack.c.h.b16 %v5790
        %v6063 = vunpack.c.l.b16 %v5791
        %v6064 = vunpack.c.h.b16 %v5791
        %v6065 = vunpack.c.l.b16 %v5792
        %v6066 = vunpack.c.h.b16 %v5792
        %v6067 = vunpack.c.l.b16 %v5793
        %v6068 = vunpack.c.h.b16 %v5793
        %v6069 = vunpack.c.l.b16 %v5794
        %v6070 = vunpack.c.h.b16 %v5794
        %v6071 = vunpack.c.l.b16 %v5795
        %v6072 = vunpack.c.h.b16 %v5795
        %v6073 = vunpack.c.l.b16 %v5796
        %v6074 = vunpack.c.h.b16 %v5796
        %v6075 = vunpack.c.l.b16 %v5797
        %v6076 = vunpack.c.h.b16 %v5797
        %v6077 = vunpack.c.l.b16 %v5798
        %v6078 = vunpack.c.h.b16 %v5798
        %v6079 = vunpack.c.l.b16 %v5799
        %v6080 = vunpack.c.h.b16 %v5799
        %v6081 = vunpack.c.l.b16 %v5800
        %v6082 = vunpack.c.h.b16 %v5800
        %v6083 = vunpack.c.l.b16 %v5801
        %v6084 = vunpack.c.h.b16 %v5801
        %v6085 = vunpack.c.l.b16 %v5802
        %v6086 = vunpack.c.h.b16 %v5802
        %v6087 = vunpack.c.l.b16 %v5803
        %v6088 = vunpack.c.h.b16 %v5803
        %v6089 = vunpack.c.l.b16 %v5804
        %v6090 = vunpack.c.h.b16 %v5804
        %v6091 = vunpack.c.l.b16 %v5805
        %v6092 = vunpack.c.h.b16 %v5805
        %v6093 = vunpack.c.l.b16 %v5806
        %v6094 = vunpack.c.h.b16 %v5806
        %v6095 = vunpack.c.l.b16 %v5807
        %v6096 = vunpack.c.h.b16 %v5807
        %v6097 = vunpack.c.l.b16 %v5808
        %v6098 = vunpack.c.h.b16 %v5808
        %v6099 = vunpack.c.l.b16 %v5809
        %v6100 = vunpack.c.h.b16 %v5809
        %v6101 = vunpack.c.l.b16 %v5810
        %v6102 = vunpack.c.h.b16 %v5810
        %v6103 = vunpack.c.l.b16 %v5811
        %v6104 = vunpack.c.h.b16 %v5811
        %v6105 = vunpack.c.l.b16 %v5812
        %v6106 = vunpack.c.h.b16 %v5812
        %v6107 = vunpack.c.l.b16 %v5813
        %v6108 = vunpack.c.h.b16 %v5813
        %v6109 = vunpack.c.l.b16 %v5814
        %v6110 = vunpack.c.h.b16 %v5814
        %v6111 = vunpack.c.l.b16 %v5815
        %v6112 = vunpack.c.h.b16 %v5815
        %v6113 = vunpack.c.l.b16 %v5816
        %v6114 = vunpack.c.h.b16 %v5816
        %v6115 = vunpack.c.l.b16 %v5817
        %v6116 = vunpack.c.h.b16 %v5817
        %v6117 = vunpack.c.l.b16 %v5818
        %v6118 = vunpack.c.h.b16 %v5818
        %v6119 = vunpack.c.l.b16 %v5819
        %v6120 = vunpack.c.h.b16 %v5819
        %v6121 = vunpack.c.l.b16 %v5820
        %v6122 = vunpack.c.h.b16 %v5820
        %v6123 = vunpack.c.l.b16 %v5821
        %v6124 = vunpack.c.h.b16 %v5821
        %v6125 = vunpack.c.l.b16 %v5822
        %v6126 = vunpack.c.h.b16 %v5822
        %v6127 = vunpack.c.l.b16 %v5823
        %v6128 = vunpack.c.h.b16 %v5823
        %v6129 = vunpack.c.l.b16 %v5824
        %v6130 = vunpack.c.h.b16 %v5824
        %v6131 = vunpack.c.l.b16 %v5825
        %v6132 = vunpack.c.h.b16 %v5825
        %v6133 = vunpack.c.l.b16 %v5826
        %v6134 = vunpack.c.h.b16 %v5826
        %v6135 = vunpack.c.l.b16 %v5827
        %v6136 = vunpack.c.h.b16 %v5827
        %v6137 = vunpack.c.l.b16 %v5828
        %v6138 = vunpack.c.h.b16 %v5828
        %v6139 = vunpack.c.l.b16 %v5829
        %v6140 = vunpack.c.h.b16 %v5829
        %v6141 = vunpack.c.l.b16 %v5830
        %v6142 = vunpack.c.h.b16 %v5830
        %v6143 = vunpack.c.l.b16 %v5831
        %v6144 = vunpack.c.h.b16 %v5831
        %v6145 = vunpack.c.l.b16 %v5832
        %v6146 = vunpack.c.h.b16 %v5832
        %v6147 = vunpack.c.l.b16 %v5833
        %v6148 = vunpack.c.h.b16 %v5833
        %v6149 = vunpack.c.l.b16 %v5834
        %v6150 = vunpack.c.h.b16 %v5834
        %v6151 = vunpack.c.l.b16 %v5835
        %v6152 = vunpack.c.h.b16 %v5835
        %v6153 = vunpack.c.l.b16 %v5836
        %v6154 = vunpack.c.h.b16 %v5836
        %v6155 = vunpack.c.l.b16 %v5837
        %v6156 = vunpack.c.h.b16 %v5837
        %v6157 = vunpack.c.l.b16 %v5838
        %v6158 = vunpack.c.h.b16 %v5838
        %v6159 = vunpack.c.l.b16 %v5839
        %v6160 = vunpack.c.h.b16 %v5839
        %v6161 = vunpack.c.l.b16 %v5840
        %v6162 = vunpack.c.h.b16 %v5840
        %v6163 = vunpack.c.l.b16 %v5841
        %v6164 = vunpack.c.h.b16 %v5841
        %v6165 = vunpack.c.l.b16 %v5842
        %v6166 = vunpack.c.h.b16 %v5842
        %v6167 = vunpack.c.l.b16 %v5843
        %v6168 = vunpack.c.h.b16 %v5843
        %v6169 = vunpack.c.l.b16 %v5844
        %v6170 = vunpack.c.h.b16 %v5844
        %v6171 = vunpack.c.l.b16 %v5845
        %v6172 = vunpack.c.h.b16 %v5845
        %v6173 = vunpack.c.l.b16 %v5846
        %v6174 = vunpack.c.h.b16 %v5846
        %v6175 = vunpack.c.l.b16 %v5847
        %v6176 = vunpack.c.h.b16 %v5847
        %v6177 = vunpack.c.l.b16 %v5848
        %v6178 = vunpack.c.h.b16 %v5848
        %v6179 = vunpack.c.l.b16 %v5849
        %v6180 = vunpack.c.h.b16 %v5849
        %v6181 = vunpack.c.l.b16 %v5850
        %v6182 = vunpack.c.h.b16 %v5850
        %v6183 = vunpack.c.l.b16 %v5851
        %v6184 = vunpack.c.h.b16 %v5851
        %v6185 = vunpack.c.l.b16 %v5852
        %v6186 = vunpack.c.h.b16 %v5852
        %v6187 = vunpack.c.l.b16 %v5853
        %v6188 = vunpack.c.h.b16 %v5853
        %v6189 = vunpack.c.l.b16 %v5854
        %v6190 = vunpack.c.h.b16 %v5854
        %v6191 = vunpack.c.l.b16 %v5855
        %v6192 = vunpack.c.h.b16 %v5855
        %v6193 = vunpack.c.l.b16 %v5856
        %v6194 = vunpack.c.h.b16 %v5856
        %v6195 = vunpack.c.l.b16 %v5857
        %v6196 = vunpack.c.h.b16 %v5857
        %v6197 = vunpack.c.l.b16 %v5858
        %v6198 = vunpack.c.h.b16 %v5858
        %v6199 = vunpack.c.l.b16 %v5859
        %v6200 = vunpack.c.h.b16 %v5859
        %v6201 = vunpack.c.l.b16 %v5860
        %v6202 = vunpack.c.h.b16 %v5860
        %v6203 = vunpack.c.l.b16 %v5861
        %v6204 = vunpack.c.h.b16 %v5861
        %v6205 = vunpack.c.l.b16 %v5862
        %v6206 = vunpack.c.h.b16 %v5862
        %v6207 = vunpack.c.l.b16 %v5863
        %v6208 = vunpack.c.h.b16 %v5863
        %v6209 = vunpack.c.l.b16 %v5864
        %v6210 = vunpack.c.h.b16 %v5864
        %v6211 = vunpack.c.l.b16 %v5865
        %v6212 = vunpack.c.h.b16 %v5865
        %v6213 = vunpack.c.l.b16 %v5866
        %v6214 = vunpack.c.h.b16 %v5866
        %v6215 = vunpack.c.l.b16 %v5867
        %v6216 = vunpack.c.h.b16 %v5867
        %v6217 = vunpack.c.l.b16 %v5868
        %v6218 = vunpack.c.h.b16 %v5868
        %v6219 = vunpack.c.l.b16 %v5869
        %v6220 = vunpack.c.h.b16 %v5869
        %v6221 = vunpack.c.l.b16 %v5870
        %v6222 = vunpack.c.h.b16 %v5870
        %v6223 = vunpack.c.l.b16 %v5871
        %v6224 = vunpack.c.h.b16 %v5871
        %v6225 = vunpack.c.l.b16 %v5872
        %v6226 = vunpack.c.h.b16 %v5872
        %v6227 = vunpack.c.l.b16 %v5873
        %v6228 = vunpack.c.h.b16 %v5873
        %v6229 = vunpack.c.l.b16 %v5874
        %v6230 = vunpack.c.h.b16 %v5874
        %v6231 = vunpack.c.l.b16 %v5875
        %v6232 = vunpack.c.h.b16 %v5875
        %v6233 = vunpack.c.l.b16 %v5876
        %v6234 = vunpack.c.h.b16 %v5876
        %v6235 = vunpack.c.l.b16 %v5877
        %v6236 = vunpack.c.h.b16 %v5877
        %v6237 = vunpack.c.l.b16 %v5878
        %v6238 = vunpack.c.h.b16 %v5878
        %v6239 = vunpack.c.l.b16 %v5879
        %v6240 = vunpack.c.h.b16 %v5879
        %v6241 = vunpack.c.l.b16 %v5880
        %v6242 = vunpack.c.h.b16 %v5880
        %v6243 = vunpack.c.l.b16 %v5881
        %v6244 = vunpack.c.h.b16 %v5881
        %v6245 = vunpack.c.l.b16 %v5882
        %v6246 = vunpack.c.h.b16 %v5882
        %v6247 = vunpack.c.l.b16 %v5883
        %v6248 = vunpack.c.h.b16 %v5883
        %v6249 = vunpack.c.l.b16 %v5884
        %v6250 = vunpack.c.h.b16 %v5884
        %v6251 = vunpack.c.l.b16 %v5885
        %v6252 = vunpack.c.h.b16 %v5885
        %v6253 = vunpack.c.l.b16 %v5886
        %v6254 = vunpack.c.h.b16 %v5886
        %v6255 = vunpack.c.l.b16 %v5887
        %v6256 = vunpack.c.h.b16 %v5887
        %v6257 = vunpack.c.l.b16 %v5888
        %v6258 = vunpack.c.h.b16 %v5888
        %v6259 = vunpack.c.l.b16 %v5889
        %v6260 = vunpack.c.h.b16 %v5889
        %v6261 = vunpack.c.l.b16 %v5890
        %v6262 = vunpack.c.h.b16 %v5890
        %v6263 = vunpack.c.l.b16 %v5891
        %v6264 = vunpack.c.h.b16 %v5891
        %v6265 = vunpack.c.l.b16 %v5892
        %v6266 = vunpack.c.h.b16 %v5892
        %v6267 = vunpack.c.l.b16 %v5893
        %v6268 = vunpack.c.h.b16 %v5893
        %v6269 = vunpack.c.l.b16 %v5894
        %v6270 = vunpack.c.h.b16 %v5894
        %v6271 = vunpack.c.l.b16 %v5895
        %v6272 = vunpack.c.h.b16 %v5895
        %v6273 = vunpack.c.l.b16 %v5896
        %v6274 = vunpack.c.h.b16 %v5896
        %v6275 = vunpack.c.l.b16 %v5897
        %v6276 = vunpack.c.h.b16 %v5897
        %v6277 = vunpack.c.l.b16 %v5898
        %v6278 = vunpack.c.h.b16 %v5898
        %v6279 = vunpack.c.l.b16 %v5899
        %v6280 = vunpack.c.h.b16 %v5899
        %v6281 = vunpack.c.l.b16 %v5900
        %v6282 = vunpack.c.h.b16 %v5900
        %v6283 = vunpack.c.l.b16 %v5901
        %v6284 = vunpack.c.h.b16 %v5901
        %v6285 = vunpack.c.l.b16 %v5902
        %v6286 = vunpack.c.h.b16 %v5902
        %v6287 = vpack.c.b16 %v6033, %v6031
        %v6288 = vpack.c.b16 %v6034, %v6032
        %v6289 = vpack.c.b16 %v6037, %v6035
        %v6290 = vpack.c.b16 %v6038, %v6036
        %v6291 = vpack.c.b16 %v6041, %v6039
        %v6292 = vpack.c.b16 %v6042, %v6040
        %v6293 = vpack.c.b16 %v6045, %v6043
        %v6294 = vpack.c.b16 %v6046, %v6044
        %v6295 = vpack.c.b16 %v6049, %v6047
        %v6296 = vpack.c.b16 %v6050, %v6048
        %v6297 = vpack.c.b16 %v6053, %v6051
        %v6298 = vpack.c.b16 %v6054, %v6052
        %v6299 = vpack.c.b16 %v6057, %v6055
        %v6300 = vpack.c.b16 %v6058, %v6056
        %v6301 = vpack.c.b16 %v6061, %v6059
        %v6302 = vpack.c.b16 %v6062, %v6060
        %v6303 = vpack.c.b16 %v6065, %v6063
        %v6304 = vpack.c.b16 %v6066, %v6064
        %v6305 = vpack.c.b16 %v6069, %v6067
        %v6306 = vpack.c.b16 %v6070, %v6068
        %v6307 = vpack.c.b16 %v6073, %v6071
        %v6308 = vpack.c.b16 %v6074, %v6072
        %v6309 = vpack.c.b16 %v6077, %v6075
        %v6310 = vpack.c.b16 %v6078, %v6076
        %v6311 = vpack.c.b16 %v6081, %v6079
        %v6312 = vpack.c.b16 %v6082, %v6080
        %v6313 = vpack.c.b16 %v6085, %v6083
        %v6314 = vpack.c.b16 %v6086, %v6084
        %v6315 = vpack.c.b16 %v6089, %v6087
        %v6316 = vpack.c.b16 %v6090, %v6088
        %v6317 = vpack.c.b16 %v6093, %v6091
        %v6318 = vpack.c.b16 %v6094, %v6092
        %v6319 = vpack.c.b16 %v6097, %v6095
        %v6320 = vpack.c.b16 %v6098, %v6096
        %v6321 = vpack.c.b16 %v6101, %v6099
        %v6322 = vpack.c.b16 %v6102, %v6100
        %v6323 = vpack.c.b16 %v6105, %v6103
        %v6324 = vpack.c.b16 %v6106, %v6104
        %v6325 = vpack.c.b16 %v6109, %v6107
        %v6326 = vpack.c.b16 %v6110, %v6108
        %v6327 = vpack.c.b16 %v6113, %v6111
        %v6328 = vpack.c.b16 %v6114, %v6112
        %v6329 = vpack.c.b16 %v6117, %v6115
        %v6330 = vpack.c.b16 %v6118, %v6116
        %v6331 = vpack.c.b16 %v6121, %v6119
        %v6332 = vpack.c.b16 %v6122, %v6120
        %v6333 = vpack.c.b16 %v6125, %v6123
        %v6334 = vpack.c.b16 %v6126, %v6124
        %v6335 = vpack.c.b16 %v6129, %v6127
        %v6336 = vpack.c.b16 %v6130, %v6128
        %v6337 = vpack.c.b16 %v6133, %v6131
        %v6338 = vpack.c.b16 %v6134, %v6132
        %v6339 = vpack.c.b16 %v6137, %v6135
        %v6340 = vpack.c.b16 %v6138, %v6136
        %v6341 = vpack.c.b16 %v6141, %v6139
        %v6342 = vpack.c.b16 %v6142, %v6140
        %v6343 = vpack.c.b16 %v6145, %v6143
        %v6344 = vpack.c.b16 %v6146, %v6144
        %v6345 = vpack.c.b16 %v6149, %v6147
        %v6346 = vpack.c.b16 %v6150, %v6148
        %v6347 = vpack.c.b16 %v6153, %v6151
        %v6348 = vpack.c.b16 %v6154, %v6152
        %v6349 = vpack.c.b16 %v6157, %v6155
        %v6350 = vpack.c.b16 %v6158, %v6156
        %v6351 = vpack.c.b16 %v6161, %v6159
        %v6352 = vpack.c.b16 %v6162, %v6160
        %v6353 = vpack.c.b16 %v6165, %v6163
        %v6354 = vpack.c.b16 %v6166, %v6164
        %v6355 = vpack.c.b16 %v6169, %v6167
        %v6356 = vpack.c.b16 %v6170, %v6168
        %v6357 = vpack.c.b16 %v6173, %v6171
        %v6358 = vpack.c.b16 %v6174, %v6172
        %v6359 = vpack.c.b16 %v6177, %v6175
        %v6360 = vpack.c.b16 %v6178, %v6176
        %v6361 = vpack.c.b16 %v6181, %v6179
        %v6362 = vpack.c.b16 %v6182, %v6180
        %v6363 = vpack.c.b16 %v6185, %v6183
        %v6364 = vpack.c.b16 %v6186, %v6184
        %v6365 = vpack.c.b16 %v6189, %v6187
        %v6366 = vpack.c.b16 %v6190, %v6188
        %v6367 = vpack.c.b16 %v6193, %v6191
        %v6368 = vpack.c.b16 %v6194, %v6192
        %v6369 = vpack.c.b16 %v6197, %v6195
        %v6370 = vpack.c.b16 %v6198, %v6196
        %v6371 = vpack.c.b16 %v6201, %v6199
        %v6372 = vpack.c.b16 %v6202, %v6200
        %v6373 = vpack.c.b16 %v6205, %v6203
        %v6374 = vpack.c.b16 %v6206, %v6204
        %v6375 = vpack.c.b16 %v6209, %v6207
        %v6376 = vpack.c.b16 %v6210, %v6208
        %v6377 = vpack.c.b16 %v6213, %v6211
        %v6378 = vpack.c.b16 %v6214, %v6212
        %v6379 = vpack.c.b16 %v6217, %v6215
        %v6380 = vpack.c.b16 %v6218, %v6216
        %v6381 = vpack.c.b16 %v6221, %v6219
        %v6382 = vpack.c.b16 %v6222, %v6220
        %v6383 = vpack.c.b16 %v6225, %v6223
        %v6384 = vpack.c.b16 %v6226, %v6224
        %v6385 = vpack.c.b16 %v6229, %v6227
        %v6386 = vpack.c.b16 %v6230, %v6228
        %v6387 = vpack.c.b16 %v6233, %v6231
        %v6388 = vpack.c.b16 %v6234, %v6232
        %v6389 = vpack.c.b16 %v6237, %v6235
        %v6390 = vpack.c.b16 %v6238, %v6236
        %v6391 = vpack.c.b16 %v6241, %v6239
        %v6392 = vpack.c.b16 %v6242, %v6240
        %v6393 = vpack.c.b16 %v6245, %v6243
        %v6394 = vpack.c.b16 %v6246, %v6244
        %v6395 = vpack.c.b16 %v6249, %v6247
        %v6396 = vpack.c.b16 %v6250, %v6248
        %v6397 = vpack.c.b16 %v6253, %v6251
        %v6398 = vpack.c.b16 %v6254, %v6252
        %v6399 = vpack.c.b16 %v6257, %v6255
        %v6400 = vpack.c.b16 %v6258, %v6256
        %v6401 = vpack.c.b16 %v6261, %v6259
        %v6402 = vpack.c.b16 %v6262, %v6260
        %v6403 = vpack.c.b16 %v6265, %v6263
        %v6404 = vpack.c.b16 %v6266, %v6264
        %v6405 = vpack.c.b16 %v6269, %v6267
        %v6406 = vpack.c.b16 %v6270, %v6268
        %v6407 = vpack.c.b16 %v6273, %v6271
        %v6408 = vpack.c.b16 %v6274, %v6272
        %v6409 = vpack.c.b16 %v6277, %v6275
        %v6410 = vpack.c.b16 %v6278, %v6276
        %v6411 = vpack.c.b16 %v6281, %v6279
        %v6412 = vpack.c.b16 %v6282, %v6280
        %v6413 = vpack.c.b16 %v6285, %v6283
        %v6414 = vpack.c.b16 %v6286, %v6284
        %6543 = vmatpush.bf16.msra.mxu0 %v6301
        %6544 = vmatpush.bf16.msra.mxu0 %v6299
        %6545 = vmatpush.bf16.msra.mxu0 %v6297
        %6546 = vmatpush.bf16.msra.mxu0 %v6295
        %6547 = vmatpush.bf16.msra.mxu0 %v6293
        %6548 = vmatpush.bf16.msra.mxu0 %v6291
        %6549 = vmatpush.bf16.msra.mxu0 %v6289
        %6550 = vmatpush.bf16.msra.mxu0 %v6287
        %6551 = vmatmul.bf16.gmra.mxu0 %v5767
        %v6552 = vpop.f32.mrf.mxu0
        %v6553 = vadd.f32 0.0, %v6552
        %v6554 = vpop.f32.mrf.mxu0
        %6555 = vdwg.mxu0
        %6556 = vmatpush.bf16.msra.mxu0 %v6317
        %6557 = vmatpush.bf16.msra.mxu0 %v6315
        %6558 = vmatpush.bf16.msra.mxu0 %v6313
        %6559 = vmatpush.bf16.msra.mxu0 %v6311
        %6560 = vmatpush.bf16.msra.mxu0 %v6309
        %6561 = vmatpush.bf16.msra.mxu0 %v6307
        %6562 = vmatpush.bf16.msra.mxu0 %v6305
        %6563 = vmatpush.bf16.msra.mxu0 %v6303
        %6564 = vmatmul.bf16.gmra.mxu0 %v5768
        %v6565 = vpop.f32.mrf.mxu0
        %v6566 = vadd.f32 %v6553, %v6565
        %v6567 = vpop.f32.mrf.mxu0
        %6568 = vdwg.mxu0
        %6569 = vmatpush.bf16.msra.mxu0 %v6333
        %6570 = vmatpush.bf16.msra.mxu0 %v6331
        %6571 = vmatpush.bf16.msra.mxu0 %v6329
        %6572 = vmatpush.bf16.msra.mxu0 %v6327
        %6573 = vmatpush.bf16.msra.mxu0 %v6325
        %6574 = vmatpush.bf16.msra.mxu0 %v6323
        %6575 = vmatpush.bf16.msra.mxu0 %v6321
        %6576 = vmatpush.bf16.msra.mxu0 %v6319
        %6577 = vmatmul.bf16.gmra.mxu0 %v5769
        %v6578 = vpop.f32.mrf.mxu0
        %v6579 = vadd.f32 %v6566, %v6578
        %v6580 = vpop.f32.mrf.mxu0
        %6581 = vdwg.mxu0
        %6582 = vmatpush.bf16.msra.mxu0 %v6349
        %6583 = vmatpush.bf16.msra.mxu0 %v6347
        %6584 = vmatpush.bf16.msra.mxu0 %v6345
        %6585 = vmatpush.bf16.msra.mxu0 %v6343
        %6586 = vmatpush.bf16.msra.mxu0 %v6341
        %6587 = vmatpush.bf16.msra.mxu0 %v6339
        %6588 = vmatpush.bf16.msra.mxu0 %v6337
        %6589 = vmatpush.bf16.msra.mxu0 %v6335
        %6590 = vmatmul.bf16.gmra.mxu0 %v5770
        %v6591 = vpop.f32.mrf.mxu0
        %v6592 = vadd.f32 %v6579, %v6591
        %v6593 = vpop.f32.mrf.mxu0
        %6594 = vdwg.mxu0
        %6595 = vmatpush.bf16.msra.mxu0 %v6365
        %6596 = vmatpush.bf16.msra.mxu0 %v6363
        %6597 = vmatpush.bf16.msra.mxu0 %v6361
        %6598 = vmatpush.bf16.msra.mxu0 %v6359
        %6599 = vmatpush.bf16.msra.mxu0 %v6357
        %6600 = vmatpush.bf16.msra.mxu0 %v6355
        %6601 = vmatpush.bf16.msra.mxu0 %v6353
        %6602 = vmatpush.bf16.msra.mxu0 %v6351
        %6603 = vmatmul.bf16.gmra.mxu0 %v5771
        %v6604 = vpop.f32.mrf.mxu0
        %v6605 = vadd.f32 %v6592, %v6604
        %v6606 = vpop.f32.mrf.mxu0
        %6607 = vdwg.mxu0
        %6608 = vmatpush.bf16.msra.mxu0 %v6381
        %6609 = vmatpush.bf16.msra.mxu0 %v6379
        %6610 = vmatpush.bf16.msra.mxu0 %v6377
        %6611 = vmatpush.bf16.msra.mxu0 %v6375
        %6612 = vmatpush.bf16.msra.mxu0 %v6373
        %6613 = vmatpush.bf16.msra.mxu0 %v6371
        %6614 = vmatpush.bf16.msra.mxu0 %v6369
        %6615 = vmatpush.bf16.msra.mxu0 %v6367
        %6616 = vmatmul.bf16.gmra.mxu0 %v5772
        %v6617 = vpop.f32.mrf.mxu0
        %v6618 = vadd.f32 %v6605, %v6617
        %v6619 = vpop.f32.mrf.mxu0
        %6620 = vdwg.mxu0
        %6621 = vmatpush.bf16.msra.mxu0 %v6397
        %6622 = vmatpush.bf16.msra.mxu0 %v6395
        %6623 = vmatpush.bf16.msra.mxu0 %v6393
        %6624 = vmatpush.bf16.msra.mxu0 %v6391
        %6625 = vmatpush.bf16.msra.mxu0 %v6389
        %6626 = vmatpush.bf16.msra.mxu0 %v6387
        %6627 = vmatpush.bf16.msra.mxu0 %v6385
        %6628 = vmatpush.bf16.msra.mxu0 %v6383
        %6629 = vmatmul.bf16.gmra.mxu0 %v5773
        %v6630 = vpop.f32.mrf.mxu0
        %v6631 = vadd.f32 %v6618, %v6630
        %v6632 = vpop.f32.mrf.mxu0
        %6633 = vdwg.mxu0
        %6634 = vmatpush.bf16.msra.mxu0 %v6413
        %6635 = vmatpush.bf16.msra.mxu0 %v6411
        %6636 = vmatpush.bf16.msra.mxu0 %v6409
        %6637 = vmatpush.bf16.msra.mxu0 %v6407
        %6638 = vmatpush.bf16.msra.mxu0 %v6405
        %6639 = vmatpush.bf16.msra.mxu0 %v6403
        %6640 = vmatpush.bf16.msra.mxu0 %v6401
        %6641 = vmatpush.bf16.msra.mxu0 %v6399
        %6642 = vmatmul.bf16.gmra.mxu0 %v5774
        %v6643 = vpop.f32.mrf.mxu0
        %v6644 = vadd.f32 %v6631, %v6643
        %v6645 = vpop.f32.mrf.mxu0
        %6646 = vdwg.mxu0
        %6647 = vmatpush.bf16.msra.mxu0 %v6302
        %6648 = vmatpush.bf16.msra.mxu0 %v6300
        %6649 = vmatpush.bf16.msra.mxu0 %v6298
        %6650 = vmatpush.bf16.msra.mxu0 %v6296
        %6651 = vmatpush.bf16.msra.mxu0 %v6294
        %6652 = vmatpush.bf16.msra.mxu0 %v6292
        %6653 = vmatpush.bf16.msra.mxu0 %v6290
        %6654 = vmatpush.bf16.msra.mxu0 %v6288
        %6655 = vmatmul.bf16.gmra.mxu0 %v5767
        %v6656 = vpop.f32.mrf.mxu0
        %v6657 = vadd.f32 0.0, %v6656
        %v6658 = vpop.f32.mrf.mxu0
        %6659 = vdwg.mxu0
        %6660 = vmatpush.bf16.msra.mxu0 %v6318
        %6661 = vmatpush.bf16.msra.mxu0 %v6316
        %6662 = vmatpush.bf16.msra.mxu0 %v6314
        %6663 = vmatpush.bf16.msra.mxu0 %v6312
        %6664 = vmatpush.bf16.msra.mxu0 %v6310
        %6665 = vmatpush.bf16.msra.mxu0 %v6308
        %6666 = vmatpush.bf16.msra.mxu0 %v6306
        %6667 = vmatpush.bf16.msra.mxu0 %v6304
        %6668 = vmatmul.bf16.gmra.mxu0 %v5768
        %v6669 = vpop.f32.mrf.mxu0
        %v6670 = vadd.f32 %v6657, %v6669
        %v6671 = vpop.f32.mrf.mxu0
        %6672 = vdwg.mxu0
        %6673 = vmatpush.bf16.msra.mxu0 %v6334
        %6674 = vmatpush.bf16.msra.mxu0 %v6332
        %6675 = vmatpush.bf16.msra.mxu0 %v6330
        %6676 = vmatpush.bf16.msra.mxu0 %v6328
        %6677 = vmatpush.bf16.msra.mxu0 %v6326
        %6678 = vmatpush.bf16.msra.mxu0 %v6324
        %6679 = vmatpush.bf16.msra.mxu0 %v6322
        %6680 = vmatpush.bf16.msra.mxu0 %v6320
        %6681 = vmatmul.bf16.gmra.mxu0 %v5769
        %v6682 = vpop.f32.mrf.mxu0
        %v6683 = vadd.f32 %v6670, %v6682
        %v6684 = vpop.f32.mrf.mxu0
        %6685 = vdwg.mxu0
        %6686 = vmatpush.bf16.msra.mxu0 %v6350
        %6687 = vmatpush.bf16.msra.mxu0 %v6348
        %6688 = vmatpush.bf16.msra.mxu0 %v6346
        %6689 = vmatpush.bf16.msra.mxu0 %v6344
        %6690 = vmatpush.bf16.msra.mxu0 %v6342
        %6691 = vmatpush.bf16.msra.mxu0 %v6340
        %6692 = vmatpush.bf16.msra.mxu0 %v6338
        %6693 = vmatpush.bf16.msra.mxu0 %v6336
        %6694 = vmatmul.bf16.gmra.mxu0 %v5770
        %v6695 = vpop.f32.mrf.mxu0
        %v6696 = vadd.f32 %v6683, %v6695
        %v6697 = vpop.f32.mrf.mxu0
        %6698 = vdwg.mxu0
        %6699 = vmatpush.bf16.msra.mxu0 %v6366
        %6700 = vmatpush.bf16.msra.mxu0 %v6364
        %6701 = vmatpush.bf16.msra.mxu0 %v6362
        %6702 = vmatpush.bf16.msra.mxu0 %v6360
        %6703 = vmatpush.bf16.msra.mxu0 %v6358
        %6704 = vmatpush.bf16.msra.mxu0 %v6356
        %6705 = vmatpush.bf16.msra.mxu0 %v6354
        %6706 = vmatpush.bf16.msra.mxu0 %v6352
        %6707 = vmatmul.bf16.gmra.mxu0 %v5771
        %v6708 = vpop.f32.mrf.mxu0
        %v6709 = vadd.f32 %v6696, %v6708
        %v6710 = vpop.f32.mrf.mxu0
        %6711 = vdwg.mxu0
        %6712 = vmatpush.bf16.msra.mxu0 %v6382
        %6713 = vmatpush.bf16.msra.mxu0 %v6380
        %6714 = vmatpush.bf16.msra.mxu0 %v6378
        %6715 = vmatpush.bf16.msra.mxu0 %v6376
        %6716 = vmatpush.bf16.msra.mxu0 %v6374
        %6717 = vmatpush.bf16.msra.mxu0 %v6372
        %6718 = vmatpush.bf16.msra.mxu0 %v6370
        %6719 = vmatpush.bf16.msra.mxu0 %v6368
        %6720 = vmatmul.bf16.gmra.mxu0 %v5772
        %v6721 = vpop.f32.mrf.mxu0
        %v6722 = vadd.f32 %v6709, %v6721
        %v6723 = vpop.f32.mrf.mxu0
        %6724 = vdwg.mxu0
        %6725 = vmatpush.bf16.msra.mxu0 %v6398
        %6726 = vmatpush.bf16.msra.mxu0 %v6396
        %6727 = vmatpush.bf16.msra.mxu0 %v6394
        %6728 = vmatpush.bf16.msra.mxu0 %v6392
        %6729 = vmatpush.bf16.msra.mxu0 %v6390
        %6730 = vmatpush.bf16.msra.mxu0 %v6388
        %6731 = vmatpush.bf16.msra.mxu0 %v6386
        %6732 = vmatpush.bf16.msra.mxu0 %v6384
        %6733 = vmatmul.bf16.gmra.mxu0 %v5773
        %v6734 = vpop.f32.mrf.mxu0
        %v6735 = vadd.f32 %v6722, %v6734
        %v6736 = vpop.f32.mrf.mxu0
        %6737 = vdwg.mxu0
        %6738 = vmatpush.bf16.msra.mxu0 %v6414
        %6739 = vmatpush.bf16.msra.mxu0 %v6412
        %6740 = vmatpush.bf16.msra.mxu0 %v6410
        %6741 = vmatpush.bf16.msra.mxu0 %v6408
        %6742 = vmatpush.bf16.msra.mxu0 %v6406
        %6743 = vmatpush.bf16.msra.mxu0 %v6404
        %6744 = vmatpush.bf16.msra.mxu0 %v6402
        %6745 = vmatpush.bf16.msra.mxu0 %v6400
        %6746 = vmatmul.bf16.gmra.mxu0 %v5774
        %v6747 = vpop.f32.mrf.mxu0
        %v6748 = vadd.f32 %v6735, %v6747
        %v6749 = vpop.f32.mrf.mxu0
        %6750 = vdwg.mxu0
        %v6751 = vadd.f32 %v5765, %v6644
        %v6752 = vadd.f32 %v5766, %v6748
        %6753 = vst [vmem:[%s670] sm:$0xff] %v6751
        %6754 = vst [vmem:[%s670 + $0x8] sm:$0xff] %v6752
        %p6755 = scmp.lt.s32.totalorder %s32, 1
        %s6756 = scalar_select %p6755, %s32, 1
        %s6757 = smul.addr %s6756, 2
        %s6758 = smul.addr %s6757, 8
        %s6759 = scalar_lea.vmem %s12, %s6758
        // Predicated region
        $region117: #{recon_detection_map_with_kp.1} parent=67 // pred_check
          %p6760 = pneg %p337
        $region118: #{recon_detection_map_with_kp.1} parent=67 // pred_check_branch
          %6762 = sbr.rel (%p6760) target = $region120
        $region119: #{recon_detection_map_with_kp.1} parent=67 // pred_region
          _
        $region120: #{recon_detection_map_with_kp.1} parent=67 // pred_fallthru
          _
      $region68: #{recon_detection_map_with_kp.1} parent=5 // pred_fallthru
        _
      %p6763 = scmp.le.s32.totalorder 2, %s23
      // Predicated region
      $region121: #{recon_detection_map_with_kp.1} parent=5 // pred_check
        %p6764 = pneg %p6763
      $region122: #{recon_detection_map_with_kp.1} parent=5 // pred_check_branch
        %6766 = sbr.rel (%p6764) target = $region124
      $region123: #{recon_detection_map_with_kp.1} parent=5 // pred_region
        %s6767 = ssub.s32 %s23, 2
        // Predicated region
        $region125: #{recon_detection_map_with_kp.1} parent=123 // pred_check
          %p6768 = pneg %p343
        $region126: #{recon_detection_map_with_kp.1} parent=123 // pred_check_branch
          %6770 = sbr.rel (%p6768) target = $region128
        $region127: #{recon_detection_map_with_kp.1} parent=123 // pred_region
          %p6771 = scmp.lt.s32.totalorder %s34, 1
          %s6772 = scalar_select %p6771, %s34, 1
          %s6773 = smul.addr %s6772, 2
          %s6774 = smul.addr %s6773, 8
          %s6775 = scalar_lea.vmem %s12, %s6774
        $region128: #{recon_detection_map_with_kp.1} parent=123 // pred_fallthru
          _
      $region124: #{recon_detection_map_with_kp.1} parent=5 // pred_fallthru
        _
    $region6: #{recon_detection_map_with_kp.1} parent=1 // loop_footer
      %s27 = sadd.s32 1, %s23
    $region7: #{recon_detection_map_with_kp.1} parent=1 // loop_footer_branch
      %22 = sbr.rel target = $region3
    $region8: #{recon_detection_map_with_kp.1} parent=1 // loop_exit
      _
    %6776 = vsyncpa [#allocation4], 1
    %s6777 = scalar_lea.sflag [#allocation4], 1
    %6778 = vsyncpa %s6777, 1
    %6779 = vsyncpa [#allocation6], 1
    %6780 = vsyncpa [#allocation9], 1
    %6781 = vsyncpa [#allocation12], 1
    %6782 = vsyncpa [#allocation15], 1

</llo_original>
